<compile_context>
chip_gen: v7x
topology: tpu7x:2x2x1
jax: 0.10.0
libtpu: 0.0.40
codegen_flags: <defaults>
</compile_context>

<pallas_src>
import numpy as np
import jax
import jax.numpy as jnp
from jax.experimental import pallas as pl
from jax.experimental.pallas import tpu as pltpu


def _dft_constants(h, w):
    """Kronecker 2-D DFT matrices with the 1/(H*W) folded forward, as bf16.

    Returns:
      f_fwd: (HW, 2HW) = [Re(F) | Im(F)] / (H*W)     forward DFT (normalized)
      g_top: (HW, 2HW) = [Re(F) | -Im(F)]            inverse (conj(F)) top rows
      g_bot: (HW, 2HW) = [Im(F) |  Re(F)]            inverse (conj(F)) bottom rows
    so that  [Yr | Yi] -> Yr @ g_top + Yi @ g_bot = [Re(ifft) | Im(ifft)].
    """
    def dft(n):
        k = np.arange(n)
        kk = np.outer(k, k) % n            # reduce mod n for angle precision
        return np.exp(-2j * np.pi * kk / n)

    f2 = np.kron(dft(h), dft(w))           # (HW, HW); symmetric
    fr = np.real(f2).astype(np.float32)
    fi = np.imag(f2).astype(np.float32)
    n = h * w
    f_fwd = np.concatenate([fr, fi], axis=1) / n           # 1/n folded forward
    g_top = np.concatenate([fr, -fi], axis=1)              # [Gr | Gi], G = conj(F)
    g_bot = np.concatenate([fi, fr], axis=1)               # [-Gi | Gr]
    return tuple(jnp.asarray(a, dtype=jnp.bfloat16) for a in (f_fwd, g_top, g_bot))


def _choose_block_batches(B, C, target_m=256):
    """Pick batches-per-step Bt: Bt*C <= 256, divides B, prefers >= 2 grid steps."""
    divs = [d for d in range(1, B + 1) if B % d == 0]
    fits = [d for d in divs if d * C <= target_m and (d * C) % 8 == 0]
    if not fits:
        return B                      # single full block: full-dim BlockSpec is always legal
    bt = max(fits)
    if B // bt < 2:                   # v7x: 2 TensorCores want >= 2 parallel steps
        cands = [d for d in fits if B // d >= 2 and d * C >= 128]
        if cands:
            bt = max(cands)
    return bt


def ffm_kernel(x_ref, w12_ref, b12_ref, f_ref, gt_ref, gb_ref,
               alpha_ref, beta_ref, out_ref):
    m, hw = x_ref.shape
    x = x_ref[...]                                          # (M, HW) f32, M = Bt*C

    # Fused 1x1 convs for both branches: block-diagonal kron(I_Bt, w1/w2)
    # stacked into one (2M, M) bf16 weight -> single well-shaped MXU matmul.
    y = jnp.dot(w12_ref[...], x.astype(jnp.bfloat16),
                preferred_element_type=jnp.float32) + b12_ref[...]
    x1 = y[:m]                                              # (M, HW) f32
    x2 = y[m:]                                              # (M, HW) f32

    # fft2(x2): one (M, HW) @ (HW, 2HW) matmul -> [Re | Im] of the (1/HW-scaled)
    # spectrum; the folding keeps values O(|x|) before the bf16 casts below.
    s = jnp.dot(x2.astype(jnp.bfloat16), f_ref[...],
                preferred_element_type=jnp.float32)         # (M, 2HW)

    # Complex multiply by the (real) x1 branch -- f32 on the VPU.
    yr = (x1 * s[:, :hw]).astype(jnp.bfloat16)              # Re part
    yi = (x1 * s[:, hw:]).astype(jnp.bfloat16)              # Im part

    # ifft2 (conj-DFT; 1/HW was folded forward): two accumulated matmuls,
    # no (M, 2HW) f32 concat temporary.
    v = (jnp.dot(yr, gt_ref[...], preferred_element_type=jnp.float32) +
         jnp.dot(yi, gb_ref[...], preferred_element_type=jnp.float32))
    vr = v[:, :hw]
    vi = v[:, hw:]

    mag = jnp.sqrt(vr * vr + vi * vi)                       # torch.abs of complex
    out_ref[...] = (mag * alpha_ref[...] + x * beta_ref[...]).astype(out_ref.dtype)


def _const_spec(shape):
    n = len(shape)
    return pl.BlockSpec(shape, lambda *_, _n=n: (0,) * _n)


def ffm_pallas(x, w1, b1, w2, b2, alpha, beta):
    B, C, H, W = x.shape
    HW = H * W
    Bt = _choose_block_batches(B, C)
    M = Bt * C
    steps = B // Bt

    # Lane-dense (HW multiple of 128 here), batch folded into rows (b, c).
    xf = x.reshape(B * C, HW)

    # Block-diagonal channel-mix weights (row/col index = b_local*C + c).
    eye = jnp.eye(Bt, dtype=jnp.float32)
    w12 = jnp.concatenate([jnp.kron(eye, w1), jnp.kron(eye, w2)],
                          axis=0).astype(jnp.bfloat16)                      # (2M, M)
    b12 = jnp.concatenate([jnp.tile(b1.reshape(C), (Bt,)),
                           jnp.tile(b2.reshape(C), (Bt,))]
                          ).reshape(2 * M, 1).astype(jnp.float32)           # (2M, 1)
    alpha_m = jnp.tile(alpha.reshape(C), (Bt,)).reshape(M, 1).astype(jnp.float32)
    beta_m = jnp.tile(beta.reshape(C), (Bt,)).reshape(M, 1).astype(jnp.float32)
    f_fwd, g_top, g_bot = _dft_constants(H, W)

    # Advisory cost estimate for XLA's scheduler.
    flops = steps * (2 * (2 * M) * M * HW            # fused 1x1 channel mix
                     + 2 * M * HW * (2 * HW)         # forward DFT
                     + 2 * (2 * M * HW * (2 * HW)))  # inverse DFT (2 matmuls)
    bytes_accessed = (2 * B * C * HW * 4             # x in + out (f32)
                      + (2 * M) * M * 2 + (2 * M) * 4
                      + 3 * HW * (2 * HW) * 2        # DFT matrices (bf16)
                      + 2 * M * 4)
    cost = pl.CostEstimate(flops=flops, transcendentals=B * C * HW,
                           bytes_accessed=bytes_accessed)

    out = pl.pallas_call(
        ffm_kernel,
        out_shape=jax.ShapeDtypeStruct((B * C, HW), x.dtype),
        grid=(steps,),
        in_specs=[
            pl.BlockSpec((M, HW), lambda i: (i, 0)),   # x, Bt batches per step
            _const_spec((2 * M, M)),                   # block-diag 1x1-conv weights (bf16)
            _const_spec((2 * M, 1)),                   # stacked biases (f32)
            _const_spec((HW, 2 * HW)),                 # forward Kronecker DFT / HW (bf16)
            _const_spec((HW, 2 * HW)),                 # inverse DFT, Re rows (bf16)
            _const_spec((HW, 2 * HW)),                 # inverse DFT, Im rows (bf16)
            _const_spec((M, 1)),                       # alpha (per-channel, tiled to M)
            _const_spec((M, 1)),                       # beta
        ],
        out_specs=pl.BlockSpec((M, HW), lambda i: (i, 0)),
        compiler_params=pltpu.CompilerParams(
            dimension_semantics=("parallel",),
            vmem_limit_bytes=32 * 1024 * 1024),
        cost_estimate=cost,
    )(xf, w12, b12, f_fwd, g_top, g_bot, alpha_m, beta_m)
    return out.reshape(B, C, H, W)


def ffm_ref(x, w1, b1, w2, b2, alpha, beta):
    """Pure-JAX reference mirroring the PyTorch forward (uses real FFT routines)."""
    prec = jax.lax.Precision.HIGHEST
    x1 = jnp.einsum('oc,bchw->bohw', w1, x, precision=prec) + b1[None]
    x2 = jnp.einsum('oc,bchw->bohw', w2, x, precision=prec) + b2[None]
    x2f = jnp.fft.fft2(x2.astype(jnp.complex64))                   # norm='backward'
    out = jnp.fft.ifft2(x1.astype(jnp.complex64) * x2f)
    out = jnp.abs(out).astype(x.dtype)
    return out * alpha[None] + x * beta[None]


if __name__ == "__main__":
    # Small shapes, but with enough batch to exercise the batch->M folding
    # (Bt=16, M=128, grid of 2 parallel steps).
    B, C, H, W = 32, 8, 16, 16
    key = jax.random.PRNGKey(0)
    k = jax.random.split(key, 6)

    x = jax.random.normal(k[0], (B, C, H, W), jnp.float32)

    # Deterministic parameter init (module __init__ gives the shapes).
    w1 = jax.random.normal(k[1], (C, C), jnp.float32) / jnp.sqrt(C)
    b1 = jax.random.normal(k[2], (C, 1, 1), jnp.float32) * 0.1
    w2 = jax.random.normal(k[3], (C, C), jnp.float32) / jnp.sqrt(C)
    b2 = jax.random.normal(k[4], (C, 1, 1), jnp.float32) * 0.1
    # Module inits alpha=zeros / beta=ones; alpha=0 would zero out the spectral
    # branch, so use a nonzero deterministic alpha to actually exercise the kernel.
    alpha = jax.random.normal(k[5], (C, 1, 1), jnp.float32) * 0.5
    beta = jnp.ones((C, 1, 1), jnp.float32)

    out = ffm_pallas(x, w1, b1, w2, b2, alpha, beta)
    jax.block_until_ready(out)

    ref = ffm_ref(x, w1, b1, w2, b2, alpha, beta)
    assert out.shape == ref.shape and out.dtype == ref.dtype
    # bf16 MXU operands with f32 accumulation: tolerance sized for bf16.
    assert jnp.allclose(out, ref, rtol=5e-2, atol=5e-2), (
        f"max abs err {float(jnp.max(jnp.abs(out - ref)))}"
    )
    print("KERNEL_OK")
</pallas_src>

<mosaic_0001>
module attributes {stable_mosaic.version = 11 : i64} {
  func.func @ffm_kernel(%arg0: i32, %arg1: memref<128x256xf32, #tpu.memory_space<vmem>>, %arg2: memref<256x128xbf16, #tpu.memory_space<vmem>>, %arg3: memref<256x1xf32, #tpu.memory_space<vmem>>, %arg4: memref<256x512xbf16, #tpu.memory_space<vmem>>, %arg5: memref<256x512xbf16, #tpu.memory_space<vmem>>, %arg6: memref<256x512xbf16, #tpu.memory_space<vmem>>, %arg7: memref<128x1xf32, #tpu.memory_space<vmem>>, %arg8: memref<128x1xf32, #tpu.memory_space<vmem>>, %arg9: memref<128x256xf32, #tpu.memory_space<vmem>>) attributes {dimension_semantics = [#tpu.dimension_semantics<parallel>], iteration_bounds = array<i64: 2>, scalar_prefetch = 0 : i64, scratch_operands = 0 : i64, tpu.core_type = #tpu.core_type<tc>, window_params = [{transform_indices = @transform_0, window_bounds = array<i64: 128, 256>}, {pipeline_mode = #tpu.pipeline_mode<synchronous>, transform_indices = @transform_1, window_bounds = array<i64: 256, 128>}, {pipeline_mode = #tpu.pipeline_mode<synchronous>, transform_indices = @transform_2, window_bounds = array<i64: 256, 1>}, {pipeline_mode = #tpu.pipeline_mode<synchronous>, transform_indices = @transform_3, window_bounds = array<i64: 256, 512>}, {pipeline_mode = #tpu.pipeline_mode<synchronous>, transform_indices = @transform_4, window_bounds = array<i64: 256, 512>}, {pipeline_mode = #tpu.pipeline_mode<synchronous>, transform_indices = @transform_5, window_bounds = array<i64: 256, 512>}, {pipeline_mode = #tpu.pipeline_mode<synchronous>, transform_indices = @transform_6, window_bounds = array<i64: 128, 1>}, {pipeline_mode = #tpu.pipeline_mode<synchronous>, transform_indices = @transform_7, window_bounds = array<i64: 128, 1>}, {transform_indices = @transform_8, window_bounds = array<i64: 128, 256>}]} {
    %c0 = arith.constant 0 : index
    %c0_0 = arith.constant 0 : index
    %0 = vector.load %arg1[%c0, %c0_0] : memref<128x256xf32, #tpu.memory_space<vmem>>, vector<128x256xf32>
    %c0_1 = arith.constant 0 : index
    %c0_2 = arith.constant 0 : index
    %1 = vector.load %arg2[%c0_1, %c0_2] : memref<256x128xbf16, #tpu.memory_space<vmem>>, vector<256x128xbf16>
    %2 = arith.truncf %0 : vector<128x256xf32> to vector<128x256xbf16>
    %cst = arith.constant dense<0.000000e+00> : vector<256x256xf32>
    %3 = tpu.matmul %1, %2, %cst {dimension_numbers = #tpu.dot_dimension_numbers<[1], [0], [0], [1], [0, 0, 1, 1], [], []>} : vector<256x128xbf16>, vector<128x256xbf16>, vector<256x256xf32> -> vector<256x256xf32>
    %c0_3 = arith.constant 0 : index
    %c0_4 = arith.constant 0 : index
    %4 = vector.load %arg3[%c0_3, %c0_4] : memref<256x1xf32, #tpu.memory_space<vmem>>, vector<256x1xf32>
    %5 = vector.broadcast %4 : vector<256x1xf32> to vector<256x256xf32>
    %6 = arith.addf %3, %5 : vector<256x256xf32>
    %7 = vector.extract_strided_slice %6 {offsets = [0, 0], sizes = [128, 256], strides = [1, 1]} : vector<256x256xf32> to vector<128x256xf32>
    %8 = vector.extract_strided_slice %6 {offsets = [128, 0], sizes = [128, 256], strides = [1, 1]} : vector<256x256xf32> to vector<128x256xf32>
    %9 = arith.truncf %8 : vector<128x256xf32> to vector<128x256xbf16>
    %c0_5 = arith.constant 0 : index
    %c0_6 = arith.constant 0 : index
    %10 = vector.load %arg4[%c0_5, %c0_6] : memref<256x512xbf16, #tpu.memory_space<vmem>>, vector<256x512xbf16>
    %cst_7 = arith.constant dense<0.000000e+00> : vector<128x512xf32>
    %11 = tpu.matmul %9, %10, %cst_7 {dimension_numbers = #tpu.dot_dimension_numbers<[1], [0], [0], [1], [0, 0, 1, 1], [], []>} : vector<128x256xbf16>, vector<256x512xbf16>, vector<128x512xf32> -> vector<128x512xf32>
    %12 = vector.extract_strided_slice %11 {offsets = [0, 0], sizes = [128, 256], strides = [1, 1]} : vector<128x512xf32> to vector<128x256xf32>
    %13 = arith.mulf %7, %12 : vector<128x256xf32>
    %14 = arith.truncf %13 : vector<128x256xf32> to vector<128x256xbf16>
    %15 = vector.extract_strided_slice %11 {offsets = [0, 256], sizes = [128, 256], strides = [1, 1]} : vector<128x512xf32> to vector<128x256xf32>
    %16 = arith.mulf %7, %15 : vector<128x256xf32>
    %17 = arith.truncf %16 : vector<128x256xf32> to vector<128x256xbf16>
    %c0_8 = arith.constant 0 : index
    %c0_9 = arith.constant 0 : index
    %18 = vector.load %arg5[%c0_8, %c0_9] : memref<256x512xbf16, #tpu.memory_space<vmem>>, vector<256x512xbf16>
    %cst_10 = arith.constant dense<0.000000e+00> : vector<128x512xf32>
    %19 = tpu.matmul %14, %18, %cst_10 {dimension_numbers = #tpu.dot_dimension_numbers<[1], [0], [0], [1], [0, 0, 1, 1], [], []>} : vector<128x256xbf16>, vector<256x512xbf16>, vector<128x512xf32> -> vector<128x512xf32>
    %c0_11 = arith.constant 0 : index
    %c0_12 = arith.constant 0 : index
    %20 = vector.load %arg6[%c0_11, %c0_12] : memref<256x512xbf16, #tpu.memory_space<vmem>>, vector<256x512xbf16>
    %cst_13 = arith.constant dense<0.000000e+00> : vector<128x512xf32>
    %21 = tpu.matmul %17, %20, %cst_13 {dimension_numbers = #tpu.dot_dimension_numbers<[1], [0], [0], [1], [0, 0, 1, 1], [], []>} : vector<128x256xbf16>, vector<256x512xbf16>, vector<128x512xf32> -> vector<128x512xf32>
    %22 = arith.addf %19, %21 : vector<128x512xf32>
    %23 = vector.extract_strided_slice %22 {offsets = [0, 0], sizes = [128, 256], strides = [1, 1]} : vector<128x512xf32> to vector<128x256xf32>
    %24 = vector.extract_strided_slice %22 {offsets = [0, 256], sizes = [128, 256], strides = [1, 1]} : vector<128x512xf32> to vector<128x256xf32>
    %25 = arith.mulf %23, %23 : vector<128x256xf32>
    %26 = arith.mulf %24, %24 : vector<128x256xf32>
    %27 = arith.addf %25, %26 : vector<128x256xf32>
    %28 = math.sqrt %27 : vector<128x256xf32>
    %c0_14 = arith.constant 0 : index
    %c0_15 = arith.constant 0 : index
    %29 = vector.load %arg7[%c0_14, %c0_15] : memref<128x1xf32, #tpu.memory_space<vmem>>, vector<128x1xf32>
    %30 = vector.broadcast %29 : vector<128x1xf32> to vector<128x256xf32>
    %31 = arith.mulf %28, %30 : vector<128x256xf32>
    %c0_16 = arith.constant 0 : index
    %c0_17 = arith.constant 0 : index
    %32 = vector.load %arg8[%c0_16, %c0_17] : memref<128x1xf32, #tpu.memory_space<vmem>>, vector<128x1xf32>
    %33 = vector.broadcast %32 : vector<128x1xf32> to vector<128x256xf32>
    %34 = arith.mulf %0, %33 : vector<128x256xf32>
    %35 = arith.addf %31, %34 : vector<128x256xf32>
    %c0_18 = arith.constant 0 : index
    %c0_19 = arith.constant 0 : index
    %36 = vector.load %arg9[%c0_18, %c0_19] : memref<128x256xf32, #tpu.memory_space<vmem>>, vector<128x256xf32>
    tpu.vector_store %arg9[%c0_18, %c0_19], %35 {strides = array<i32>} : memref<128x256xf32, #tpu.memory_space<vmem>>, vector<128x256xf32>,
    return
  }
  func.func @transform_0(%arg0: i32) -> (i32, i32) {
    %c0_i32 = arith.constant 0 : i32
    %c0_i32_0 = arith.constant 0 : i32
    return %arg0, %c0_i32 : i32, i32
  }
  func.func @transform_1(%arg0: i32) -> (i32, i32) {
    %c0_i32 = arith.constant 0 : i32
    %c0_i32_0 = arith.constant 0 : i32
    %c0_i32_1 = arith.constant 0 : i32
    return %c0_i32, %c0_i32_0 : i32, i32
  }
  func.func @transform_2(%arg0: i32) -> (i32, i32) {
    %c0_i32 = arith.constant 0 : i32
    %c0_i32_0 = arith.constant 0 : i32
    %c0_i32_1 = arith.constant 0 : i32
    return %c0_i32, %c0_i32_0 : i32, i32
  }
  func.func @transform_3(%arg0: i32) -> (i32, i32) {
    %c0_i32 = arith.constant 0 : i32
    %c0_i32_0 = arith.constant 0 : i32
    %c0_i32_1 = arith.constant 0 : i32
    return %c0_i32, %c0_i32_0 : i32, i32
  }
  func.func @transform_4(%arg0: i32) -> (i32, i32) {
    %c0_i32 = arith.constant 0 : i32
    %c0_i32_0 = arith.constant 0 : i32
    %c0_i32_1 = arith.constant 0 : i32
    return %c0_i32, %c0_i32_0 : i32, i32
  }
  func.func @transform_5(%arg0: i32) -> (i32, i32) {
    %c0_i32 = arith.constant 0 : i32
    %c0_i32_0 = arith.constant 0 : i32
    %c0_i32_1 = arith.constant 0 : i32
    return %c0_i32, %c0_i32_0 : i32, i32
  }
  func.func @transform_6(%arg0: i32) -> (i32, i32) {
    %c0_i32 = arith.constant 0 : i32
    %c0_i32_0 = arith.constant 0 : i32
    %c0_i32_1 = arith.constant 0 : i32
    return %c0_i32, %c0_i32_0 : i32, i32
  }
  func.func @transform_7(%arg0: i32) -> (i32, i32) {
    %c0_i32 = arith.constant 0 : i32
    %c0_i32_0 = arith.constant 0 : i32
    %c0_i32_1 = arith.constant 0 : i32
    return %c0_i32, %c0_i32_0 : i32, i32
  }
  func.func @transform_8(%arg0: i32) -> (i32, i32) {
    %c0_i32 = arith.constant 0 : i32
    %c0_i32_0 = arith.constant 0 : i32
    return %arg0, %c0_i32 : i32, i32
  }
}

</mosaic_0001>

<llo_original>
// kernel: tpu_custom_call.1
$region0: #{tpu_custom_call.1}
  #allocation0 [shape = 'u32[]', space=smem, size = 0x4, offset = 0x4, fixed_abs, tag = 'smem constant byte address 0x4 - core index']
  #allocation1 [shape = 'u32[144,128]{1,0:T(1,128)}', space=vmem, size = 0x12000, scoped, tag = 'internal scratch']
  %s0 = inlined_call_operand.vmem [shape: f32[256,256], index: 0, kind: input, shape index: {}]
  %s1 = inlined_call_operand.hbm [shape: bf16[256,128], index: 1, kind: input, shape index: {}]
  %s2 = inlined_call_operand.vmem [shape: f32[256,1], index: 2, kind: input, shape index: {}]
  %s3 = inlined_call_operand.hbm [shape: bf16[256,512], index: 3, kind: input, shape index: {}]
  %s4 = inlined_call_operand.hbm [shape: bf16[256,512], index: 4, kind: input, shape index: {}]
  %s5 = inlined_call_operand.hbm [shape: bf16[256,512], index: 5, kind: input, shape index: {}]
  %s6 = inlined_call_operand.vmem [shape: f32[128,1], index: 6, kind: input, shape index: {}]
  %s7 = inlined_call_operand.vmem [shape: f32[128,1], index: 7, kind: input, shape index: {}]
  %s8 = inlined_call_operand.hbm [shape: f32[256,256], index: 8, kind: output, shape index: {}]
  %s9 = sld [smem:[#allocation0]]
  $region81: #{tpu_custom_call.1} parent=0
    _
  %s11 = ssub.s32 1, %s9
  %s12 = scalar_select 0, %s11, %s9
  $region1: #{tpu_custom_call.1} parent=0
    #allocation2 [shape = 'u8[65536]{0}', space=vmem, size = 0x10000, scoped, tag = 'input window, operand 1, single buffered']
    #allocation3 [shape = 's32[2]{0}', space=sflag, size = 0x8, scoped, tag = 'scoped memory for tpu_custom_call.1']
    #allocation4 [shape = 's32[2]{0}', space=sflag, size = 0x8, scoped, tag = 'scoped memory for tpu_custom_call.1']
    #allocation5 [shape = 'u8[262144]{0}', space=vmem, size = 0x40000, scoped, tag = 'input window, operand 3, single buffered']
    #allocation6 [shape = 's32[1]{0}', space=sflag, size = 0x4, scoped, tag = 'scoped memory for tpu_custom_call.1']
    #allocation7 [shape = 'u8[262144]{0}', space=vmem, size = 0x40000, scoped, tag = 'input window, operand 4, single buffered']
    #allocation8 [shape = 'u8[262144]{0}', space=vmem, size = 0x40000, scoped, tag = 'input window, operand 5, single buffered']
    #allocation9 [shape = 's32[1]{0}', space=sflag, size = 0x4, scoped, tag = 'scoped memory for tpu_custom_call.1']
    #allocation10 [shape = 'u8[262144]{0}', space=vmem, size = 0x40000, scoped, tag = 'output window, operand 0']
    %13 = vsyncpa [#allocation3], 0
    %14 = vsyncpa [#allocation6], 0
    %15 = vsyncpa [#allocation9], 0
    %16 = vsyncpa [#allocation4], 0
    %s17 = scalar_lea.sflag [#allocation4], 1
    %18 = vsyncpa %s17, 0
    loop: start=0, step=1, limit=4
    $region2: #{tpu_custom_call.1} parent=1 // loop_pre_header
      _
    $region3: #{tpu_custom_call.1} parent=1 // loop_header
      %s20 = sphi 0, %s24
      %p21 = scmp.ge.s32.totalorder %s20, 4
      %s30 = sphi 0, %s32
      %s33 = sphi 0, %s30
      %s34 = sphi 0, %s33
      %s50 = sphi 0, %s34
      %s54 = sphi 0, %s54
      %s56 = sphi 0, %s54
      %s57 = sphi 0, %s56
      %s71 = sphi 0, %s57
      %s75 = sphi 0, %s75
      %s77 = sphi 0, %s75
      %s78 = sphi 0, %s77
      %s92 = sphi 0, %s78
      %s96 = sphi 0, %s96
      %s98 = sphi 0, %s96
      %s99 = sphi 0, %s98
      %s113 = sphi 0, %s99
      %s117 = sphi 0, %s117
      %s119 = sphi 0, %s117
      %s120 = sphi 0, %s119
      %s134 = sphi 0, %s120
      %s138 = sphi 0, %s138
      %s140 = sphi 0, %s138
      %s141 = sphi 0, %s140
      %s155 = sphi 0, %s141
      %s159 = sphi 0, %s159
      %s161 = sphi 0, %s159
      %s162 = sphi 0, %s161
      %s176 = sphi 0, %s162
      %s180 = sphi 0, %s180
      %s182 = sphi 0, %s180
      %s183 = sphi 0, %s182
      %s197 = sphi 0, %s183
      %s203 = sphi 0, %s205
      %s206 = sphi 0, %s203
      %s207 = sphi 0, %s206
      %s223 = sphi 0, %s207
    $region4: #{tpu_custom_call.1} parent=1 // loop_header_branch
      %23 = sbr.rel (%p21) target = $region8
    $region5: #{tpu_custom_call.1} parent=1 // loop_body
      %s25 = ssub.s32 %s20, 1
      %s26 = ssub.s32 %s20, 2
      %s27 = sadd.s32 %s20, 1
      %s28 = ssub.s32 %s20, %s27
      %p29 = scmp.eq.s32.totalorder %s28, 0
      %s31 = sadd.s32 %s30, 1
      %s32 = scalar_select %p29, %s30, %s31
      %p35 = pneg %p29
      %p36 = scmp.eq.s32.totalorder %s20, 1
      %p37 = por %p35, %p36
      %p38 = scmp.ne.s32.totalorder %s30, %s33
      %p39 = scmp.eq.s32.totalorder %s20, 0
      %p40 = por %p38, %p39
      %p41 = scmp.ne.s32.totalorder %s30, %s33
      %p42 = scmp.eq.s32.totalorder %s25, 1
      %p43 = por %p41, %p42
      %p44 = scmp.ne.s32.totalorder %s33, %s34
      %p45 = scmp.eq.s32.totalorder %s25, 0
      %p46 = por %p44, %p45
      %p47 = scmp.ne.s32.totalorder %s33, %s34
      %p48 = scmp.eq.s32.totalorder %s26, 1
      %p49 = por %p47, %p48
      %p51 = scmp.ne.s32.totalorder %s34, %s50
      %p52 = scmp.eq.s32.totalorder %s26, 0
      %p53 = por %p51, %p52
      %s55 = sadd.s32 %s54, 1
      %p58 = scmp.eq.s32.totalorder %s20, 1
      %p59 = scmp.ne.s32.totalorder %s54, %s56
      %p60 = scmp.eq.s32.totalorder %s20, 0
      %p61 = por %p59, %p60
      %p62 = scmp.ne.s32.totalorder %s54, %s56
      %p63 = scmp.eq.s32.totalorder %s25, 1
      %p64 = por %p62, %p63
      %p65 = scmp.ne.s32.totalorder %s56, %s57
      %p66 = scmp.eq.s32.totalorder %s25, 0
      %p67 = por %p65, %p66
      %p68 = scmp.ne.s32.totalorder %s56, %s57
      %p69 = scmp.eq.s32.totalorder %s26, 1
      %p70 = por %p68, %p69
      %p72 = scmp.ne.s32.totalorder %s57, %s71
      %p73 = scmp.eq.s32.totalorder %s26, 0
      %p74 = por %p72, %p73
      %s76 = sadd.s32 %s75, 1
      %p79 = scmp.eq.s32.totalorder %s20, 1
      %p80 = scmp.ne.s32.totalorder %s75, %s77
      %p81 = scmp.eq.s32.totalorder %s20, 0
      %p82 = por %p80, %p81
      %p83 = scmp.ne.s32.totalorder %s75, %s77
      %p84 = scmp.eq.s32.totalorder %s25, 1
      %p85 = por %p83, %p84
      %p86 = scmp.ne.s32.totalorder %s77, %s78
      %p87 = scmp.eq.s32.totalorder %s25, 0
      %p88 = por %p86, %p87
      %p89 = scmp.ne.s32.totalorder %s77, %s78
      %p90 = scmp.eq.s32.totalorder %s26, 1
      %p91 = por %p89, %p90
      %p93 = scmp.ne.s32.totalorder %s78, %s92
      %p94 = scmp.eq.s32.totalorder %s26, 0
      %p95 = por %p93, %p94
      %s97 = sadd.s32 %s96, 1
      %p100 = scmp.eq.s32.totalorder %s20, 1
      %p101 = scmp.ne.s32.totalorder %s96, %s98
      %p102 = scmp.eq.s32.totalorder %s20, 0
      %p103 = por %p101, %p102
      %p104 = scmp.ne.s32.totalorder %s96, %s98
      %p105 = scmp.eq.s32.totalorder %s25, 1
      %p106 = por %p104, %p105
      %p107 = scmp.ne.s32.totalorder %s98, %s99
      %p108 = scmp.eq.s32.totalorder %s25, 0
      %p109 = por %p107, %p108
      %p110 = scmp.ne.s32.totalorder %s98, %s99
      %p111 = scmp.eq.s32.totalorder %s26, 1
      %p112 = por %p110, %p111
      %p114 = scmp.ne.s32.totalorder %s99, %s113
      %p115 = scmp.eq.s32.totalorder %s26, 0
      %p116 = por %p114, %p115
      %s118 = sadd.s32 %s117, 1
      %p121 = scmp.eq.s32.totalorder %s20, 1
      %p122 = scmp.ne.s32.totalorder %s117, %s119
      %p123 = scmp.eq.s32.totalorder %s20, 0
      %p124 = por %p122, %p123
      %p125 = scmp.ne.s32.totalorder %s117, %s119
      %p126 = scmp.eq.s32.totalorder %s25, 1
      %p127 = por %p125, %p126
      %p128 = scmp.ne.s32.totalorder %s119, %s120
      %p129 = scmp.eq.s32.totalorder %s25, 0
      %p130 = por %p128, %p129
      %p131 = scmp.ne.s32.totalorder %s119, %s120
      %p132 = scmp.eq.s32.totalorder %s26, 1
      %p133 = por %p131, %p132
      %p135 = scmp.ne.s32.totalorder %s120, %s134
      %p136 = scmp.eq.s32.totalorder %s26, 0
      %p137 = por %p135, %p136
      %s139 = sadd.s32 %s138, 1
      %p142 = scmp.eq.s32.totalorder %s20, 1
      %p143 = scmp.ne.s32.totalorder %s138, %s140
      %p144 = scmp.eq.s32.totalorder %s20, 0
      %p145 = por %p143, %p144
      %p146 = scmp.ne.s32.totalorder %s138, %s140
      %p147 = scmp.eq.s32.totalorder %s25, 1
      %p148 = por %p146, %p147
      %p149 = scmp.ne.s32.totalorder %s140, %s141
      %p150 = scmp.eq.s32.totalorder %s25, 0
      %p151 = por %p149, %p150
      %p152 = scmp.ne.s32.totalorder %s140, %s141
      %p153 = scmp.eq.s32.totalorder %s26, 1
      %p154 = por %p152, %p153
      %p156 = scmp.ne.s32.totalorder %s141, %s155
      %p157 = scmp.eq.s32.totalorder %s26, 0
      %p158 = por %p156, %p157
      %s160 = sadd.s32 %s159, 1
      %p163 = scmp.eq.s32.totalorder %s20, 1
      %p164 = scmp.ne.s32.totalorder %s159, %s161
      %p165 = scmp.eq.s32.totalorder %s20, 0
      %p166 = por %p164, %p165
      %p167 = scmp.ne.s32.totalorder %s159, %s161
      %p168 = scmp.eq.s32.totalorder %s25, 1
      %p169 = por %p167, %p168
      %p170 = scmp.ne.s32.totalorder %s161, %s162
      %p171 = scmp.eq.s32.totalorder %s25, 0
      %p172 = por %p170, %p171
      %p173 = scmp.ne.s32.totalorder %s161, %s162
      %p174 = scmp.eq.s32.totalorder %s26, 1
      %p175 = por %p173, %p174
      %p177 = scmp.ne.s32.totalorder %s162, %s176
      %p178 = scmp.eq.s32.totalorder %s26, 0
      %p179 = por %p177, %p178
      %s181 = sadd.s32 %s180, 1
      %p184 = scmp.eq.s32.totalorder %s20, 1
      %p185 = scmp.ne.s32.totalorder %s180, %s182
      %p186 = scmp.eq.s32.totalorder %s20, 0
      %p187 = por %p185, %p186
      %p188 = scmp.ne.s32.totalorder %s180, %s182
      %p189 = scmp.eq.s32.totalorder %s25, 1
      %p190 = por %p188, %p189
      %p191 = scmp.ne.s32.totalorder %s182, %s183
      %p192 = scmp.eq.s32.totalorder %s25, 0
      %p193 = por %p191, %p192
      %p194 = scmp.ne.s32.totalorder %s182, %s183
      %p195 = scmp.eq.s32.totalorder %s26, 1
      %p196 = por %p194, %p195
      %p198 = scmp.ne.s32.totalorder %s183, %s197
      %p199 = scmp.eq.s32.totalorder %s26, 0
      %p200 = por %p198, %p199
      %s201 = ssub.s32 %s20, %s27
      %p202 = scmp.eq.s32.totalorder %s201, 0
      %s204 = sadd.s32 %s203, 1
      %s205 = scalar_select %p202, %s203, %s204
      %p208 = pneg %p202
      %p209 = scmp.eq.s32.totalorder %s20, 1
      %p210 = por %p208, %p209
      %p211 = scmp.ne.s32.totalorder %s203, %s206
      %p212 = scmp.eq.s32.totalorder %s20, 0
      %p213 = por %p211, %p212
      %p214 = scmp.ne.s32.totalorder %s203, %s206
      %p215 = scmp.eq.s32.totalorder %s25, 1
      %p216 = por %p214, %p215
      %p217 = scmp.ne.s32.totalorder %s206, %s207
      %p218 = scmp.eq.s32.totalorder %s25, 0
      %p219 = por %p217, %p218
      %p220 = scmp.ne.s32.totalorder %s206, %s207
      %p221 = scmp.eq.s32.totalorder %s26, 1
      %p222 = por %p220, %p221
      %p224 = scmp.ne.s32.totalorder %s207, %s223
      %p225 = scmp.eq.s32.totalorder %s26, 0
      %p226 = por %p224, %p225
      %p227 = scmp.le.s32.totalorder 1, %s20
      %p228 = scmp.lt.s32.totalorder %s20, 3
      %p229 = pnand %p227, %p228
      %p230 = pneg %p229
      // Predicated region
      $region9: #{tpu_custom_call.1} parent=5 // pred_check
        _
      $region10: #{tpu_custom_call.1} parent=5 // pred_check_branch
        %232 = sbr.rel (%p229) target = $region12
      $region11: #{tpu_custom_call.1} parent=5 // pred_region
        %s233 = ssub.s32 %s20, 1
        // Predicated region
        $region13: #{tpu_custom_call.1} parent=11 // pred_check
          %p234 = pneg %p67
        $region14: #{tpu_custom_call.1} parent=11 // pred_check_branch
          %236 = sbr.rel (%p234) target = $region16
        $region15: #{tpu_custom_call.1} parent=11 // pred_region
          %s238 = ssub.s32 2048, 2048
          %239 = vsyncadd [#allocation3], %s238
          %s240 = sshll.u32 [#allocation2], 4
          %s241 = int_to_ptr.vmem [resolvable:$true] %s240
          %246 = dma.hbm_to_vmem [thread:$0]  %s1, 2048, %s241, [#allocation3], 64, 64, 4
        $region16: #{tpu_custom_call.1} parent=11 // pred_fallthru
          _
        // Predicated region
        $region17: #{tpu_custom_call.1} parent=11 // pred_check
          %p247 = pneg %p88
        $region18: #{tpu_custom_call.1} parent=11 // pred_check_branch
          %249 = sbr.rel (%p247) target = $region20
        $region19: #{tpu_custom_call.1} parent=11 // pred_region
          _
        $region20: #{tpu_custom_call.1} parent=11 // pred_fallthru
          _
        // Predicated region
        $region21: #{tpu_custom_call.1} parent=11 // pred_check
          %p250 = pneg %p109
        $region22: #{tpu_custom_call.1} parent=11 // pred_check_branch
          %252 = sbr.rel (%p250) target = $region24
        $region23: #{tpu_custom_call.1} parent=11 // pred_region
          %s254 = ssub.s32 8192, 8192
          %255 = vsyncadd [#allocation6], %s254
          %s256 = sshll.u32 [#allocation5], 4
          %s257 = int_to_ptr.vmem [resolvable:$true] %s256
          %262 = dma.hbm_to_vmem [thread:$0]  %s3, 8192, %s257, [#allocation6], 256, 256, 16
        $region24: #{tpu_custom_call.1} parent=11 // pred_fallthru
          _
        // Predicated region
        $region25: #{tpu_custom_call.1} parent=11 // pred_check
          %p263 = pneg %p130
        $region26: #{tpu_custom_call.1} parent=11 // pred_check_branch
          %265 = sbr.rel (%p263) target = $region28
        $region27: #{tpu_custom_call.1} parent=11 // pred_region
          %s267 = ssub.s32 8192, 8192
          %268 = vsyncadd [#allocation6], %s267
          %s269 = sshll.u32 [#allocation7], 4
          %s270 = int_to_ptr.vmem [resolvable:$true] %s269
          %275 = dma.hbm_to_vmem [thread:$0]  %s4, 8192, %s270, [#allocation6], 256, 256, 16
        $region28: #{tpu_custom_call.1} parent=11 // pred_fallthru
          _
        // Predicated region
        $region29: #{tpu_custom_call.1} parent=11 // pred_check
          %p276 = pneg %p151
        $region30: #{tpu_custom_call.1} parent=11 // pred_check_branch
          %278 = sbr.rel (%p276) target = $region32
        $region31: #{tpu_custom_call.1} parent=11 // pred_region
          %s280 = ssub.s32 8192, 8192
          %281 = vsyncadd [#allocation9], %s280
          %s282 = sshll.u32 [#allocation8], 4
          %s283 = int_to_ptr.vmem [resolvable:$true] %s282
          %288 = dma.hbm_to_vmem [thread:$0]  %s5, 8192, %s283, [#allocation9], 256, 256, 16
        $region32: #{tpu_custom_call.1} parent=11 // pred_fallthru
          _
        // Predicated region
        $region33: #{tpu_custom_call.1} parent=11 // pred_check
          %p289 = pneg %p172
        $region34: #{tpu_custom_call.1} parent=11 // pred_check_branch
          %291 = sbr.rel (%p289) target = $region36
        $region35: #{tpu_custom_call.1} parent=11 // pred_region
          _
        $region36: #{tpu_custom_call.1} parent=11 // pred_fallthru
          _
        // Predicated region
        $region37: #{tpu_custom_call.1} parent=11 // pred_check
          %p292 = pneg %p193
        $region38: #{tpu_custom_call.1} parent=11 // pred_check_branch
          %294 = sbr.rel (%p292) target = $region40
        $region39: #{tpu_custom_call.1} parent=11 // pred_region
          _
        $region40: #{tpu_custom_call.1} parent=11 // pred_fallthru
          _
      $region12: #{tpu_custom_call.1} parent=5 // pred_fallthru
        _
      %p295 = scmp.lt.s32.totalorder %s20, 2
      // Predicated region
      $region41: #{tpu_custom_call.1} parent=5 // pred_check
        %p296 = pneg %p295
      $region42: #{tpu_custom_call.1} parent=5 // pred_check_branch
        %298 = sbr.rel (%p296) target = $region44
      $region43: #{tpu_custom_call.1} parent=5 // pred_region
        // Predicated region
        $region45: #{tpu_custom_call.1} parent=43 // pred_check
          %p299 = pneg %p40
        $region46: #{tpu_custom_call.1} parent=43 // pred_check_branch
          %301 = sbr.rel (%p299) target = $region48
        $region47: #{tpu_custom_call.1} parent=43 // pred_region
          %s302 = smul.u32 16, %s20
          %p303 = scmp.lt.s32.totalorder %s302, 31
          %s304 = scalar_select %p303, %s302, 31
          %s305 = smul.addr %s304, 2
          %s306 = smul.addr %s305, 8
          %s307 = scalar_lea.vmem %s0, %s306
          %s308 = smul.u32 16, %s20
        $region48: #{tpu_custom_call.1} parent=43 // pred_fallthru
          _
      $region44: #{tpu_custom_call.1} parent=5 // pred_fallthru
        _
      %p309 = scmp.le.s32.totalorder 1, %s20
      %p310 = scmp.lt.s32.totalorder %s20, 3
      %p311 = pnand %p309, %p310
      %p312 = pneg %p311
      // Predicated region
      $region49: #{tpu_custom_call.1} parent=5 // pred_check
        _
      $region50: #{tpu_custom_call.1} parent=5 // pred_check_branch
        %314 = sbr.rel (%p311) target = $region52
      $region51: #{tpu_custom_call.1} parent=5 // pred_region
        %s315 = ssub.s32 %s20, 1
        // Predicated region
        $region53: #{tpu_custom_call.1} parent=51 // pred_check
          %p316 = pneg %p67
        $region54: #{tpu_custom_call.1} parent=51 // pred_check_branch
          %318 = sbr.rel (%p316) target = $region56
        $region55: #{tpu_custom_call.1} parent=51 // pred_region
          %319 = dma.done [#allocation3], 2048
        $region56: #{tpu_custom_call.1} parent=51 // pred_fallthru
          _
        // Predicated region
        $region57: #{tpu_custom_call.1} parent=51 // pred_check
          %p320 = pneg %p109
        $region58: #{tpu_custom_call.1} parent=51 // pred_check_branch
          %322 = sbr.rel (%p320) target = $region60
        $region59: #{tpu_custom_call.1} parent=51 // pred_region
          %323 = dma.done [#allocation6], 8192
        $region60: #{tpu_custom_call.1} parent=51 // pred_fallthru
          _
        // Predicated region
        $region61: #{tpu_custom_call.1} parent=51 // pred_check
          %p324 = pneg %p130
        $region62: #{tpu_custom_call.1} parent=51 // pred_check_branch
          %326 = sbr.rel (%p324) target = $region64
        $region63: #{tpu_custom_call.1} parent=51 // pred_region
          %327 = dma.done [#allocation6], 8192
        $region64: #{tpu_custom_call.1} parent=51 // pred_fallthru
          _
        // Predicated region
        $region65: #{tpu_custom_call.1} parent=51 // pred_check
          %p328 = pneg %p151
        $region66: #{tpu_custom_call.1} parent=51 // pred_check_branch
          %330 = sbr.rel (%p328) target = $region68
        $region67: #{tpu_custom_call.1} parent=51 // pred_region
          %331 = dma.done [#allocation9], 8192
        $region68: #{tpu_custom_call.1} parent=51 // pred_fallthru
          _
        %s332 = smul.u32 16, %s25
        %p333 = scmp.lt.s32.totalorder %s332, 31
        %s334 = scalar_select %p333, %s332, 31
        %s335 = smul.addr %s334, 2
        %s336 = smul.addr %s335, 8
        %s337 = scalar_lea.vmem %s0, %s336
        %p338 = pneg %p46
        %p339 = pneg %p43
        %p340 = pneg %p67
        %p341 = pneg %p64
        %p342 = pneg %p88
        %p343 = pneg %p85
        %p344 = pneg %p109
        %p345 = pneg %p106
        %p346 = pneg %p130
        %p347 = pneg %p127
        %p348 = pneg %p151
        %p349 = pneg %p148
        %p350 = pneg %p172
        %p351 = pneg %p169
        %p352 = pneg %p193
        %p353 = pneg %p190
        %p354 = pneg %p219
        %p355 = pneg %p216
        %s356 = sand.u32 %s206, 1
        %s357 = scalar_lea.sflag [#allocation4], %s356
        %s358 = sand.u32 %s206, 1
        %s359 = smul.addr %s358, 256
        %s360 = scalar_lea.vmem [#allocation10], %s359
        %s361 = smul.u32 16, %s25
        %p362 = scmp.lt.s32.totalorder %s361, 31
        %s363 = scalar_select %p362, %s361, 31
        %s364 = smul.addr %s363, 2
        %s365 = smul.addr %s364, 8
        %s366 = scalar_lea.vmem %s0, %s365
        %s367 = smul.u32 16, %s25
        %s368 = smul.u32 16, %s25
        %v370 = vld [vmem:[%s366] sm:$0xff]
        %v371 = vld [vmem:[%s366 + $0x8] sm:$0xff]
        %v372 = vld [vmem:[%s366 + $0x10] sm:$0xff]
        %v373 = vld [vmem:[%s366 + $0x18] sm:$0xff]
        %v374 = vld [vmem:[%s366 + $0x20] sm:$0xff]
        %v375 = vld [vmem:[%s366 + $0x28] sm:$0xff]
        %v376 = vld [vmem:[%s366 + $0x30] sm:$0xff]
        %v377 = vld [vmem:[%s366 + $0x38] sm:$0xff]
        %v378 = vld [vmem:[%s366 + $0x40] sm:$0xff]
        %v379 = vld [vmem:[%s366 + $0x48] sm:$0xff]
        %v380 = vld [vmem:[%s366 + $0x50] sm:$0xff]
        %v381 = vld [vmem:[%s366 + $0x58] sm:$0xff]
        %v382 = vld [vmem:[%s366 + $0x60] sm:$0xff]
        %v383 = vld [vmem:[%s366 + $0x68] sm:$0xff]
        %v384 = vld [vmem:[%s366 + $0x70] sm:$0xff]
        %v385 = vld [vmem:[%s366 + $0x78] sm:$0xff]
        %v386 = vld [vmem:[%s366 + $0x80] sm:$0xff]
        %v387 = vld [vmem:[%s366 + $0x88] sm:$0xff]
        %v388 = vld [vmem:[%s366 + $0x90] sm:$0xff]
        %v389 = vld [vmem:[%s366 + $0x98] sm:$0xff]
        %v390 = vld [vmem:[%s366 + $0xa0] sm:$0xff]
        %v391 = vld [vmem:[%s366 + $0xa8] sm:$0xff]
        %v392 = vld [vmem:[%s366 + $0xb0] sm:$0xff]
        %v393 = vld [vmem:[%s366 + $0xb8] sm:$0xff]
        %v394 = vld [vmem:[%s366 + $0xc0] sm:$0xff]
        %v395 = vld [vmem:[%s366 + $0xc8] sm:$0xff]
        %v396 = vld [vmem:[%s366 + $0xd0] sm:$0xff]
        %v397 = vld [vmem:[%s366 + $0xd8] sm:$0xff]
        %v398 = vld [vmem:[%s366 + $0xe0] sm:$0xff]
        %v399 = vld [vmem:[%s366 + $0xe8] sm:$0xff]
        %v400 = vld [vmem:[%s366 + $0xf0] sm:$0xff]
        %v401 = vld [vmem:[%s366 + $0xf8] sm:$0xff]
        %v402 = vld [vmem:[#allocation2] sm:$0xf]
        %v403 = vld [vmem:[#allocation2 + $0x4] sm:$0xf]
        %v404 = vld [vmem:[#allocation2 + $0x8] sm:$0xf]
        %v405 = vld [vmem:[#allocation2 + $0xc] sm:$0xf]
        %v406 = vld [vmem:[#allocation2 + $0x10] sm:$0xf]
        %v407 = vld [vmem:[#allocation2 + $0x14] sm:$0xf]
        %v408 = vld [vmem:[#allocation2 + $0x18] sm:$0xf]
        %v409 = vld [vmem:[#allocation2 + $0x1c] sm:$0xf]
        %v410 = vld [vmem:[#allocation2 + $0x20] sm:$0xf]
        %v411 = vld [vmem:[#allocation2 + $0x24] sm:$0xf]
        %v412 = vld [vmem:[#allocation2 + $0x28] sm:$0xf]
        %v413 = vld [vmem:[#allocation2 + $0x2c] sm:$0xf]
        %v414 = vld [vmem:[#allocation2 + $0x30] sm:$0xf]
        %v415 = vld [vmem:[#allocation2 + $0x34] sm:$0xf]
        %v416 = vld [vmem:[#allocation2 + $0x38] sm:$0xf]
        %v417 = vld [vmem:[#allocation2 + $0x3c] sm:$0xf]
        %v418 = vld [vmem:[#allocation2 + $0x40] sm:$0xf]
        %v419 = vld [vmem:[#allocation2 + $0x44] sm:$0xf]
        %v420 = vld [vmem:[#allocation2 + $0x48] sm:$0xf]
        %v421 = vld [vmem:[#allocation2 + $0x4c] sm:$0xf]
        %v422 = vld [vmem:[#allocation2 + $0x50] sm:$0xf]
        %v423 = vld [vmem:[#allocation2 + $0x54] sm:$0xf]
        %v424 = vld [vmem:[#allocation2 + $0x58] sm:$0xf]
        %v425 = vld [vmem:[#allocation2 + $0x5c] sm:$0xf]
        %v426 = vld [vmem:[#allocation2 + $0x60] sm:$0xf]
        %v427 = vld [vmem:[#allocation2 + $0x64] sm:$0xf]
        %v428 = vld [vmem:[#allocation2 + $0x68] sm:$0xf]
        %v429 = vld [vmem:[#allocation2 + $0x6c] sm:$0xf]
        %v430 = vld [vmem:[#allocation2 + $0x70] sm:$0xf]
        %v431 = vld [vmem:[#allocation2 + $0x74] sm:$0xf]
        %v432 = vld [vmem:[#allocation2 + $0x78] sm:$0xf]
        %v433 = vld [vmem:[#allocation2 + $0x7c] sm:$0xf]
        %v434 = vpack.c.bf16 %v372, %v370
        %v435 = vpack.c.bf16 %v373, %v371
        %v436 = vpack.c.bf16 %v376, %v374
        %v437 = vpack.c.bf16 %v377, %v375
        %v438 = vpack.c.bf16 %v380, %v378
        %v439 = vpack.c.bf16 %v381, %v379
        %v440 = vpack.c.bf16 %v384, %v382
        %v441 = vpack.c.bf16 %v385, %v383
        %v442 = vpack.c.bf16 %v388, %v386
        %v443 = vpack.c.bf16 %v389, %v387
        %v444 = vpack.c.bf16 %v392, %v390
        %v445 = vpack.c.bf16 %v393, %v391
        %v446 = vpack.c.bf16 %v396, %v394
        %v447 = vpack.c.bf16 %v397, %v395
        %v448 = vpack.c.bf16 %v400, %v398
        %v449 = vpack.c.bf16 %v401, %v399
        %v450 = vld [vmem:[%s2] sm:$0xff]
        %v451 = vld [vmem:[%s2 + $0x8] sm:$0xff]
        %v452 = vld [vmem:[%s2 + $0x10] sm:$0xff]
        %v453 = vld [vmem:[%s2 + $0x18] sm:$0xff]
        %v454 = vld [vmem:[%s2 + $0x20] sm:$0xff]
        %v455 = vld [vmem:[%s2 + $0x28] sm:$0xff]
        %v456 = vld [vmem:[%s2 + $0x30] sm:$0xff]
        %v457 = vld [vmem:[%s2 + $0x38] sm:$0xff]
        %v458 = vld [vmem:[%s2 + $0x40] sm:$0xff]
        %v459 = vld [vmem:[%s2 + $0x48] sm:$0xff]
        %v460 = vld [vmem:[%s2 + $0x50] sm:$0xff]
        %v461 = vld [vmem:[%s2 + $0x58] sm:$0xff]
        %v462 = vld [vmem:[%s2 + $0x60] sm:$0xff]
        %v463 = vld [vmem:[%s2 + $0x68] sm:$0xff]
        %v464 = vld [vmem:[%s2 + $0x70] sm:$0xff]
        %v465 = vld [vmem:[%s2 + $0x78] sm:$0xff]
        %v466 = vld [vmem:[%s2 + $0x80] sm:$0xff]
        %v467 = vld [vmem:[%s2 + $0x88] sm:$0xff]
        %v468 = vld [vmem:[%s2 + $0x90] sm:$0xff]
        %v469 = vld [vmem:[%s2 + $0x98] sm:$0xff]
        %v470 = vld [vmem:[%s2 + $0xa0] sm:$0xff]
        %v471 = vld [vmem:[%s2 + $0xa8] sm:$0xff]
        %v472 = vld [vmem:[%s2 + $0xb0] sm:$0xff]
        %v473 = vld [vmem:[%s2 + $0xb8] sm:$0xff]
        %v474 = vld [vmem:[%s2 + $0xc0] sm:$0xff]
        %v475 = vld [vmem:[%s2 + $0xc8] sm:$0xff]
        %v476 = vld [vmem:[%s2 + $0xd0] sm:$0xff]
        %v477 = vld [vmem:[%s2 + $0xd8] sm:$0xff]
        %v478 = vld [vmem:[%s2 + $0xe0] sm:$0xff]
        %v479 = vld [vmem:[%s2 + $0xe8] sm:$0xff]
        %v480 = vld [vmem:[%s2 + $0xf0] sm:$0xff]
        %v481 = vld [vmem:[%s2 + $0xf8] sm:$0xff]
        %483 = vset.pattern.permute.xlu0 0
        %484 = vperm.xlu0 %483, %v450
        %v485 = vpop.permute.xlu0 %484
        %488 = vset.pattern.permute.xlu0 0
        %489 = vperm.xlu0 %488, %v451
        %v490 = vpop.permute.xlu0 %489
        %493 = vset.pattern.permute.xlu0 0
        %494 = vperm.xlu0 %493, %v452
        %v495 = vpop.permute.xlu0 %494
        %498 = vset.pattern.permute.xlu0 0
        %499 = vperm.xlu0 %498, %v453
        %v500 = vpop.permute.xlu0 %499
        %503 = vset.pattern.permute.xlu0 0
        %504 = vperm.xlu0 %503, %v454
        %v505 = vpop.permute.xlu0 %504
        %508 = vset.pattern.permute.xlu0 0
        %509 = vperm.xlu0 %508, %v455
        %v510 = vpop.permute.xlu0 %509
        %513 = vset.pattern.permute.xlu0 0
        %514 = vperm.xlu0 %513, %v456
        %v515 = vpop.permute.xlu0 %514
        %518 = vset.pattern.permute.xlu0 0
        %519 = vperm.xlu0 %518, %v457
        %v520 = vpop.permute.xlu0 %519
        %523 = vset.pattern.permute.xlu0 0
        %524 = vperm.xlu0 %523, %v458
        %v525 = vpop.permute.xlu0 %524
        %528 = vset.pattern.permute.xlu0 0
        %529 = vperm.xlu0 %528, %v459
        %v530 = vpop.permute.xlu0 %529
        %533 = vset.pattern.permute.xlu0 0
        %534 = vperm.xlu0 %533, %v460
        %v535 = vpop.permute.xlu0 %534
        %538 = vset.pattern.permute.xlu0 0
        %539 = vperm.xlu0 %538, %v461
        %v540 = vpop.permute.xlu0 %539
        %543 = vset.pattern.permute.xlu0 0
        %544 = vperm.xlu0 %543, %v462
        %v545 = vpop.permute.xlu0 %544
        %548 = vset.pattern.permute.xlu0 0
        %549 = vperm.xlu0 %548, %v463
        %v550 = vpop.permute.xlu0 %549
        %553 = vset.pattern.permute.xlu0 0
        %554 = vperm.xlu0 %553, %v464
        %v555 = vpop.permute.xlu0 %554
        %558 = vset.pattern.permute.xlu0 0
        %559 = vperm.xlu0 %558, %v465
        %v560 = vpop.permute.xlu0 %559
        %563 = vset.pattern.permute.xlu0 0
        %564 = vperm.xlu0 %563, %v466
        %v565 = vpop.permute.xlu0 %564
        %568 = vset.pattern.permute.xlu0 0
        %569 = vperm.xlu0 %568, %v467
        %v570 = vpop.permute.xlu0 %569
        %573 = vset.pattern.permute.xlu0 0
        %574 = vperm.xlu0 %573, %v468
        %v575 = vpop.permute.xlu0 %574
        %578 = vset.pattern.permute.xlu0 0
        %579 = vperm.xlu0 %578, %v469
        %v580 = vpop.permute.xlu0 %579
        %583 = vset.pattern.permute.xlu0 0
        %584 = vperm.xlu0 %583, %v470
        %v585 = vpop.permute.xlu0 %584
        %588 = vset.pattern.permute.xlu0 0
        %589 = vperm.xlu0 %588, %v471
        %v590 = vpop.permute.xlu0 %589
        %593 = vset.pattern.permute.xlu0 0
        %594 = vperm.xlu0 %593, %v472
        %v595 = vpop.permute.xlu0 %594
        %598 = vset.pattern.permute.xlu0 0
        %599 = vperm.xlu0 %598, %v473
        %v600 = vpop.permute.xlu0 %599
        %603 = vset.pattern.permute.xlu0 0
        %604 = vperm.xlu0 %603, %v474
        %v605 = vpop.permute.xlu0 %604
        %608 = vset.pattern.permute.xlu0 0
        %609 = vperm.xlu0 %608, %v475
        %v610 = vpop.permute.xlu0 %609
        %613 = vset.pattern.permute.xlu0 0
        %614 = vperm.xlu0 %613, %v476
        %v615 = vpop.permute.xlu0 %614
        %618 = vset.pattern.permute.xlu0 0
        %619 = vperm.xlu0 %618, %v477
        %v620 = vpop.permute.xlu0 %619
        %623 = vset.pattern.permute.xlu0 0
        %624 = vperm.xlu0 %623, %v478
        %v625 = vpop.permute.xlu0 %624
        %628 = vset.pattern.permute.xlu0 0
        %629 = vperm.xlu0 %628, %v479
        %v630 = vpop.permute.xlu0 %629
        %633 = vset.pattern.permute.xlu0 0
        %634 = vperm.xlu0 %633, %v480
        %v635 = vpop.permute.xlu0 %634
        %638 = vset.pattern.permute.xlu0 0
        %639 = vperm.xlu0 %638, %v481
        %v640 = vpop.permute.xlu0 %639
        %v674 = vunpack.c.l.b16 %v402
        %v675 = vunpack.c.l.b16 %v403
        %v676 = vunpack.c.l.b16 %v404
        %v677 = vunpack.c.l.b16 %v405
        %v678 = vunpack.c.l.b16 %v406
        %v679 = vunpack.c.l.b16 %v407
        %v680 = vunpack.c.l.b16 %v408
        %v681 = vunpack.c.l.b16 %v409
        %v682 = vunpack.c.l.b16 %v410
        %v683 = vunpack.c.l.b16 %v411
        %v684 = vunpack.c.l.b16 %v412
        %v685 = vunpack.c.l.b16 %v413
        %v686 = vunpack.c.l.b16 %v414
        %v687 = vunpack.c.l.b16 %v415
        %v688 = vunpack.c.l.b16 %v416
        %v689 = vunpack.c.l.b16 %v417
        %v690 = vunpack.c.l.b16 %v418
        %v691 = vunpack.c.l.b16 %v419
        %v692 = vunpack.c.l.b16 %v420
        %v693 = vunpack.c.l.b16 %v421
        %v694 = vunpack.c.l.b16 %v422
        %v695 = vunpack.c.l.b16 %v423
        %v696 = vunpack.c.l.b16 %v424
        %v697 = vunpack.c.l.b16 %v425
        %v698 = vunpack.c.l.b16 %v426
        %v699 = vunpack.c.l.b16 %v427
        %v700 = vunpack.c.l.b16 %v428
        %v701 = vunpack.c.l.b16 %v429
        %v702 = vunpack.c.l.b16 %v430
        %v703 = vunpack.c.l.b16 %v431
        %v704 = vunpack.c.l.b16 %v432
        %v705 = vunpack.c.l.b16 %v433
        %v706 = vpack.c.b16 %v675, %v674
        %v707 = vpack.c.b16 %v677, %v676
        %v708 = vpack.c.b16 %v679, %v678
        %v709 = vpack.c.b16 %v681, %v680
        %v710 = vpack.c.b16 %v683, %v682
        %v711 = vpack.c.b16 %v685, %v684
        %v712 = vpack.c.b16 %v687, %v686
        %v713 = vpack.c.b16 %v689, %v688
        %v714 = vpack.c.b16 %v691, %v690
        %v715 = vpack.c.b16 %v693, %v692
        %v716 = vpack.c.b16 %v695, %v694
        %v717 = vpack.c.b16 %v697, %v696
        %v718 = vpack.c.b16 %v699, %v698
        %v719 = vpack.c.b16 %v701, %v700
        %v720 = vpack.c.b16 %v703, %v702
        %v721 = vpack.c.b16 %v705, %v704
        %738 = vmatprep.subr.bf16.mxu0 %v435
        %739 = vmatpush1.bf16.msra.mxu0 %v434
        %740 = vmatprep.subr.bf16.mxu0 %v437
        %741 = vmatpush1.bf16.msra.mxu0 %v436
        %742 = vmatprep.subr.bf16.mxu0 %v439
        %743 = vmatpush1.bf16.msra.mxu0 %v438
        %744 = vmatprep.subr.bf16.mxu0 %v441
        %745 = vmatpush1.bf16.msra.mxu0 %v440
        %746 = vmatprep.subr.bf16.mxu0 %v443
        %747 = vmatpush1.bf16.msra.mxu0 %v442
        %748 = vmatprep.subr.bf16.mxu0 %v445
        %749 = vmatpush1.bf16.msra.mxu0 %v444
        %750 = vmatprep.subr.bf16.mxu0 %v447
        %751 = vmatpush1.bf16.msra.mxu0 %v446
        %752 = vmatprep.subr.bf16.mxu0 %v449
        %753 = vmatpush1.bf16.msra.mxu0 %v448
        %754 = vmatprep.subr.bf16.mxu0 0
        %755 = vmatpush1.bf16.msra.mxu0 0
        %756 = vmatprep.subr.bf16.mxu0 0
        %757 = vmatpush1.bf16.msra.mxu0 0
        %758 = vmatprep.subr.bf16.mxu0 0
        %759 = vmatpush1.bf16.msra.mxu0 0
        %760 = vmatprep.subr.bf16.mxu0 0
        %761 = vmatpush1.bf16.msra.mxu0 0
        %762 = vmatprep.subr.bf16.mxu0 0
        %763 = vmatpush1.bf16.msra.mxu0 0
        %764 = vmatprep.subr.bf16.mxu0 0
        %765 = vmatpush1.bf16.msra.mxu0 0
        %766 = vmatprep.subr.bf16.mxu0 0
        %767 = vmatpush1.bf16.msra.mxu0 0
        %768 = vmatprep.subr.bf16.mxu0 0
        %769 = vmatpush1.bf16.msra.mxu0 0
        %770 = vmatprep.mubr.bf16.mxu0 0
        %771 = vmatmul.mubr.bf16.gmra.mrb[0].mxu0 %v706
        %v772 = vpop.f32.mrb[0].mxu0
        %v773 = vadd.f32 %v485, %v772
        %v774 = vpop.f32.mrb[0].mxu0
        %v775 = vadd.f32 %v485, %v774
        %v776 = vpop.f32.mrb[0].mxu0
        %v777 = vadd.f32 %v490, %v776
        %v778 = vpop.f32.mrb[0].mxu0
        %v779 = vadd.f32 %v490, %v778
        %780 = vmatprep.mubr.bf16.mxu0 0
        %781 = vmatmul.mubr.bf16.gmra.mrb[0].mxu0 %v707
        %v782 = vpop.f32.mrb[0].mxu0
        %v783 = vadd.f32 %v495, %v782
        %v784 = vpop.f32.mrb[0].mxu0
        %v785 = vadd.f32 %v495, %v784
        %v786 = vpop.f32.mrb[0].mxu0
        %v787 = vadd.f32 %v500, %v786
        %v788 = vpop.f32.mrb[0].mxu0
        %v789 = vadd.f32 %v500, %v788
        %790 = vmatprep.mubr.bf16.mxu0 0
        %791 = vmatmul.mubr.bf16.gmra.mrb[0].mxu0 %v708
        %v792 = vpop.f32.mrb[0].mxu0
        %v793 = vadd.f32 %v505, %v792
        %v794 = vpop.f32.mrb[0].mxu0
        %v795 = vadd.f32 %v505, %v794
        %v796 = vpop.f32.mrb[0].mxu0
        %v797 = vadd.f32 %v510, %v796
        %v798 = vpop.f32.mrb[0].mxu0
        %v799 = vadd.f32 %v510, %v798
        %800 = vmatprep.mubr.bf16.mxu0 0
        %801 = vmatmul.mubr.bf16.gmra.mrb[0].mxu0 %v709
        %v802 = vpop.f32.mrb[0].mxu0
        %v803 = vadd.f32 %v515, %v802
        %v804 = vpop.f32.mrb[0].mxu0
        %v805 = vadd.f32 %v515, %v804
        %v806 = vpop.f32.mrb[0].mxu0
        %v807 = vadd.f32 %v520, %v806
        %v808 = vpop.f32.mrb[0].mxu0
        %v809 = vadd.f32 %v520, %v808
        %810 = vmatprep.mubr.bf16.mxu0 0
        %811 = vmatmul.mubr.bf16.gmra.mrb[0].mxu0 %v710
        %v812 = vpop.f32.mrb[0].mxu0
        %v813 = vadd.f32 %v525, %v812
        %v814 = vpop.f32.mrb[0].mxu0
        %v815 = vadd.f32 %v525, %v814
        %v816 = vpop.f32.mrb[0].mxu0
        %v817 = vadd.f32 %v530, %v816
        %v818 = vpop.f32.mrb[0].mxu0
        %v819 = vadd.f32 %v530, %v818
        %820 = vmatprep.mubr.bf16.mxu0 0
        %821 = vmatmul.mubr.bf16.gmra.mrb[0].mxu0 %v711
        %v822 = vpop.f32.mrb[0].mxu0
        %v823 = vadd.f32 %v535, %v822
        %v824 = vpop.f32.mrb[0].mxu0
        %v825 = vadd.f32 %v535, %v824
        %v826 = vpop.f32.mrb[0].mxu0
        %v827 = vadd.f32 %v540, %v826
        %v828 = vpop.f32.mrb[0].mxu0
        %v829 = vadd.f32 %v540, %v828
        %830 = vmatprep.mubr.bf16.mxu0 0
        %831 = vmatmul.mubr.bf16.gmra.mrb[0].mxu0 %v712
        %v832 = vpop.f32.mrb[0].mxu0
        %v833 = vadd.f32 %v545, %v832
        %v834 = vpop.f32.mrb[0].mxu0
        %v835 = vadd.f32 %v545, %v834
        %v836 = vpop.f32.mrb[0].mxu0
        %v837 = vadd.f32 %v550, %v836
        %v838 = vpop.f32.mrb[0].mxu0
        %v839 = vadd.f32 %v550, %v838
        %840 = vmatprep.mubr.bf16.mxu0 0
        %841 = vmatmul.mubr.bf16.gmra.mrb[0].mxu0 %v713
        %v842 = vpop.f32.mrb[0].mxu0
        %v843 = vadd.f32 %v555, %v842
        %v844 = vpop.f32.mrb[0].mxu0
        %v845 = vadd.f32 %v555, %v844
        %v846 = vpop.f32.mrb[0].mxu0
        %v847 = vadd.f32 %v560, %v846
        %v848 = vpop.f32.mrb[0].mxu0
        %v849 = vadd.f32 %v560, %v848
        %850 = vmatprep.mubr.bf16.mxu0 0
        %851 = vmatmul.mubr.bf16.gmra.mrb[0].mxu0 %v714
        %v852 = vpop.f32.mrb[0].mxu0
        %v853 = vadd.f32 %v565, %v852
        %v854 = vpop.f32.mrb[0].mxu0
        %v855 = vadd.f32 %v565, %v854
        %v856 = vpop.f32.mrb[0].mxu0
        %v857 = vadd.f32 %v570, %v856
        %v858 = vpop.f32.mrb[0].mxu0
        %v859 = vadd.f32 %v570, %v858
        %860 = vmatprep.mubr.bf16.mxu0 0
        %861 = vmatmul.mubr.bf16.gmra.mrb[0].mxu0 %v715
        %v862 = vpop.f32.mrb[0].mxu0
        %v863 = vadd.f32 %v575, %v862
        %v864 = vpop.f32.mrb[0].mxu0
        %v865 = vadd.f32 %v575, %v864
        %v866 = vpop.f32.mrb[0].mxu0
        %v867 = vadd.f32 %v580, %v866
        %v868 = vpop.f32.mrb[0].mxu0
        %v869 = vadd.f32 %v580, %v868
        %870 = vmatprep.mubr.bf16.mxu0 0
        %871 = vmatmul.mubr.bf16.gmra.mrb[0].mxu0 %v716
        %v872 = vpop.f32.mrb[0].mxu0
        %v873 = vadd.f32 %v585, %v872
        %v874 = vpop.f32.mrb[0].mxu0
        %v875 = vadd.f32 %v585, %v874
        %v876 = vpop.f32.mrb[0].mxu0
        %v877 = vadd.f32 %v590, %v876
        %v878 = vpop.f32.mrb[0].mxu0
        %v879 = vadd.f32 %v590, %v878
        %880 = vmatprep.mubr.bf16.mxu0 0
        %881 = vmatmul.mubr.bf16.gmra.mrb[0].mxu0 %v717
        %v882 = vpop.f32.mrb[0].mxu0
        %v883 = vadd.f32 %v595, %v882
        %v884 = vpop.f32.mrb[0].mxu0
        %v885 = vadd.f32 %v595, %v884
        %v886 = vpop.f32.mrb[0].mxu0
        %v887 = vadd.f32 %v600, %v886
        %v888 = vpop.f32.mrb[0].mxu0
        %v889 = vadd.f32 %v600, %v888
        %890 = vmatprep.mubr.bf16.mxu0 0
        %891 = vmatmul.mubr.bf16.gmra.mrb[0].mxu0 %v718
        %v892 = vpop.f32.mrb[0].mxu0
        %v893 = vadd.f32 %v605, %v892
        %v894 = vpop.f32.mrb[0].mxu0
        %v895 = vadd.f32 %v605, %v894
        %v896 = vpop.f32.mrb[0].mxu0
        %v897 = vadd.f32 %v610, %v896
        %v898 = vpop.f32.mrb[0].mxu0
        %v899 = vadd.f32 %v610, %v898
        %900 = vmatprep.mubr.bf16.mxu0 0
        %901 = vmatmul.mubr.bf16.gmra.mrb[0].mxu0 %v719
        %v902 = vpop.f32.mrb[0].mxu0
        %v903 = vadd.f32 %v615, %v902
        %v904 = vpop.f32.mrb[0].mxu0
        %v905 = vadd.f32 %v615, %v904
        %v906 = vpop.f32.mrb[0].mxu0
        %v907 = vadd.f32 %v620, %v906
        %v908 = vpop.f32.mrb[0].mxu0
        %v909 = vadd.f32 %v620, %v908
        %910 = vmatprep.mubr.bf16.mxu0 0
        %911 = vmatmul.mubr.bf16.gmra.mrb[0].mxu0 %v720
        %v912 = vpop.f32.mrb[0].mxu0
        %v913 = vadd.f32 %v625, %v912
        %v914 = vpop.f32.mrb[0].mxu0
        %v915 = vadd.f32 %v625, %v914
        %v916 = vpop.f32.mrb[0].mxu0
        %v917 = vadd.f32 %v630, %v916
        %v918 = vpop.f32.mrb[0].mxu0
        %v919 = vadd.f32 %v630, %v918
        %920 = vmatprep.mubr.bf16.mxu0 0
        %921 = vmatmul.mubr.bf16.gmra.mrb[0].mxu0 %v721
        %v922 = vpop.f32.mrb[0].mxu0
        %v923 = vadd.f32 %v635, %v922
        %v924 = vpop.f32.mrb[0].mxu0
        %v925 = vadd.f32 %v635, %v924
        %v926 = vpop.f32.mrb[0].mxu0
        %v927 = vadd.f32 %v640, %v926
        %v928 = vpop.f32.mrb[0].mxu0
        %v929 = vadd.f32 %v640, %v928
        %930 = vdwg.mxu0
        %v931 = vpack.c.bf16 %v857, %v853
        %v932 = vpack.c.bf16 %v859, %v855
        %v933 = vpack.c.bf16 %v867, %v863
        %v934 = vpack.c.bf16 %v869, %v865
        %v935 = vpack.c.bf16 %v877, %v873
        %v936 = vpack.c.bf16 %v879, %v875
        %v937 = vpack.c.bf16 %v887, %v883
        %v938 = vpack.c.bf16 %v889, %v885
        %v939 = vpack.c.bf16 %v897, %v893
        %v940 = vpack.c.bf16 %v899, %v895
        %v941 = vpack.c.bf16 %v907, %v903
        %v942 = vpack.c.bf16 %v909, %v905
        %v943 = vpack.c.bf16 %v917, %v913
        %v944 = vpack.c.bf16 %v919, %v915
        %v945 = vpack.c.bf16 %v927, %v923
        %v946 = vpack.c.bf16 %v929, %v925
        %v947 = vld [vmem:[#allocation5] sm:$0xff]
        %v948 = vld [vmem:[#allocation5 + $0x8] sm:$0xff]
        %v949 = vld [vmem:[#allocation5 + $0x10] sm:$0xff]
        %v950 = vld [vmem:[#allocation5 + $0x18] sm:$0xff]
        %v951 = vld [vmem:[#allocation5 + $0x20] sm:$0xff]
        %v952 = vld [vmem:[#allocation5 + $0x28] sm:$0xff]
        %v953 = vld [vmem:[#allocation5 + $0x30] sm:$0xff]
        %v954 = vld [vmem:[#allocation5 + $0x38] sm:$0xff]
        %v955 = vld [vmem:[#allocation5 + $0x40] sm:$0xff]
        %v956 = vld [vmem:[#allocation5 + $0x48] sm:$0xff]
        %v957 = vld [vmem:[#allocation5 + $0x50] sm:$0xff]
        %v958 = vld [vmem:[#allocation5 + $0x58] sm:$0xff]
        %v959 = vld [vmem:[#allocation5 + $0x60] sm:$0xff]
        %v960 = vld [vmem:[#allocation5 + $0x68] sm:$0xff]
        %v961 = vld [vmem:[#allocation5 + $0x70] sm:$0xff]
        %v962 = vld [vmem:[#allocation5 + $0x78] sm:$0xff]
        %v963 = vld [vmem:[#allocation5 + $0x80] sm:$0xff]
        %v964 = vld [vmem:[#allocation5 + $0x88] sm:$0xff]
        %v965 = vld [vmem:[#allocation5 + $0x90] sm:$0xff]
        %v966 = vld [vmem:[#allocation5 + $0x98] sm:$0xff]
        %v967 = vld [vmem:[#allocation5 + $0xa0] sm:$0xff]
        %v968 = vld [vmem:[#allocation5 + $0xa8] sm:$0xff]
        %v969 = vld [vmem:[#allocation5 + $0xb0] sm:$0xff]
        %v970 = vld [vmem:[#allocation5 + $0xb8] sm:$0xff]
        %v971 = vld [vmem:[#allocation5 + $0xc0] sm:$0xff]
        %v972 = vld [vmem:[#allocation5 + $0xc8] sm:$0xff]
        %v973 = vld [vmem:[#allocation5 + $0xd0] sm:$0xff]
        %v974 = vld [vmem:[#allocation5 + $0xd8] sm:$0xff]
        %v975 = vld [vmem:[#allocation5 + $0xe0] sm:$0xff]
        %v976 = vld [vmem:[#allocation5 + $0xe8] sm:$0xff]
        %v977 = vld [vmem:[#allocation5 + $0xf0] sm:$0xff]
        %v978 = vld [vmem:[#allocation5 + $0xf8] sm:$0xff]
        %v979 = vld [vmem:[#allocation5 + $0x100] sm:$0xff]
        %v980 = vld [vmem:[#allocation5 + $0x108] sm:$0xff]
        %v981 = vld [vmem:[#allocation5 + $0x110] sm:$0xff]
        %v982 = vld [vmem:[#allocation5 + $0x118] sm:$0xff]
        %v983 = vld [vmem:[#allocation5 + $0x120] sm:$0xff]
        %v984 = vld [vmem:[#allocation5 + $0x128] sm:$0xff]
        %v985 = vld [vmem:[#allocation5 + $0x130] sm:$0xff]
        %v986 = vld [vmem:[#allocation5 + $0x138] sm:$0xff]
        %v987 = vld [vmem:[#allocation5 + $0x140] sm:$0xff]
        %v988 = vld [vmem:[#allocation5 + $0x148] sm:$0xff]
        %v989 = vld [vmem:[#allocation5 + $0x150] sm:$0xff]
        %v990 = vld [vmem:[#allocation5 + $0x158] sm:$0xff]
        %v991 = vld [vmem:[#allocation5 + $0x160] sm:$0xff]
        %v992 = vld [vmem:[#allocation5 + $0x168] sm:$0xff]
        %v993 = vld [vmem:[#allocation5 + $0x170] sm:$0xff]
        %v994 = vld [vmem:[#allocation5 + $0x178] sm:$0xff]
        %v995 = vld [vmem:[#allocation5 + $0x180] sm:$0xff]
        %v996 = vld [vmem:[#allocation5 + $0x188] sm:$0xff]
        %v997 = vld [vmem:[#allocation5 + $0x190] sm:$0xff]
        %v998 = vld [vmem:[#allocation5 + $0x198] sm:$0xff]
        %v999 = vld [vmem:[#allocation5 + $0x1a0] sm:$0xff]
        %v1000 = vld [vmem:[#allocation5 + $0x1a8] sm:$0xff]
        %v1001 = vld [vmem:[#allocation5 + $0x1b0] sm:$0xff]
        %v1002 = vld [vmem:[#allocation5 + $0x1b8] sm:$0xff]
        %v1003 = vld [vmem:[#allocation5 + $0x1c0] sm:$0xff]
        %v1004 = vld [vmem:[#allocation5 + $0x1c8] sm:$0xff]
        %v1005 = vld [vmem:[#allocation5 + $0x1d0] sm:$0xff]
        %v1006 = vld [vmem:[#allocation5 + $0x1d8] sm:$0xff]
        %v1007 = vld [vmem:[#allocation5 + $0x1e0] sm:$0xff]
        %v1008 = vld [vmem:[#allocation5 + $0x1e8] sm:$0xff]
        %v1009 = vld [vmem:[#allocation5 + $0x1f0] sm:$0xff]
        %v1010 = vld [vmem:[#allocation5 + $0x1f8] sm:$0xff]
        %v1075 = vunpack.c.l.b16 %v947
        %v1076 = vunpack.c.h.b16 %v947
        %v1077 = vunpack.c.l.b16 %v948
        %v1078 = vunpack.c.h.b16 %v948
        %v1079 = vunpack.c.l.b16 %v949
        %v1080 = vunpack.c.h.b16 %v949
        %v1081 = vunpack.c.l.b16 %v950
        %v1082 = vunpack.c.h.b16 %v950
        %v1083 = vunpack.c.l.b16 %v951
        %v1084 = vunpack.c.h.b16 %v951
        %v1085 = vunpack.c.l.b16 %v952
        %v1086 = vunpack.c.h.b16 %v952
        %v1087 = vunpack.c.l.b16 %v953
        %v1088 = vunpack.c.h.b16 %v953
        %v1089 = vunpack.c.l.b16 %v954
        %v1090 = vunpack.c.h.b16 %v954
        %v1091 = vunpack.c.l.b16 %v955
        %v1092 = vunpack.c.h.b16 %v955
        %v1093 = vunpack.c.l.b16 %v956
        %v1094 = vunpack.c.h.b16 %v956
        %v1095 = vunpack.c.l.b16 %v957
        %v1096 = vunpack.c.h.b16 %v957
        %v1097 = vunpack.c.l.b16 %v958
        %v1098 = vunpack.c.h.b16 %v958
        %v1099 = vunpack.c.l.b16 %v959
        %v1100 = vunpack.c.h.b16 %v959
        %v1101 = vunpack.c.l.b16 %v960
        %v1102 = vunpack.c.h.b16 %v960
        %v1103 = vunpack.c.l.b16 %v961
        %v1104 = vunpack.c.h.b16 %v961
        %v1105 = vunpack.c.l.b16 %v962
        %v1106 = vunpack.c.h.b16 %v962
        %v1107 = vunpack.c.l.b16 %v963
        %v1108 = vunpack.c.h.b16 %v963
        %v1109 = vunpack.c.l.b16 %v964
        %v1110 = vunpack.c.h.b16 %v964
        %v1111 = vunpack.c.l.b16 %v965
        %v1112 = vunpack.c.h.b16 %v965
        %v1113 = vunpack.c.l.b16 %v966
        %v1114 = vunpack.c.h.b16 %v966
        %v1115 = vunpack.c.l.b16 %v967
        %v1116 = vunpack.c.h.b16 %v967
        %v1117 = vunpack.c.l.b16 %v968
        %v1118 = vunpack.c.h.b16 %v968
        %v1119 = vunpack.c.l.b16 %v969
        %v1120 = vunpack.c.h.b16 %v969
        %v1121 = vunpack.c.l.b16 %v970
        %v1122 = vunpack.c.h.b16 %v970
        %v1123 = vunpack.c.l.b16 %v971
        %v1124 = vunpack.c.h.b16 %v971
        %v1125 = vunpack.c.l.b16 %v972
        %v1126 = vunpack.c.h.b16 %v972
        %v1127 = vunpack.c.l.b16 %v973
        %v1128 = vunpack.c.h.b16 %v973
        %v1129 = vunpack.c.l.b16 %v974
        %v1130 = vunpack.c.h.b16 %v974
        %v1131 = vunpack.c.l.b16 %v975
        %v1132 = vunpack.c.h.b16 %v975
        %v1133 = vunpack.c.l.b16 %v976
        %v1134 = vunpack.c.h.b16 %v976
        %v1135 = vunpack.c.l.b16 %v977
        %v1136 = vunpack.c.h.b16 %v977
        %v1137 = vunpack.c.l.b16 %v978
        %v1138 = vunpack.c.h.b16 %v978
        %v1139 = vunpack.c.l.b16 %v979
        %v1140 = vunpack.c.h.b16 %v979
        %v1141 = vunpack.c.l.b16 %v980
        %v1142 = vunpack.c.h.b16 %v980
        %v1143 = vunpack.c.l.b16 %v981
        %v1144 = vunpack.c.h.b16 %v981
        %v1145 = vunpack.c.l.b16 %v982
        %v1146 = vunpack.c.h.b16 %v982
        %v1147 = vunpack.c.l.b16 %v983
        %v1148 = vunpack.c.h.b16 %v983
        %v1149 = vunpack.c.l.b16 %v984
        %v1150 = vunpack.c.h.b16 %v984
        %v1151 = vunpack.c.l.b16 %v985
        %v1152 = vunpack.c.h.b16 %v985
        %v1153 = vunpack.c.l.b16 %v986
        %v1154 = vunpack.c.h.b16 %v986
        %v1155 = vunpack.c.l.b16 %v987
        %v1156 = vunpack.c.h.b16 %v987
        %v1157 = vunpack.c.l.b16 %v988
        %v1158 = vunpack.c.h.b16 %v988
        %v1159 = vunpack.c.l.b16 %v989
        %v1160 = vunpack.c.h.b16 %v989
        %v1161 = vunpack.c.l.b16 %v990
        %v1162 = vunpack.c.h.b16 %v990
        %v1163 = vunpack.c.l.b16 %v991
        %v1164 = vunpack.c.h.b16 %v991
        %v1165 = vunpack.c.l.b16 %v992
        %v1166 = vunpack.c.h.b16 %v992
        %v1167 = vunpack.c.l.b16 %v993
        %v1168 = vunpack.c.h.b16 %v993
        %v1169 = vunpack.c.l.b16 %v994
        %v1170 = vunpack.c.h.b16 %v994
        %v1171 = vunpack.c.l.b16 %v995
        %v1172 = vunpack.c.h.b16 %v995
        %v1173 = vunpack.c.l.b16 %v996
        %v1174 = vunpack.c.h.b16 %v996
        %v1175 = vunpack.c.l.b16 %v997
        %v1176 = vunpack.c.h.b16 %v997
        %v1177 = vunpack.c.l.b16 %v998
        %v1178 = vunpack.c.h.b16 %v998
        %v1179 = vunpack.c.l.b16 %v999
        %v1180 = vunpack.c.h.b16 %v999
        %v1181 = vunpack.c.l.b16 %v1000
        %v1182 = vunpack.c.h.b16 %v1000
        %v1183 = vunpack.c.l.b16 %v1001
        %v1184 = vunpack.c.h.b16 %v1001
        %v1185 = vunpack.c.l.b16 %v1002
        %v1186 = vunpack.c.h.b16 %v1002
        %v1187 = vunpack.c.l.b16 %v1003
        %v1188 = vunpack.c.h.b16 %v1003
        %v1189 = vunpack.c.l.b16 %v1004
        %v1190 = vunpack.c.h.b16 %v1004
        %v1191 = vunpack.c.l.b16 %v1005
        %v1192 = vunpack.c.h.b16 %v1005
        %v1193 = vunpack.c.l.b16 %v1006
        %v1194 = vunpack.c.h.b16 %v1006
        %v1195 = vunpack.c.l.b16 %v1007
        %v1196 = vunpack.c.h.b16 %v1007
        %v1197 = vunpack.c.l.b16 %v1008
        %v1198 = vunpack.c.h.b16 %v1008
        %v1199 = vunpack.c.l.b16 %v1009
        %v1200 = vunpack.c.h.b16 %v1009
        %v1201 = vunpack.c.l.b16 %v1010
        %v1202 = vunpack.c.h.b16 %v1010
        %v1203 = vpack.c.b16 %v1079, %v1075
        %v1204 = vpack.c.b16 %v1080, %v1076
        %v1205 = vpack.c.b16 %v1081, %v1077
        %v1206 = vpack.c.b16 %v1082, %v1078
        %v1207 = vpack.c.b16 %v1087, %v1083
        %v1208 = vpack.c.b16 %v1088, %v1084
        %v1209 = vpack.c.b16 %v1089, %v1085
        %v1210 = vpack.c.b16 %v1090, %v1086
        %v1211 = vpack.c.b16 %v1095, %v1091
        %v1212 = vpack.c.b16 %v1096, %v1092
        %v1213 = vpack.c.b16 %v1097, %v1093
        %v1214 = vpack.c.b16 %v1098, %v1094
        %v1215 = vpack.c.b16 %v1103, %v1099
        %v1216 = vpack.c.b16 %v1104, %v1100
        %v1217 = vpack.c.b16 %v1105, %v1101
        %v1218 = vpack.c.b16 %v1106, %v1102
        %v1219 = vpack.c.b16 %v1111, %v1107
        %v1220 = vpack.c.b16 %v1112, %v1108
        %v1221 = vpack.c.b16 %v1113, %v1109
        %v1222 = vpack.c.b16 %v1114, %v1110
        %v1223 = vpack.c.b16 %v1119, %v1115
        %v1224 = vpack.c.b16 %v1120, %v1116
        %v1225 = vpack.c.b16 %v1121, %v1117
        %v1226 = vpack.c.b16 %v1122, %v1118
        %v1227 = vpack.c.b16 %v1127, %v1123
        %v1228 = vpack.c.b16 %v1128, %v1124
        %v1229 = vpack.c.b16 %v1129, %v1125
        %v1230 = vpack.c.b16 %v1130, %v1126
        %v1231 = vpack.c.b16 %v1135, %v1131
        %v1232 = vpack.c.b16 %v1136, %v1132
        %v1233 = vpack.c.b16 %v1137, %v1133
        %v1234 = vpack.c.b16 %v1138, %v1134
        %v1235 = vpack.c.b16 %v1143, %v1139
        %v1236 = vpack.c.b16 %v1144, %v1140
        %v1237 = vpack.c.b16 %v1145, %v1141
        %v1238 = vpack.c.b16 %v1146, %v1142
        %v1239 = vpack.c.b16 %v1151, %v1147
        %v1240 = vpack.c.b16 %v1152, %v1148
        %v1241 = vpack.c.b16 %v1153, %v1149
        %v1242 = vpack.c.b16 %v1154, %v1150
        %v1243 = vpack.c.b16 %v1159, %v1155
        %v1244 = vpack.c.b16 %v1160, %v1156
        %v1245 = vpack.c.b16 %v1161, %v1157
        %v1246 = vpack.c.b16 %v1162, %v1158
        %v1247 = vpack.c.b16 %v1167, %v1163
        %v1248 = vpack.c.b16 %v1168, %v1164
        %v1249 = vpack.c.b16 %v1169, %v1165
        %v1250 = vpack.c.b16 %v1170, %v1166
        %v1251 = vpack.c.b16 %v1175, %v1171
        %v1252 = vpack.c.b16 %v1176, %v1172
        %v1253 = vpack.c.b16 %v1177, %v1173
        %v1254 = vpack.c.b16 %v1178, %v1174
        %v1255 = vpack.c.b16 %v1183, %v1179
        %v1256 = vpack.c.b16 %v1184, %v1180
        %v1257 = vpack.c.b16 %v1185, %v1181
        %v1258 = vpack.c.b16 %v1186, %v1182
        %v1259 = vpack.c.b16 %v1191, %v1187
        %v1260 = vpack.c.b16 %v1192, %v1188
        %v1261 = vpack.c.b16 %v1193, %v1189
        %v1262 = vpack.c.b16 %v1194, %v1190
        %v1263 = vpack.c.b16 %v1199, %v1195
        %v1264 = vpack.c.b16 %v1200, %v1196
        %v1265 = vpack.c.b16 %v1201, %v1197
        %v1266 = vpack.c.b16 %v1202, %v1198
        %1331 = vmatprep.subr.bf16.mxu0 %v1204
        %1332 = vmatpush1.bf16.msra.mxu0 %v1203
        %1333 = vmatprep.subr.bf16.mxu0 %v1208
        %1334 = vmatpush1.bf16.msra.mxu0 %v1207
        %1335 = vmatprep.subr.bf16.mxu0 %v1212
        %1336 = vmatpush1.bf16.msra.mxu0 %v1211
        %1337 = vmatprep.subr.bf16.mxu0 %v1216
        %1338 = vmatpush1.bf16.msra.mxu0 %v1215
        %1339 = vmatprep.subr.bf16.mxu0 %v1220
        %1340 = vmatpush1.bf16.msra.mxu0 %v1219
        %1341 = vmatprep.subr.bf16.mxu0 %v1224
        %1342 = vmatpush1.bf16.msra.mxu0 %v1223
        %1343 = vmatprep.subr.bf16.mxu0 %v1228
        %1344 = vmatpush1.bf16.msra.mxu0 %v1227
        %1345 = vmatprep.subr.bf16.mxu0 %v1232
        %1346 = vmatpush1.bf16.msra.mxu0 %v1231
        %1347 = vmatprep.subr.bf16.mxu0 %v1236
        %1348 = vmatpush1.bf16.msra.mxu0 %v1235
        %1349 = vmatprep.subr.bf16.mxu0 %v1240
        %1350 = vmatpush1.bf16.msra.mxu0 %v1239
        %1351 = vmatprep.subr.bf16.mxu0 %v1244
        %1352 = vmatpush1.bf16.msra.mxu0 %v1243
        %1353 = vmatprep.subr.bf16.mxu0 %v1248
        %1354 = vmatpush1.bf16.msra.mxu0 %v1247
        %1355 = vmatprep.subr.bf16.mxu0 %v1252
        %1356 = vmatpush1.bf16.msra.mxu0 %v1251
        %1357 = vmatprep.subr.bf16.mxu0 %v1256
        %1358 = vmatpush1.bf16.msra.mxu0 %v1255
        %1359 = vmatprep.subr.bf16.mxu0 %v1260
        %1360 = vmatpush1.bf16.msra.mxu0 %v1259
        %1361 = vmatprep.subr.bf16.mxu0 %v1264
        %1362 = vmatpush1.bf16.msra.mxu0 %v1263
        %1363 = vmatprep.mubr.bf16.mxu0 %v932
        %1364 = vmatmul.mubr.bf16.gmra.mrb[0].mxu0 %v931
        %v1365 = vpop.f32.mrb[0].mxu0
        %v1366 = vadd.f32 0.0, %v1365
        %v1367 = vpop.f32.mrb[0].mxu0
        %v1368 = vadd.f32 0.0, %v1367
        %v1369 = vpop.f32.mrb[0].mxu0
        %v1370 = vadd.f32 0.0, %v1369
        %v1371 = vpop.f32.mrb[0].mxu0
        %v1372 = vadd.f32 0.0, %v1371
        %1373 = vmatprep.mubr.bf16.mxu0 %v934
        %1374 = vmatmul.mubr.bf16.gmra.mrb[0].mxu0 %v933
        %v1375 = vpop.f32.mrb[0].mxu0
        %v1376 = vadd.f32 0.0, %v1375
        %v1377 = vpop.f32.mrb[0].mxu0
        %v1378 = vadd.f32 0.0, %v1377
        %v1379 = vpop.f32.mrb[0].mxu0
        %v1380 = vadd.f32 0.0, %v1379
        %v1381 = vpop.f32.mrb[0].mxu0
        %v1382 = vadd.f32 0.0, %v1381
        %1383 = vmatprep.mubr.bf16.mxu0 %v936
        %1384 = vmatmul.mubr.bf16.gmra.mrb[0].mxu0 %v935
        %v1385 = vpop.f32.mrb[0].mxu0
        %v1386 = vadd.f32 0.0, %v1385
        %v1387 = vpop.f32.mrb[0].mxu0
        %v1388 = vadd.f32 0.0, %v1387
        %v1389 = vpop.f32.mrb[0].mxu0
        %v1390 = vadd.f32 0.0, %v1389
        %v1391 = vpop.f32.mrb[0].mxu0
        %v1392 = vadd.f32 0.0, %v1391
        %1393 = vmatprep.mubr.bf16.mxu0 %v938
        %1394 = vmatmul.mubr.bf16.gmra.mrb[0].mxu0 %v937
        %v1395 = vpop.f32.mrb[0].mxu0
        %v1396 = vadd.f32 0.0, %v1395
        %v1397 = vpop.f32.mrb[0].mxu0
        %v1398 = vadd.f32 0.0, %v1397
        %v1399 = vpop.f32.mrb[0].mxu0
        %v1400 = vadd.f32 0.0, %v1399
        %v1401 = vpop.f32.mrb[0].mxu0
        %v1402 = vadd.f32 0.0, %v1401
        %1403 = vmatprep.mubr.bf16.mxu0 %v940
        %1404 = vmatmul.mubr.bf16.gmra.mrb[0].mxu0 %v939
        %v1405 = vpop.f32.mrb[0].mxu0
        %v1406 = vadd.f32 0.0, %v1405
        %v1407 = vpop.f32.mrb[0].mxu0
        %v1408 = vadd.f32 0.0, %v1407
        %v1409 = vpop.f32.mrb[0].mxu0
        %v1410 = vadd.f32 0.0, %v1409
        %v1411 = vpop.f32.mrb[0].mxu0
        %v1412 = vadd.f32 0.0, %v1411
        %1413 = vmatprep.mubr.bf16.mxu0 %v942
        %1414 = vmatmul.mubr.bf16.gmra.mrb[0].mxu0 %v941
        %v1415 = vpop.f32.mrb[0].mxu0
        %v1416 = vadd.f32 0.0, %v1415
        %v1417 = vpop.f32.mrb[0].mxu0
        %v1418 = vadd.f32 0.0, %v1417
        %v1419 = vpop.f32.mrb[0].mxu0
        %v1420 = vadd.f32 0.0, %v1419
        %v1421 = vpop.f32.mrb[0].mxu0
        %v1422 = vadd.f32 0.0, %v1421
        %1423 = vmatprep.mubr.bf16.mxu0 %v944
        %1424 = vmatmul.mubr.bf16.gmra.mrb[0].mxu0 %v943
        %v1425 = vpop.f32.mrb[0].mxu0
        %v1426 = vadd.f32 0.0, %v1425
        %v1427 = vpop.f32.mrb[0].mxu0
        %v1428 = vadd.f32 0.0, %v1427
        %v1429 = vpop.f32.mrb[0].mxu0
        %v1430 = vadd.f32 0.0, %v1429
        %v1431 = vpop.f32.mrb[0].mxu0
        %v1432 = vadd.f32 0.0, %v1431
        %1433 = vmatprep.mubr.bf16.mxu0 %v946
        %1434 = vmatmul.mubr.bf16.gmra.mrb[0].mxu0 %v945
        %v1435 = vpop.f32.mrb[0].mxu0
        %v1436 = vadd.f32 0.0, %v1435
        %v1437 = vpop.f32.mrb[0].mxu0
        %v1438 = vadd.f32 0.0, %v1437
        %v1439 = vpop.f32.mrb[0].mxu0
        %v1440 = vadd.f32 0.0, %v1439
        %v1441 = vpop.f32.mrb[0].mxu0
        %v1442 = vadd.f32 0.0, %v1441
        %1443 = vdwg.mxu0
        %1444 = vmatprep.subr.bf16.mxu0 %v1206
        %1445 = vmatpush1.bf16.msra.mxu0 %v1205
        %1446 = vmatprep.subr.bf16.mxu0 %v1210
        %1447 = vmatpush1.bf16.msra.mxu0 %v1209
        %1448 = vmatprep.subr.bf16.mxu0 %v1214
        %1449 = vmatpush1.bf16.msra.mxu0 %v1213
        %1450 = vmatprep.subr.bf16.mxu0 %v1218
        %1451 = vmatpush1.bf16.msra.mxu0 %v1217
        %1452 = vmatprep.subr.bf16.mxu0 %v1222
        %1453 = vmatpush1.bf16.msra.mxu0 %v1221
        %1454 = vmatprep.subr.bf16.mxu0 %v1226
        %1455 = vmatpush1.bf16.msra.mxu0 %v1225
        %1456 = vmatprep.subr.bf16.mxu0 %v1230
        %1457 = vmatpush1.bf16.msra.mxu0 %v1229
        %1458 = vmatprep.subr.bf16.mxu0 %v1234
        %1459 = vmatpush1.bf16.msra.mxu0 %v1233
        %1460 = vmatprep.subr.bf16.mxu0 %v1238
        %1461 = vmatpush1.bf16.msra.mxu0 %v1237
        %1462 = vmatprep.subr.bf16.mxu0 %v1242
        %1463 = vmatpush1.bf16.msra.mxu0 %v1241
        %1464 = vmatprep.subr.bf16.mxu0 %v1246
        %1465 = vmatpush1.bf16.msra.mxu0 %v1245
        %1466 = vmatprep.subr.bf16.mxu0 %v1250
        %1467 = vmatpush1.bf16.msra.mxu0 %v1249
        %1468 = vmatprep.subr.bf16.mxu0 %v1254
        %1469 = vmatpush1.bf16.msra.mxu0 %v1253
        %1470 = vmatprep.subr.bf16.mxu0 %v1258
        %1471 = vmatpush1.bf16.msra.mxu0 %v1257
        %1472 = vmatprep.subr.bf16.mxu0 %v1262
        %1473 = vmatpush1.bf16.msra.mxu0 %v1261
        %1474 = vmatprep.subr.bf16.mxu0 %v1266
        %1475 = vmatpush1.bf16.msra.mxu0 %v1265
        %1476 = vmatprep.mubr.bf16.mxu0 %v932
        %1477 = vmatmul.mubr.bf16.gmra.mrb[0].mxu0 %v931
        %v1478 = vpop.f32.mrb[0].mxu0
        %v1479 = vadd.f32 0.0, %v1478
        %v1480 = vpop.f32.mrb[0].mxu0
        %v1481 = vadd.f32 0.0, %v1480
        %v1482 = vpop.f32.mrb[0].mxu0
        %v1483 = vadd.f32 0.0, %v1482
        %v1484 = vpop.f32.mrb[0].mxu0
        %v1485 = vadd.f32 0.0, %v1484
        %1486 = vmatprep.mubr.bf16.mxu0 %v934
        %1487 = vmatmul.mubr.bf16.gmra.mrb[0].mxu0 %v933
        %v1488 = vpop.f32.mrb[0].mxu0
        %v1489 = vadd.f32 0.0, %v1488
        %v1490 = vpop.f32.mrb[0].mxu0
        %v1491 = vadd.f32 0.0, %v1490
        %v1492 = vpop.f32.mrb[0].mxu0
        %v1493 = vadd.f32 0.0, %v1492
        %v1494 = vpop.f32.mrb[0].mxu0
        %v1495 = vadd.f32 0.0, %v1494
        %1496 = vmatprep.mubr.bf16.mxu0 %v936
        %1497 = vmatmul.mubr.bf16.gmra.mrb[0].mxu0 %v935
        %v1498 = vpop.f32.mrb[0].mxu0
        %v1499 = vadd.f32 0.0, %v1498
        %v1500 = vpop.f32.mrb[0].mxu0
        %v1501 = vadd.f32 0.0, %v1500
        %v1502 = vpop.f32.mrb[0].mxu0
        %v1503 = vadd.f32 0.0, %v1502
        %v1504 = vpop.f32.mrb[0].mxu0
        %v1505 = vadd.f32 0.0, %v1504
        %1506 = vmatprep.mubr.bf16.mxu0 %v938
        %1507 = vmatmul.mubr.bf16.gmra.mrb[0].mxu0 %v937
        %v1508 = vpop.f32.mrb[0].mxu0
        %v1509 = vadd.f32 0.0, %v1508
        %v1510 = vpop.f32.mrb[0].mxu0
        %v1511 = vadd.f32 0.0, %v1510
        %v1512 = vpop.f32.mrb[0].mxu0
        %v1513 = vadd.f32 0.0, %v1512
        %v1514 = vpop.f32.mrb[0].mxu0
        %v1515 = vadd.f32 0.0, %v1514
        %1516 = vmatprep.mubr.bf16.mxu0 %v940
        %1517 = vmatmul.mubr.bf16.gmra.mrb[0].mxu0 %v939
        %v1518 = vpop.f32.mrb[0].mxu0
        %v1519 = vadd.f32 0.0, %v1518
        %v1520 = vpop.f32.mrb[0].mxu0
        %v1521 = vadd.f32 0.0, %v1520
        %v1522 = vpop.f32.mrb[0].mxu0
        %v1523 = vadd.f32 0.0, %v1522
        %v1524 = vpop.f32.mrb[0].mxu0
        %v1525 = vadd.f32 0.0, %v1524
        %1526 = vmatprep.mubr.bf16.mxu0 %v942
        %1527 = vmatmul.mubr.bf16.gmra.mrb[0].mxu0 %v941
        %v1528 = vpop.f32.mrb[0].mxu0
        %v1529 = vadd.f32 0.0, %v1528
        %v1530 = vpop.f32.mrb[0].mxu0
        %v1531 = vadd.f32 0.0, %v1530
        %v1532 = vpop.f32.mrb[0].mxu0
        %v1533 = vadd.f32 0.0, %v1532
        %v1534 = vpop.f32.mrb[0].mxu0
        %v1535 = vadd.f32 0.0, %v1534
        %1536 = vmatprep.mubr.bf16.mxu0 %v944
        %1537 = vmatmul.mubr.bf16.gmra.mrb[0].mxu0 %v943
        %v1538 = vpop.f32.mrb[0].mxu0
        %v1539 = vadd.f32 0.0, %v1538
        %v1540 = vpop.f32.mrb[0].mxu0
        %v1541 = vadd.f32 0.0, %v1540
        %v1542 = vpop.f32.mrb[0].mxu0
        %v1543 = vadd.f32 0.0, %v1542
        %v1544 = vpop.f32.mrb[0].mxu0
        %v1545 = vadd.f32 0.0, %v1544
        %1546 = vmatprep.mubr.bf16.mxu0 %v946
        %1547 = vmatmul.mubr.bf16.gmra.mrb[0].mxu0 %v945
        %v1548 = vpop.f32.mrb[0].mxu0
        %v1549 = vadd.f32 0.0, %v1548
        %v1550 = vpop.f32.mrb[0].mxu0
        %v1551 = vadd.f32 0.0, %v1550
        %v1552 = vpop.f32.mrb[0].mxu0
        %v1553 = vadd.f32 0.0, %v1552
        %v1554 = vpop.f32.mrb[0].mxu0
        %v1555 = vadd.f32 0.0, %v1554
        %1556 = vdwg.mxu0
        %v1557 = vmul.f32 %v773, %v1366
        %v1558 = vmul.f32 %v775, %v1368
        %v1559 = vmul.f32 %v777, %v1370
        %v1560 = vmul.f32 %v779, %v1372
        %v1561 = vmul.f32 %v783, %v1376
        %v1562 = vmul.f32 %v785, %v1378
        %v1563 = vmul.f32 %v787, %v1380
        %v1564 = vmul.f32 %v789, %v1382
        %v1565 = vmul.f32 %v793, %v1386
        %v1566 = vmul.f32 %v795, %v1388
        %v1567 = vmul.f32 %v797, %v1390
        %v1568 = vmul.f32 %v799, %v1392
        %v1569 = vmul.f32 %v803, %v1396
        %v1570 = vmul.f32 %v805, %v1398
        %v1571 = vmul.f32 %v807, %v1400
        %v1572 = vmul.f32 %v809, %v1402
        %v1573 = vmul.f32 %v813, %v1406
        %v1574 = vmul.f32 %v815, %v1408
        %v1575 = vmul.f32 %v817, %v1410
        %v1576 = vmul.f32 %v819, %v1412
        %v1577 = vmul.f32 %v823, %v1416
        %v1578 = vmul.f32 %v825, %v1418
        %v1579 = vmul.f32 %v827, %v1420
        %v1580 = vmul.f32 %v829, %v1422
        %v1581 = vmul.f32 %v833, %v1426
        %v1582 = vmul.f32 %v835, %v1428
        %v1583 = vmul.f32 %v837, %v1430
        %v1584 = vmul.f32 %v839, %v1432
        %v1585 = vmul.f32 %v843, %v1436
        %v1586 = vmul.f32 %v845, %v1438
        %v1587 = vmul.f32 %v847, %v1440
        %v1588 = vmul.f32 %v849, %v1442
        %v1589 = vpack.c.bf16 %v1559, %v1557
        %v1590 = vpack.c.bf16 %v1560, %v1558
        %v1591 = vpack.c.bf16 %v1563, %v1561
        %v1592 = vpack.c.bf16 %v1564, %v1562
        %v1593 = vpack.c.bf16 %v1567, %v1565
        %v1594 = vpack.c.bf16 %v1568, %v1566
        %v1595 = vpack.c.bf16 %v1571, %v1569
        %v1596 = vpack.c.bf16 %v1572, %v1570
        %v1597 = vpack.c.bf16 %v1575, %v1573
        %v1598 = vpack.c.bf16 %v1576, %v1574
        %v1599 = vpack.c.bf16 %v1579, %v1577
        %v1600 = vpack.c.bf16 %v1580, %v1578
        %v1601 = vpack.c.bf16 %v1583, %v1581
        %v1602 = vpack.c.bf16 %v1584, %v1582
        %v1603 = vpack.c.bf16 %v1587, %v1585
        %v1604 = vpack.c.bf16 %v1588, %v1586
        %v1605 = vmul.f32 %v773, %v1479
        %v1606 = vmul.f32 %v775, %v1481
        %v1607 = vmul.f32 %v777, %v1483
        %v1608 = vmul.f32 %v779, %v1485
        %v1609 = vmul.f32 %v783, %v1489
        %v1610 = vmul.f32 %v785, %v1491
        %v1611 = vmul.f32 %v787, %v1493
        %v1612 = vmul.f32 %v789, %v1495
        %v1613 = vmul.f32 %v793, %v1499
        %v1614 = vmul.f32 %v795, %v1501
        %v1615 = vmul.f32 %v797, %v1503
        %v1616 = vmul.f32 %v799, %v1505
        %v1617 = vmul.f32 %v803, %v1509
        %v1618 = vmul.f32 %v805, %v1511
        %v1619 = vmul.f32 %v807, %v1513
        %v1620 = vmul.f32 %v809, %v1515
        %v1621 = vmul.f32 %v813, %v1519
        %v1622 = vmul.f32 %v815, %v1521
        %v1623 = vmul.f32 %v817, %v1523
        %v1624 = vmul.f32 %v819, %v1525
        %v1625 = vmul.f32 %v823, %v1529
        %v1626 = vmul.f32 %v825, %v1531
        %v1627 = vmul.f32 %v827, %v1533
        %v1628 = vmul.f32 %v829, %v1535
        %v1629 = vmul.f32 %v833, %v1539
        %v1630 = vmul.f32 %v835, %v1541
        %v1631 = vmul.f32 %v837, %v1543
        %v1632 = vmul.f32 %v839, %v1545
        %v1633 = vmul.f32 %v843, %v1549
        %v1634 = vmul.f32 %v845, %v1551
        %v1635 = vmul.f32 %v847, %v1553
        %v1636 = vmul.f32 %v849, %v1555
        %v1637 = vpack.c.bf16 %v1607, %v1605
        %v1638 = vpack.c.bf16 %v1608, %v1606
        %v1639 = vpack.c.bf16 %v1611, %v1609
        %v1640 = vpack.c.bf16 %v1612, %v1610
        %v1641 = vpack.c.bf16 %v1615, %v1613
        %v1642 = vpack.c.bf16 %v1616, %v1614
        %v1643 = vpack.c.bf16 %v1619, %v1617
        %v1644 = vpack.c.bf16 %v1620, %v1618
        %v1645 = vpack.c.bf16 %v1623, %v1621
        %v1646 = vpack.c.bf16 %v1624, %v1622
        %v1647 = vpack.c.bf16 %v1627, %v1625
        %v1648 = vpack.c.bf16 %v1628, %v1626
        %v1649 = vpack.c.bf16 %v1631, %v1629
        %v1650 = vpack.c.bf16 %v1632, %v1630
        %v1651 = vpack.c.bf16 %v1635, %v1633
        %v1652 = vpack.c.bf16 %v1636, %v1634
        %v1653 = vld [vmem:[#allocation7] sm:$0xff]
        %v1654 = vld [vmem:[#allocation7 + $0x8] sm:$0xff]
        %v1655 = vld [vmem:[#allocation7 + $0x10] sm:$0xff]
        %v1656 = vld [vmem:[#allocation7 + $0x18] sm:$0xff]
        %v1657 = vld [vmem:[#allocation7 + $0x20] sm:$0xff]
        %v1658 = vld [vmem:[#allocation7 + $0x28] sm:$0xff]
        %v1659 = vld [vmem:[#allocation7 + $0x30] sm:$0xff]
        %v1660 = vld [vmem:[#allocation7 + $0x38] sm:$0xff]
        %v1661 = vld [vmem:[#allocation7 + $0x40] sm:$0xff]
        %v1662 = vld [vmem:[#allocation7 + $0x48] sm:$0xff]
        %v1663 = vld [vmem:[#allocation7 + $0x50] sm:$0xff]
        %v1664 = vld [vmem:[#allocation7 + $0x58] sm:$0xff]
        %v1665 = vld [vmem:[#allocation7 + $0x60] sm:$0xff]
        %v1666 = vld [vmem:[#allocation7 + $0x68] sm:$0xff]
        %v1667 = vld [vmem:[#allocation7 + $0x70] sm:$0xff]
        %v1668 = vld [vmem:[#allocation7 + $0x78] sm:$0xff]
        %v1669 = vld [vmem:[#allocation7 + $0x80] sm:$0xff]
        %v1670 = vld [vmem:[#allocation7 + $0x88] sm:$0xff]
        %v1671 = vld [vmem:[#allocation7 + $0x90] sm:$0xff]
        %v1672 = vld [vmem:[#allocation7 + $0x98] sm:$0xff]
        %v1673 = vld [vmem:[#allocation7 + $0xa0] sm:$0xff]
        %v1674 = vld [vmem:[#allocation7 + $0xa8] sm:$0xff]
        %v1675 = vld [vmem:[#allocation7 + $0xb0] sm:$0xff]
        %v1676 = vld [vmem:[#allocation7 + $0xb8] sm:$0xff]
        %v1677 = vld [vmem:[#allocation7 + $0xc0] sm:$0xff]
        %v1678 = vld [vmem:[#allocation7 + $0xc8] sm:$0xff]
        %v1679 = vld [vmem:[#allocation7 + $0xd0] sm:$0xff]
        %v1680 = vld [vmem:[#allocation7 + $0xd8] sm:$0xff]
        %v1681 = vld [vmem:[#allocation7 + $0xe0] sm:$0xff]
        %v1682 = vld [vmem:[#allocation7 + $0xe8] sm:$0xff]
        %v1683 = vld [vmem:[#allocation7 + $0xf0] sm:$0xff]
        %v1684 = vld [vmem:[#allocation7 + $0xf8] sm:$0xff]
        %v1685 = vld [vmem:[#allocation7 + $0x100] sm:$0xff]
        %v1686 = vld [vmem:[#allocation7 + $0x108] sm:$0xff]
        %v1687 = vld [vmem:[#allocation7 + $0x110] sm:$0xff]
        %v1688 = vld [vmem:[#allocation7 + $0x118] sm:$0xff]
        %v1689 = vld [vmem:[#allocation7 + $0x120] sm:$0xff]
        %v1690 = vld [vmem:[#allocation7 + $0x128] sm:$0xff]
        %v1691 = vld [vmem:[#allocation7 + $0x130] sm:$0xff]
        %v1692 = vld [vmem:[#allocation7 + $0x138] sm:$0xff]
        %v1693 = vld [vmem:[#allocation7 + $0x140] sm:$0xff]
        %v1694 = vld [vmem:[#allocation7 + $0x148] sm:$0xff]
        %v1695 = vld [vmem:[#allocation7 + $0x150] sm:$0xff]
        %v1696 = vld [vmem:[#allocation7 + $0x158] sm:$0xff]
        %v1697 = vld [vmem:[#allocation7 + $0x160] sm:$0xff]
        %v1698 = vld [vmem:[#allocation7 + $0x168] sm:$0xff]
        %v1699 = vld [vmem:[#allocation7 + $0x170] sm:$0xff]
        %v1700 = vld [vmem:[#allocation7 + $0x178] sm:$0xff]
        %v1701 = vld [vmem:[#allocation7 + $0x180] sm:$0xff]
        %v1702 = vld [vmem:[#allocation7 + $0x188] sm:$0xff]
        %v1703 = vld [vmem:[#allocation7 + $0x190] sm:$0xff]
        %v1704 = vld [vmem:[#allocation7 + $0x198] sm:$0xff]
        %v1705 = vld [vmem:[#allocation7 + $0x1a0] sm:$0xff]
        %v1706 = vld [vmem:[#allocation7 + $0x1a8] sm:$0xff]
        %v1707 = vld [vmem:[#allocation7 + $0x1b0] sm:$0xff]
        %v1708 = vld [vmem:[#allocation7 + $0x1b8] sm:$0xff]
        %v1709 = vld [vmem:[#allocation7 + $0x1c0] sm:$0xff]
        %v1710 = vld [vmem:[#allocation7 + $0x1c8] sm:$0xff]
        %v1711 = vld [vmem:[#allocation7 + $0x1d0] sm:$0xff]
        %v1712 = vld [vmem:[#allocation7 + $0x1d8] sm:$0xff]
        %v1713 = vld [vmem:[#allocation7 + $0x1e0] sm:$0xff]
        %v1714 = vld [vmem:[#allocation7 + $0x1e8] sm:$0xff]
        %v1715 = vld [vmem:[#allocation7 + $0x1f0] sm:$0xff]
        %v1716 = vld [vmem:[#allocation7 + $0x1f8] sm:$0xff]
        %v1717 = vld [vmem:[#allocation8] sm:$0xff]
        %v1718 = vld [vmem:[#allocation8 + $0x8] sm:$0xff]
        %v1719 = vld [vmem:[#allocation8 + $0x10] sm:$0xff]
        %v1720 = vld [vmem:[#allocation8 + $0x18] sm:$0xff]
        %v1721 = vld [vmem:[#allocation8 + $0x20] sm:$0xff]
        %v1722 = vld [vmem:[#allocation8 + $0x28] sm:$0xff]
        %v1723 = vld [vmem:[#allocation8 + $0x30] sm:$0xff]
        %v1724 = vld [vmem:[#allocation8 + $0x38] sm:$0xff]
        %v1725 = vld [vmem:[#allocation8 + $0x40] sm:$0xff]
        %v1726 = vld [vmem:[#allocation8 + $0x48] sm:$0xff]
        %v1727 = vld [vmem:[#allocation8 + $0x50] sm:$0xff]
        %v1728 = vld [vmem:[#allocation8 + $0x58] sm:$0xff]
        %v1729 = vld [vmem:[#allocation8 + $0x60] sm:$0xff]
        %v1730 = vld [vmem:[#allocation8 + $0x68] sm:$0xff]
        %v1731 = vld [vmem:[#allocation8 + $0x70] sm:$0xff]
        %v1732 = vld [vmem:[#allocation8 + $0x78] sm:$0xff]
        %v1733 = vld [vmem:[#allocation8 + $0x80] sm:$0xff]
        %v1734 = vld [vmem:[#allocation8 + $0x88] sm:$0xff]
        %v1735 = vld [vmem:[#allocation8 + $0x90] sm:$0xff]
        %v1736 = vld [vmem:[#allocation8 + $0x98] sm:$0xff]
        %v1737 = vld [vmem:[#allocation8 + $0xa0] sm:$0xff]
        %v1738 = vld [vmem:[#allocation8 + $0xa8] sm:$0xff]
        %v1739 = vld [vmem:[#allocation8 + $0xb0] sm:$0xff]
        %v1740 = vld [vmem:[#allocation8 + $0xb8] sm:$0xff]
        %v1741 = vld [vmem:[#allocation8 + $0xc0] sm:$0xff]
        %v1742 = vld [vmem:[#allocation8 + $0xc8] sm:$0xff]
        %v1743 = vld [vmem:[#allocation8 + $0xd0] sm:$0xff]
        %v1744 = vld [vmem:[#allocation8 + $0xd8] sm:$0xff]
        %v1745 = vld [vmem:[#allocation8 + $0xe0] sm:$0xff]
        %v1746 = vld [vmem:[#allocation8 + $0xe8] sm:$0xff]
        %v1747 = vld [vmem:[#allocation8 + $0xf0] sm:$0xff]
        %v1748 = vld [vmem:[#allocation8 + $0xf8] sm:$0xff]
        %v1749 = vld [vmem:[#allocation8 + $0x100] sm:$0xff]
        %v1750 = vld [vmem:[#allocation8 + $0x108] sm:$0xff]
        %v1751 = vld [vmem:[#allocation8 + $0x110] sm:$0xff]
        %v1752 = vld [vmem:[#allocation8 + $0x118] sm:$0xff]
        %v1753 = vld [vmem:[#allocation8 + $0x120] sm:$0xff]
        %v1754 = vld [vmem:[#allocation8 + $0x128] sm:$0xff]
        %v1755 = vld [vmem:[#allocation8 + $0x130] sm:$0xff]
        %v1756 = vld [vmem:[#allocation8 + $0x138] sm:$0xff]
        %v1757 = vld [vmem:[#allocation8 + $0x140] sm:$0xff]
        %v1758 = vld [vmem:[#allocation8 + $0x148] sm:$0xff]
        %v1759 = vld [vmem:[#allocation8 + $0x150] sm:$0xff]
        %v1760 = vld [vmem:[#allocation8 + $0x158] sm:$0xff]
        %v1761 = vld [vmem:[#allocation8 + $0x160] sm:$0xff]
        %v1762 = vld [vmem:[#allocation8 + $0x168] sm:$0xff]
        %v1763 = vld [vmem:[#allocation8 + $0x170] sm:$0xff]
        %v1764 = vld [vmem:[#allocation8 + $0x178] sm:$0xff]
        %v1765 = vld [vmem:[#allocation8 + $0x180] sm:$0xff]
        %v1766 = vld [vmem:[#allocation8 + $0x188] sm:$0xff]
        %v1767 = vld [vmem:[#allocation8 + $0x190] sm:$0xff]
        %v1768 = vld [vmem:[#allocation8 + $0x198] sm:$0xff]
        %v1769 = vld [vmem:[#allocation8 + $0x1a0] sm:$0xff]
        %v1770 = vld [vmem:[#allocation8 + $0x1a8] sm:$0xff]
        %v1771 = vld [vmem:[#allocation8 + $0x1b0] sm:$0xff]
        %v1772 = vld [vmem:[#allocation8 + $0x1b8] sm:$0xff]
        %v1773 = vld [vmem:[#allocation8 + $0x1c0] sm:$0xff]
        %v1774 = vld [vmem:[#allocation8 + $0x1c8] sm:$0xff]
        %v1775 = vld [vmem:[#allocation8 + $0x1d0] sm:$0xff]
        %v1776 = vld [vmem:[#allocation8 + $0x1d8] sm:$0xff]
        %v1777 = vld [vmem:[#allocation8 + $0x1e0] sm:$0xff]
        %v1778 = vld [vmem:[#allocation8 + $0x1e8] sm:$0xff]
        %v1779 = vld [vmem:[#allocation8 + $0x1f0] sm:$0xff]
        %v1780 = vld [vmem:[#allocation8 + $0x1f8] sm:$0xff]
        %v1845 = vunpack.c.l.b16 %v1717
        %v1846 = vunpack.c.h.b16 %v1717
        %v1847 = vunpack.c.l.b16 %v1718
        %v1848 = vunpack.c.h.b16 %v1718
        %v1849 = vunpack.c.l.b16 %v1719
        %v1850 = vunpack.c.h.b16 %v1719
        %v1851 = vunpack.c.l.b16 %v1720
        %v1852 = vunpack.c.h.b16 %v1720
        %v1853 = vunpack.c.l.b16 %v1721
        %v1854 = vunpack.c.h.b16 %v1721
        %v1855 = vunpack.c.l.b16 %v1722
        %v1856 = vunpack.c.h.b16 %v1722
        %v1857 = vunpack.c.l.b16 %v1723
        %v1858 = vunpack.c.h.b16 %v1723
        %v1859 = vunpack.c.l.b16 %v1724
        %v1860 = vunpack.c.h.b16 %v1724
        %v1861 = vunpack.c.l.b16 %v1725
        %v1862 = vunpack.c.h.b16 %v1725
        %v1863 = vunpack.c.l.b16 %v1726
        %v1864 = vunpack.c.h.b16 %v1726
        %v1865 = vunpack.c.l.b16 %v1727
        %v1866 = vunpack.c.h.b16 %v1727
        %v1867 = vunpack.c.l.b16 %v1728
        %v1868 = vunpack.c.h.b16 %v1728
        %v1869 = vunpack.c.l.b16 %v1729
        %v1870 = vunpack.c.h.b16 %v1729
        %v1871 = vunpack.c.l.b16 %v1730
        %v1872 = vunpack.c.h.b16 %v1730
        %v1873 = vunpack.c.l.b16 %v1731
        %v1874 = vunpack.c.h.b16 %v1731
        %v1875 = vunpack.c.l.b16 %v1732
        %v1876 = vunpack.c.h.b16 %v1732
        %v1877 = vunpack.c.l.b16 %v1733
        %v1878 = vunpack.c.h.b16 %v1733
        %v1879 = vunpack.c.l.b16 %v1734
        %v1880 = vunpack.c.h.b16 %v1734
        %v1881 = vunpack.c.l.b16 %v1735
        %v1882 = vunpack.c.h.b16 %v1735
        %v1883 = vunpack.c.l.b16 %v1736
        %v1884 = vunpack.c.h.b16 %v1736
        %v1885 = vunpack.c.l.b16 %v1737
        %v1886 = vunpack.c.h.b16 %v1737
        %v1887 = vunpack.c.l.b16 %v1738
        %v1888 = vunpack.c.h.b16 %v1738
        %v1889 = vunpack.c.l.b16 %v1739
        %v1890 = vunpack.c.h.b16 %v1739
        %v1891 = vunpack.c.l.b16 %v1740
        %v1892 = vunpack.c.h.b16 %v1740
        %v1893 = vunpack.c.l.b16 %v1741
        %v1894 = vunpack.c.h.b16 %v1741
        %v1895 = vunpack.c.l.b16 %v1742
        %v1896 = vunpack.c.h.b16 %v1742
        %v1897 = vunpack.c.l.b16 %v1743
        %v1898 = vunpack.c.h.b16 %v1743
        %v1899 = vunpack.c.l.b16 %v1744
        %v1900 = vunpack.c.h.b16 %v1744
        %v1901 = vunpack.c.l.b16 %v1745
        %v1902 = vunpack.c.h.b16 %v1745
        %v1903 = vunpack.c.l.b16 %v1746
        %v1904 = vunpack.c.h.b16 %v1746
        %v1905 = vunpack.c.l.b16 %v1747
        %v1906 = vunpack.c.h.b16 %v1747
        %v1907 = vunpack.c.l.b16 %v1748
        %v1908 = vunpack.c.h.b16 %v1748
        %v1909 = vunpack.c.l.b16 %v1749
        %v1910 = vunpack.c.h.b16 %v1749
        %v1911 = vunpack.c.l.b16 %v1750
        %v1912 = vunpack.c.h.b16 %v1750
        %v1913 = vunpack.c.l.b16 %v1751
        %v1914 = vunpack.c.h.b16 %v1751
        %v1915 = vunpack.c.l.b16 %v1752
        %v1916 = vunpack.c.h.b16 %v1752
        %v1917 = vunpack.c.l.b16 %v1753
        %v1918 = vunpack.c.h.b16 %v1753
        %v1919 = vunpack.c.l.b16 %v1754
        %v1920 = vunpack.c.h.b16 %v1754
        %v1921 = vunpack.c.l.b16 %v1755
        %v1922 = vunpack.c.h.b16 %v1755
        %v1923 = vunpack.c.l.b16 %v1756
        %v1924 = vunpack.c.h.b16 %v1756
        %v1925 = vunpack.c.l.b16 %v1757
        %v1926 = vunpack.c.h.b16 %v1757
        %v1927 = vunpack.c.l.b16 %v1758
        %v1928 = vunpack.c.h.b16 %v1758
        %v1929 = vunpack.c.l.b16 %v1759
        %v1930 = vunpack.c.h.b16 %v1759
        %v1931 = vunpack.c.l.b16 %v1760
        %v1932 = vunpack.c.h.b16 %v1760
        %v1933 = vunpack.c.l.b16 %v1761
        %v1934 = vunpack.c.h.b16 %v1761
        %v1935 = vunpack.c.l.b16 %v1762
        %v1936 = vunpack.c.h.b16 %v1762
        %v1937 = vunpack.c.l.b16 %v1763
        %v1938 = vunpack.c.h.b16 %v1763
        %v1939 = vunpack.c.l.b16 %v1764
        %v1940 = vunpack.c.h.b16 %v1764
        %v1941 = vunpack.c.l.b16 %v1765
        %v1942 = vunpack.c.h.b16 %v1765
        %v1943 = vunpack.c.l.b16 %v1766
        %v1944 = vunpack.c.h.b16 %v1766
        %v1945 = vunpack.c.l.b16 %v1767
        %v1946 = vunpack.c.h.b16 %v1767
        %v1947 = vunpack.c.l.b16 %v1768
        %v1948 = vunpack.c.h.b16 %v1768
        %v1949 = vunpack.c.l.b16 %v1769
        %v1950 = vunpack.c.h.b16 %v1769
        %v1951 = vunpack.c.l.b16 %v1770
        %v1952 = vunpack.c.h.b16 %v1770
        %v1953 = vunpack.c.l.b16 %v1771
        %v1954 = vunpack.c.h.b16 %v1771
        %v1955 = vunpack.c.l.b16 %v1772
        %v1956 = vunpack.c.h.b16 %v1772
        %v1957 = vunpack.c.l.b16 %v1773
        %v1958 = vunpack.c.h.b16 %v1773
        %v1959 = vunpack.c.l.b16 %v1774
        %v1960 = vunpack.c.h.b16 %v1774
        %v1961 = vunpack.c.l.b16 %v1775
        %v1962 = vunpack.c.h.b16 %v1775
        %v1963 = vunpack.c.l.b16 %v1776
        %v1964 = vunpack.c.h.b16 %v1776
        %v1965 = vunpack.c.l.b16 %v1777
        %v1966 = vunpack.c.h.b16 %v1777
        %v1967 = vunpack.c.l.b16 %v1778
        %v1968 = vunpack.c.h.b16 %v1778
        %v1969 = vunpack.c.l.b16 %v1779
        %v1970 = vunpack.c.h.b16 %v1779
        %v1971 = vunpack.c.l.b16 %v1780
        %v1972 = vunpack.c.h.b16 %v1780
        %v1973 = vpack.c.b16 %v1849, %v1845
        %v1974 = vpack.c.b16 %v1850, %v1846
        %v1975 = vpack.c.b16 %v1851, %v1847
        %v1976 = vpack.c.b16 %v1852, %v1848
        %v1977 = vpack.c.b16 %v1857, %v1853
        %v1978 = vpack.c.b16 %v1858, %v1854
        %v1979 = vpack.c.b16 %v1859, %v1855
        %v1980 = vpack.c.b16 %v1860, %v1856
        %v1981 = vpack.c.b16 %v1865, %v1861
        %v1982 = vpack.c.b16 %v1866, %v1862
        %v1983 = vpack.c.b16 %v1867, %v1863
        %v1984 = vpack.c.b16 %v1868, %v1864
        %v1985 = vpack.c.b16 %v1873, %v1869
        %v1986 = vpack.c.b16 %v1874, %v1870
        %v1987 = vpack.c.b16 %v1875, %v1871
        %v1988 = vpack.c.b16 %v1876, %v1872
        %v1989 = vpack.c.b16 %v1881, %v1877
        %v1990 = vpack.c.b16 %v1882, %v1878
        %v1991 = vpack.c.b16 %v1883, %v1879
        %v1992 = vpack.c.b16 %v1884, %v1880
        %v1993 = vpack.c.b16 %v1889, %v1885
        %v1994 = vpack.c.b16 %v1890, %v1886
        %v1995 = vpack.c.b16 %v1891, %v1887
        %v1996 = vpack.c.b16 %v1892, %v1888
        %v1997 = vpack.c.b16 %v1897, %v1893
        %v1998 = vpack.c.b16 %v1898, %v1894
        %v1999 = vpack.c.b16 %v1899, %v1895
        %v2000 = vpack.c.b16 %v1900, %v1896
        %v2001 = vpack.c.b16 %v1905, %v1901
        %v2002 = vpack.c.b16 %v1906, %v1902
        %v2003 = vpack.c.b16 %v1907, %v1903
        %v2004 = vpack.c.b16 %v1908, %v1904
        %v2005 = vpack.c.b16 %v1913, %v1909
        %v2006 = vpack.c.b16 %v1914, %v1910
        %v2007 = vpack.c.b16 %v1915, %v1911
        %v2008 = vpack.c.b16 %v1916, %v1912
        %v2009 = vpack.c.b16 %v1921, %v1917
        %v2010 = vpack.c.b16 %v1922, %v1918
        %v2011 = vpack.c.b16 %v1923, %v1919
        %v2012 = vpack.c.b16 %v1924, %v1920
        %v2013 = vpack.c.b16 %v1929, %v1925
        %v2014 = vpack.c.b16 %v1930, %v1926
        %v2015 = vpack.c.b16 %v1931, %v1927
        %v2016 = vpack.c.b16 %v1932, %v1928
        %v2017 = vpack.c.b16 %v1937, %v1933
        %v2018 = vpack.c.b16 %v1938, %v1934
        %v2019 = vpack.c.b16 %v1939, %v1935
        %v2020 = vpack.c.b16 %v1940, %v1936
        %v2021 = vpack.c.b16 %v1945, %v1941
        %v2022 = vpack.c.b16 %v1946, %v1942
        %v2023 = vpack.c.b16 %v1947, %v1943
        %v2024 = vpack.c.b16 %v1948, %v1944
        %v2025 = vpack.c.b16 %v1953, %v1949
        %v2026 = vpack.c.b16 %v1954, %v1950
        %v2027 = vpack.c.b16 %v1955, %v1951
        %v2028 = vpack.c.b16 %v1956, %v1952
        %v2029 = vpack.c.b16 %v1961, %v1957
        %v2030 = vpack.c.b16 %v1962, %v1958
        %v2031 = vpack.c.b16 %v1963, %v1959
        %v2032 = vpack.c.b16 %v1964, %v1960
        %v2033 = vpack.c.b16 %v1969, %v1965
        %v2034 = vpack.c.b16 %v1970, %v1966
        %v2035 = vpack.c.b16 %v1971, %v1967
        %v2036 = vpack.c.b16 %v1972, %v1968
        %2101 = vmatprep.subr.bf16.mxu0 %v1974
        %2102 = vmatpush1.bf16.msra.mxu0 %v1973
        %2103 = vmatprep.subr.bf16.mxu0 %v1978
        %2104 = vmatpush1.bf16.msra.mxu0 %v1977
        %2105 = vmatprep.subr.bf16.mxu0 %v1982
        %2106 = vmatpush1.bf16.msra.mxu0 %v1981
        %2107 = vmatprep.subr.bf16.mxu0 %v1986
        %2108 = vmatpush1.bf16.msra.mxu0 %v1985
        %2109 = vmatprep.subr.bf16.mxu0 %v1990
        %2110 = vmatpush1.bf16.msra.mxu0 %v1989
        %2111 = vmatprep.subr.bf16.mxu0 %v1994
        %2112 = vmatpush1.bf16.msra.mxu0 %v1993
        %2113 = vmatprep.subr.bf16.mxu0 %v1998
        %2114 = vmatpush1.bf16.msra.mxu0 %v1997
        %2115 = vmatprep.subr.bf16.mxu0 %v2002
        %2116 = vmatpush1.bf16.msra.mxu0 %v2001
        %2117 = vmatprep.subr.bf16.mxu0 %v2006
        %2118 = vmatpush1.bf16.msra.mxu0 %v2005
        %2119 = vmatprep.subr.bf16.mxu0 %v2010
        %2120 = vmatpush1.bf16.msra.mxu0 %v2009
        %2121 = vmatprep.subr.bf16.mxu0 %v2014
        %2122 = vmatpush1.bf16.msra.mxu0 %v2013
        %2123 = vmatprep.subr.bf16.mxu0 %v2018
        %2124 = vmatpush1.bf16.msra.mxu0 %v2017
        %2125 = vmatprep.subr.bf16.mxu0 %v2022
        %2126 = vmatpush1.bf16.msra.mxu0 %v2021
        %2127 = vmatprep.subr.bf16.mxu0 %v2026
        %2128 = vmatpush1.bf16.msra.mxu0 %v2025
        %2129 = vmatprep.subr.bf16.mxu0 %v2030
        %2130 = vmatpush1.bf16.msra.mxu0 %v2029
        %2131 = vmatprep.subr.bf16.mxu0 %v2034
        %2132 = vmatpush1.bf16.msra.mxu0 %v2033
        %2133 = vmatprep.mubr.bf16.mxu0 %v1638
        %2134 = vmatmul.mubr.bf16.gmra.mrb[0].mxu0 %v1637
        %v2135 = vpop.f32.mrb[0].mxu0
        %v2136 = vadd.f32 0.0, %v2135
        %v2137 = vpop.f32.mrb[0].mxu0
        %v2138 = vadd.f32 0.0, %v2137
        %v2139 = vpop.f32.mrb[0].mxu0
        %v2140 = vadd.f32 0.0, %v2139
        %v2141 = vpop.f32.mrb[0].mxu0
        %v2142 = vadd.f32 0.0, %v2141
        %2143 = vmatprep.mubr.bf16.mxu0 %v1640
        %2144 = vmatmul.mubr.bf16.gmra.mrb[0].mxu0 %v1639
        %v2145 = vpop.f32.mrb[0].mxu0
        %v2146 = vadd.f32 0.0, %v2145
        %v2147 = vpop.f32.mrb[0].mxu0
        %v2148 = vadd.f32 0.0, %v2147
        %v2149 = vpop.f32.mrb[0].mxu0
        %v2150 = vadd.f32 0.0, %v2149
        %v2151 = vpop.f32.mrb[0].mxu0
        %v2152 = vadd.f32 0.0, %v2151
        %2153 = vmatprep.mubr.bf16.mxu0 %v1642
        %2154 = vmatmul.mubr.bf16.gmra.mrb[0].mxu0 %v1641
        %v2155 = vpop.f32.mrb[0].mxu0
        %v2156 = vadd.f32 0.0, %v2155
        %v2157 = vpop.f32.mrb[0].mxu0
        %v2158 = vadd.f32 0.0, %v2157
        %v2159 = vpop.f32.mrb[0].mxu0
        %v2160 = vadd.f32 0.0, %v2159
        %v2161 = vpop.f32.mrb[0].mxu0
        %v2162 = vadd.f32 0.0, %v2161
        %2163 = vmatprep.mubr.bf16.mxu0 %v1644
        %2164 = vmatmul.mubr.bf16.gmra.mrb[0].mxu0 %v1643
        %v2165 = vpop.f32.mrb[0].mxu0
        %v2166 = vadd.f32 0.0, %v2165
        %v2167 = vpop.f32.mrb[0].mxu0
        %v2168 = vadd.f32 0.0, %v2167
        %v2169 = vpop.f32.mrb[0].mxu0
        %v2170 = vadd.f32 0.0, %v2169
        %v2171 = vpop.f32.mrb[0].mxu0
        %v2172 = vadd.f32 0.0, %v2171
        %2173 = vmatprep.mubr.bf16.mxu0 %v1646
        %2174 = vmatmul.mubr.bf16.gmra.mrb[0].mxu0 %v1645
        %v2175 = vpop.f32.mrb[0].mxu0
        %v2176 = vadd.f32 0.0, %v2175
        %v2177 = vpop.f32.mrb[0].mxu0
        %v2178 = vadd.f32 0.0, %v2177
        %v2179 = vpop.f32.mrb[0].mxu0
        %v2180 = vadd.f32 0.0, %v2179
        %v2181 = vpop.f32.mrb[0].mxu0
        %v2182 = vadd.f32 0.0, %v2181
        %2183 = vmatprep.mubr.bf16.mxu0 %v1648
        %2184 = vmatmul.mubr.bf16.gmra.mrb[0].mxu0 %v1647
        %v2185 = vpop.f32.mrb[0].mxu0
        %v2186 = vadd.f32 0.0, %v2185
        %v2187 = vpop.f32.mrb[0].mxu0
        %v2188 = vadd.f32 0.0, %v2187
        %v2189 = vpop.f32.mrb[0].mxu0
        %v2190 = vadd.f32 0.0, %v2189
        %v2191 = vpop.f32.mrb[0].mxu0
        %v2192 = vadd.f32 0.0, %v2191
        %2193 = vmatprep.mubr.bf16.mxu0 %v1650
        %2194 = vmatmul.mubr.bf16.gmra.mrb[0].mxu0 %v1649
        %v2195 = vpop.f32.mrb[0].mxu0
        %v2196 = vadd.f32 0.0, %v2195
        %v2197 = vpop.f32.mrb[0].mxu0
        %v2198 = vadd.f32 0.0, %v2197
        %v2199 = vpop.f32.mrb[0].mxu0
        %v2200 = vadd.f32 0.0, %v2199
        %v2201 = vpop.f32.mrb[0].mxu0
        %v2202 = vadd.f32 0.0, %v2201
        %2203 = vmatprep.mubr.bf16.mxu0 %v1652
        %2204 = vmatmul.mubr.bf16.gmra.mrb[0].mxu0 %v1651
        %v2205 = vpop.f32.mrb[0].mxu0
        %v2206 = vadd.f32 0.0, %v2205
        %v2207 = vpop.f32.mrb[0].mxu0
        %v2208 = vadd.f32 0.0, %v2207
        %v2209 = vpop.f32.mrb[0].mxu0
        %v2210 = vadd.f32 0.0, %v2209
        %v2211 = vpop.f32.mrb[0].mxu0
        %v2212 = vadd.f32 0.0, %v2211
        %2213 = vdwg.mxu0
        %2214 = vmatprep.subr.bf16.mxu0 %v1976
        %2215 = vmatpush1.bf16.msra.mxu0 %v1975
        %2216 = vmatprep.subr.bf16.mxu0 %v1980
        %2217 = vmatpush1.bf16.msra.mxu0 %v1979
        %2218 = vmatprep.subr.bf16.mxu0 %v1984
        %2219 = vmatpush1.bf16.msra.mxu0 %v1983
        %2220 = vmatprep.subr.bf16.mxu0 %v1988
        %2221 = vmatpush1.bf16.msra.mxu0 %v1987
        %2222 = vmatprep.subr.bf16.mxu0 %v1992
        %2223 = vmatpush1.bf16.msra.mxu0 %v1991
        %2224 = vmatprep.subr.bf16.mxu0 %v1996
        %2225 = vmatpush1.bf16.msra.mxu0 %v1995
        %2226 = vmatprep.subr.bf16.mxu0 %v2000
        %2227 = vmatpush1.bf16.msra.mxu0 %v1999
        %2228 = vmatprep.subr.bf16.mxu0 %v2004
        %2229 = vmatpush1.bf16.msra.mxu0 %v2003
        %2230 = vmatprep.subr.bf16.mxu0 %v2008
        %2231 = vmatpush1.bf16.msra.mxu0 %v2007
        %2232 = vmatprep.subr.bf16.mxu0 %v2012
        %2233 = vmatpush1.bf16.msra.mxu0 %v2011
        %2234 = vmatprep.subr.bf16.mxu0 %v2016
        %2235 = vmatpush1.bf16.msra.mxu0 %v2015
        %2236 = vmatprep.subr.bf16.mxu0 %v2020
        %2237 = vmatpush1.bf16.msra.mxu0 %v2019
        %2238 = vmatprep.subr.bf16.mxu0 %v2024
        %2239 = vmatpush1.bf16.msra.mxu0 %v2023
        %2240 = vmatprep.subr.bf16.mxu0 %v2028
        %2241 = vmatpush1.bf16.msra.mxu0 %v2027
        %2242 = vmatprep.subr.bf16.mxu0 %v2032
        %2243 = vmatpush1.bf16.msra.mxu0 %v2031
        %2244 = vmatprep.subr.bf16.mxu0 %v2036
        %2245 = vmatpush1.bf16.msra.mxu0 %v2035
        %2246 = vmatprep.mubr.bf16.mxu0 %v1638
        %2247 = vmatmul.mubr.bf16.gmra.mrb[0].mxu0 %v1637
        %v2248 = vpop.f32.mrb[0].mxu0
        %v2249 = vadd.f32 0.0, %v2248
        %v2250 = vpop.f32.mrb[0].mxu0
        %v2251 = vadd.f32 0.0, %v2250
        %v2252 = vpop.f32.mrb[0].mxu0
        %v2253 = vadd.f32 0.0, %v2252
        %v2254 = vpop.f32.mrb[0].mxu0
        %v2255 = vadd.f32 0.0, %v2254
        %2256 = vmatprep.mubr.bf16.mxu0 %v1640
        %2257 = vmatmul.mubr.bf16.gmra.mrb[0].mxu0 %v1639
        %v2258 = vpop.f32.mrb[0].mxu0
        %v2259 = vadd.f32 0.0, %v2258
        %v2260 = vpop.f32.mrb[0].mxu0
        %v2261 = vadd.f32 0.0, %v2260
        %v2262 = vpop.f32.mrb[0].mxu0
        %v2263 = vadd.f32 0.0, %v2262
        %v2264 = vpop.f32.mrb[0].mxu0
        %v2265 = vadd.f32 0.0, %v2264
        %2266 = vmatprep.mubr.bf16.mxu0 %v1642
        %2267 = vmatmul.mubr.bf16.gmra.mrb[0].mxu0 %v1641
        %v2268 = vpop.f32.mrb[0].mxu0
        %v2269 = vadd.f32 0.0, %v2268
        %v2270 = vpop.f32.mrb[0].mxu0
        %v2271 = vadd.f32 0.0, %v2270
        %v2272 = vpop.f32.mrb[0].mxu0
        %v2273 = vadd.f32 0.0, %v2272
        %v2274 = vpop.f32.mrb[0].mxu0
        %v2275 = vadd.f32 0.0, %v2274
        %2276 = vmatprep.mubr.bf16.mxu0 %v1644
        %2277 = vmatmul.mubr.bf16.gmra.mrb[0].mxu0 %v1643
        %v2278 = vpop.f32.mrb[0].mxu0
        %v2279 = vadd.f32 0.0, %v2278
        %v2280 = vpop.f32.mrb[0].mxu0
        %v2281 = vadd.f32 0.0, %v2280
        %v2282 = vpop.f32.mrb[0].mxu0
        %v2283 = vadd.f32 0.0, %v2282
        %v2284 = vpop.f32.mrb[0].mxu0
        %v2285 = vadd.f32 0.0, %v2284
        %2286 = vmatprep.mubr.bf16.mxu0 %v1646
        %2287 = vmatmul.mubr.bf16.gmra.mrb[0].mxu0 %v1645
        %v2288 = vpop.f32.mrb[0].mxu0
        %v2289 = vadd.f32 0.0, %v2288
        %v2290 = vpop.f32.mrb[0].mxu0
        %v2291 = vadd.f32 0.0, %v2290
        %v2292 = vpop.f32.mrb[0].mxu0
        %v2293 = vadd.f32 0.0, %v2292
        %v2294 = vpop.f32.mrb[0].mxu0
        %v2295 = vadd.f32 0.0, %v2294
        %2296 = vmatprep.mubr.bf16.mxu0 %v1648
        %2297 = vmatmul.mubr.bf16.gmra.mrb[0].mxu0 %v1647
        %v2298 = vpop.f32.mrb[0].mxu0
        %v2299 = vadd.f32 0.0, %v2298
        %v2300 = vpop.f32.mrb[0].mxu0
        %v2301 = vadd.f32 0.0, %v2300
        %v2302 = vpop.f32.mrb[0].mxu0
        %v2303 = vadd.f32 0.0, %v2302
        %v2304 = vpop.f32.mrb[0].mxu0
        %v2305 = vadd.f32 0.0, %v2304
        %2306 = vmatprep.mubr.bf16.mxu0 %v1650
        %2307 = vmatmul.mubr.bf16.gmra.mrb[0].mxu0 %v1649
        %v2308 = vpop.f32.mrb[0].mxu0
        %v2309 = vadd.f32 0.0, %v2308
        %v2310 = vpop.f32.mrb[0].mxu0
        %v2311 = vadd.f32 0.0, %v2310
        %v2312 = vpop.f32.mrb[0].mxu0
        %v2313 = vadd.f32 0.0, %v2312
        %v2314 = vpop.f32.mrb[0].mxu0
        %v2315 = vadd.f32 0.0, %v2314
        %2316 = vmatprep.mubr.bf16.mxu0 %v1652
        %2317 = vmatmul.mubr.bf16.gmra.mrb[0].mxu0 %v1651
        %v2318 = vpop.f32.mrb[0].mxu0
        %v2319 = vadd.f32 0.0, %v2318
        %v2320 = vpop.f32.mrb[0].mxu0
        %v2321 = vadd.f32 0.0, %v2320
        %v2322 = vpop.f32.mrb[0].mxu0
        %v2323 = vadd.f32 0.0, %v2322
        %v2324 = vpop.f32.mrb[0].mxu0
        %v2325 = vadd.f32 0.0, %v2324
        %2326 = vdwg.mxu0
        %v2391 = vunpack.c.l.b16 %v1653
        %v2392 = vunpack.c.h.b16 %v1653
        %v2393 = vunpack.c.l.b16 %v1654
        %v2394 = vunpack.c.h.b16 %v1654
        %v2395 = vunpack.c.l.b16 %v1655
        %v2396 = vunpack.c.h.b16 %v1655
        %v2397 = vunpack.c.l.b16 %v1656
        %v2398 = vunpack.c.h.b16 %v1656
        %v2399 = vunpack.c.l.b16 %v1657
        %v2400 = vunpack.c.h.b16 %v1657
        %v2401 = vunpack.c.l.b16 %v1658
        %v2402 = vunpack.c.h.b16 %v1658
        %v2403 = vunpack.c.l.b16 %v1659
        %v2404 = vunpack.c.h.b16 %v1659
        %v2405 = vunpack.c.l.b16 %v1660
        %v2406 = vunpack.c.h.b16 %v1660
        %v2407 = vunpack.c.l.b16 %v1661
        %v2408 = vunpack.c.h.b16 %v1661
        %v2409 = vunpack.c.l.b16 %v1662
        %v2410 = vunpack.c.h.b16 %v1662
        %v2411 = vunpack.c.l.b16 %v1663
        %v2412 = vunpack.c.h.b16 %v1663
        %v2413 = vunpack.c.l.b16 %v1664
        %v2414 = vunpack.c.h.b16 %v1664
        %v2415 = vunpack.c.l.b16 %v1665
        %v2416 = vunpack.c.h.b16 %v1665
        %v2417 = vunpack.c.l.b16 %v1666
        %v2418 = vunpack.c.h.b16 %v1666
        %v2419 = vunpack.c.l.b16 %v1667
        %v2420 = vunpack.c.h.b16 %v1667
        %v2421 = vunpack.c.l.b16 %v1668
        %v2422 = vunpack.c.h.b16 %v1668
        %v2423 = vunpack.c.l.b16 %v1669
        %v2424 = vunpack.c.h.b16 %v1669
        %v2425 = vunpack.c.l.b16 %v1670
        %v2426 = vunpack.c.h.b16 %v1670
        %v2427 = vunpack.c.l.b16 %v1671
        %v2428 = vunpack.c.h.b16 %v1671
        %v2429 = vunpack.c.l.b16 %v1672
        %v2430 = vunpack.c.h.b16 %v1672
        %v2431 = vunpack.c.l.b16 %v1673
        %v2432 = vunpack.c.h.b16 %v1673
        %v2433 = vunpack.c.l.b16 %v1674
        %v2434 = vunpack.c.h.b16 %v1674
        %v2435 = vunpack.c.l.b16 %v1675
        %v2436 = vunpack.c.h.b16 %v1675
        %v2437 = vunpack.c.l.b16 %v1676
        %v2438 = vunpack.c.h.b16 %v1676
        %v2439 = vunpack.c.l.b16 %v1677
        %v2440 = vunpack.c.h.b16 %v1677
        %v2441 = vunpack.c.l.b16 %v1678
        %v2442 = vunpack.c.h.b16 %v1678
        %v2443 = vunpack.c.l.b16 %v1679
        %v2444 = vunpack.c.h.b16 %v1679
        %v2445 = vunpack.c.l.b16 %v1680
        %v2446 = vunpack.c.h.b16 %v1680
        %v2447 = vunpack.c.l.b16 %v1681
        %v2448 = vunpack.c.h.b16 %v1681
        %v2449 = vunpack.c.l.b16 %v1682
        %v2450 = vunpack.c.h.b16 %v1682
        %v2451 = vunpack.c.l.b16 %v1683
        %v2452 = vunpack.c.h.b16 %v1683
        %v2453 = vunpack.c.l.b16 %v1684
        %v2454 = vunpack.c.h.b16 %v1684
        %v2455 = vunpack.c.l.b16 %v1685
        %v2456 = vunpack.c.h.b16 %v1685
        %v2457 = vunpack.c.l.b16 %v1686
        %v2458 = vunpack.c.h.b16 %v1686
        %v2459 = vunpack.c.l.b16 %v1687
        %v2460 = vunpack.c.h.b16 %v1687
        %v2461 = vunpack.c.l.b16 %v1688
        %v2462 = vunpack.c.h.b16 %v1688
        %v2463 = vunpack.c.l.b16 %v1689
        %v2464 = vunpack.c.h.b16 %v1689
        %v2465 = vunpack.c.l.b16 %v1690
        %v2466 = vunpack.c.h.b16 %v1690
        %v2467 = vunpack.c.l.b16 %v1691
        %v2468 = vunpack.c.h.b16 %v1691
        %v2469 = vunpack.c.l.b16 %v1692
        %v2470 = vunpack.c.h.b16 %v1692
        %v2471 = vunpack.c.l.b16 %v1693
        %v2472 = vunpack.c.h.b16 %v1693
        %v2473 = vunpack.c.l.b16 %v1694
        %v2474 = vunpack.c.h.b16 %v1694
        %v2475 = vunpack.c.l.b16 %v1695
        %v2476 = vunpack.c.h.b16 %v1695
        %v2477 = vunpack.c.l.b16 %v1696
        %v2478 = vunpack.c.h.b16 %v1696
        %v2479 = vunpack.c.l.b16 %v1697
        %v2480 = vunpack.c.h.b16 %v1697
        %v2481 = vunpack.c.l.b16 %v1698
        %v2482 = vunpack.c.h.b16 %v1698
        %v2483 = vunpack.c.l.b16 %v1699
        %v2484 = vunpack.c.h.b16 %v1699
        %v2485 = vunpack.c.l.b16 %v1700
        %v2486 = vunpack.c.h.b16 %v1700
        %v2487 = vunpack.c.l.b16 %v1701
        %v2488 = vunpack.c.h.b16 %v1701
        %v2489 = vunpack.c.l.b16 %v1702
        %v2490 = vunpack.c.h.b16 %v1702
        %v2491 = vunpack.c.l.b16 %v1703
        %v2492 = vunpack.c.h.b16 %v1703
        %v2493 = vunpack.c.l.b16 %v1704
        %v2494 = vunpack.c.h.b16 %v1704
        %v2495 = vunpack.c.l.b16 %v1705
        %v2496 = vunpack.c.h.b16 %v1705
        %v2497 = vunpack.c.l.b16 %v1706
        %v2498 = vunpack.c.h.b16 %v1706
        %v2499 = vunpack.c.l.b16 %v1707
        %v2500 = vunpack.c.h.b16 %v1707
        %v2501 = vunpack.c.l.b16 %v1708
        %v2502 = vunpack.c.h.b16 %v1708
        %v2503 = vunpack.c.l.b16 %v1709
        %v2504 = vunpack.c.h.b16 %v1709
        %v2505 = vunpack.c.l.b16 %v1710
        %v2506 = vunpack.c.h.b16 %v1710
        %v2507 = vunpack.c.l.b16 %v1711
        %v2508 = vunpack.c.h.b16 %v1711
        %v2509 = vunpack.c.l.b16 %v1712
        %v2510 = vunpack.c.h.b16 %v1712
        %v2511 = vunpack.c.l.b16 %v1713
        %v2512 = vunpack.c.h.b16 %v1713
        %v2513 = vunpack.c.l.b16 %v1714
        %v2514 = vunpack.c.h.b16 %v1714
        %v2515 = vunpack.c.l.b16 %v1715
        %v2516 = vunpack.c.h.b16 %v1715
        %v2517 = vunpack.c.l.b16 %v1716
        %v2518 = vunpack.c.h.b16 %v1716
        %v2519 = vpack.c.b16 %v2395, %v2391
        %v2520 = vpack.c.b16 %v2396, %v2392
        %v2521 = vpack.c.b16 %v2397, %v2393
        %v2522 = vpack.c.b16 %v2398, %v2394
        %v2523 = vpack.c.b16 %v2403, %v2399
        %v2524 = vpack.c.b16 %v2404, %v2400
        %v2525 = vpack.c.b16 %v2405, %v2401
        %v2526 = vpack.c.b16 %v2406, %v2402
        %v2527 = vpack.c.b16 %v2411, %v2407
        %v2528 = vpack.c.b16 %v2412, %v2408
        %v2529 = vpack.c.b16 %v2413, %v2409
        %v2530 = vpack.c.b16 %v2414, %v2410
        %v2531 = vpack.c.b16 %v2419, %v2415
        %v2532 = vpack.c.b16 %v2420, %v2416
        %v2533 = vpack.c.b16 %v2421, %v2417
        %v2534 = vpack.c.b16 %v2422, %v2418
        %v2535 = vpack.c.b16 %v2427, %v2423
        %v2536 = vpack.c.b16 %v2428, %v2424
        %v2537 = vpack.c.b16 %v2429, %v2425
        %v2538 = vpack.c.b16 %v2430, %v2426
        %v2539 = vpack.c.b16 %v2435, %v2431
        %v2540 = vpack.c.b16 %v2436, %v2432
        %v2541 = vpack.c.b16 %v2437, %v2433
        %v2542 = vpack.c.b16 %v2438, %v2434
        %v2543 = vpack.c.b16 %v2443, %v2439
        %v2544 = vpack.c.b16 %v2444, %v2440
        %v2545 = vpack.c.b16 %v2445, %v2441
        %v2546 = vpack.c.b16 %v2446, %v2442
        %v2547 = vpack.c.b16 %v2451, %v2447
        %v2548 = vpack.c.b16 %v2452, %v2448
        %v2549 = vpack.c.b16 %v2453, %v2449
        %v2550 = vpack.c.b16 %v2454, %v2450
        %v2551 = vpack.c.b16 %v2459, %v2455
        %v2552 = vpack.c.b16 %v2460, %v2456
        %v2553 = vpack.c.b16 %v2461, %v2457
        %v2554 = vpack.c.b16 %v2462, %v2458
        %v2555 = vpack.c.b16 %v2467, %v2463
        %v2556 = vpack.c.b16 %v2468, %v2464
        %v2557 = vpack.c.b16 %v2469, %v2465
        %v2558 = vpack.c.b16 %v2470, %v2466
        %v2559 = vpack.c.b16 %v2475, %v2471
        %v2560 = vpack.c.b16 %v2476, %v2472
        %v2561 = vpack.c.b16 %v2477, %v2473
        %v2562 = vpack.c.b16 %v2478, %v2474
        %v2563 = vpack.c.b16 %v2483, %v2479
        %v2564 = vpack.c.b16 %v2484, %v2480
        %v2565 = vpack.c.b16 %v2485, %v2481
        %v2566 = vpack.c.b16 %v2486, %v2482
        %v2567 = vpack.c.b16 %v2491, %v2487
        %v2568 = vpack.c.b16 %v2492, %v2488
        %v2569 = vpack.c.b16 %v2493, %v2489
        %v2570 = vpack.c.b16 %v2494, %v2490
        %v2571 = vpack.c.b16 %v2499, %v2495
        %v2572 = vpack.c.b16 %v2500, %v2496
        %v2573 = vpack.c.b16 %v2501, %v2497
        %v2574 = vpack.c.b16 %v2502, %v2498
        %v2575 = vpack.c.b16 %v2507, %v2503
        %v2576 = vpack.c.b16 %v2508, %v2504
        %v2577 = vpack.c.b16 %v2509, %v2505
        %v2578 = vpack.c.b16 %v2510, %v2506
        %v2579 = vpack.c.b16 %v2515, %v2511
        %v2580 = vpack.c.b16 %v2516, %v2512
        %v2581 = vpack.c.b16 %v2517, %v2513
        %v2582 = vpack.c.b16 %v2518, %v2514
        %2647 = vmatprep.subr.bf16.mxu0 %v2520
        %2648 = vmatpush1.bf16.msra.mxu0 %v2519
        %2649 = vmatprep.subr.bf16.mxu0 %v2524
        %2650 = vmatpush1.bf16.msra.mxu0 %v2523
        %2651 = vmatprep.subr.bf16.mxu0 %v2528
        %2652 = vmatpush1.bf16.msra.mxu0 %v2527
        %2653 = vmatprep.subr.bf16.mxu0 %v2532
        %2654 = vmatpush1.bf16.msra.mxu0 %v2531
        %2655 = vmatprep.subr.bf16.mxu0 %v2536
        %2656 = vmatpush1.bf16.msra.mxu0 %v2535
        %2657 = vmatprep.subr.bf16.mxu0 %v2540
        %2658 = vmatpush1.bf16.msra.mxu0 %v2539
        %2659 = vmatprep.subr.bf16.mxu0 %v2544
        %2660 = vmatpush1.bf16.msra.mxu0 %v2543
        %2661 = vmatprep.subr.bf16.mxu0 %v2548
        %2662 = vmatpush1.bf16.msra.mxu0 %v2547
        %2663 = vmatprep.subr.bf16.mxu0 %v2552
        %2664 = vmatpush1.bf16.msra.mxu0 %v2551
        %2665 = vmatprep.subr.bf16.mxu0 %v2556
        %2666 = vmatpush1.bf16.msra.mxu0 %v2555
        %2667 = vmatprep.subr.bf16.mxu0 %v2560
        %2668 = vmatpush1.bf16.msra.mxu0 %v2559
        %2669 = vmatprep.subr.bf16.mxu0 %v2564
        %2670 = vmatpush1.bf16.msra.mxu0 %v2563
        %2671 = vmatprep.subr.bf16.mxu0 %v2568
        %2672 = vmatpush1.bf16.msra.mxu0 %v2567
        %2673 = vmatprep.subr.bf16.mxu0 %v2572
        %2674 = vmatpush1.bf16.msra.mxu0 %v2571
        %2675 = vmatprep.subr.bf16.mxu0 %v2576
        %2676 = vmatpush1.bf16.msra.mxu0 %v2575
        %2677 = vmatprep.subr.bf16.mxu0 %v2580
        %2678 = vmatpush1.bf16.msra.mxu0 %v2579
        %2679 = vmatprep.mubr.bf16.mxu0 %v1590
        %2680 = vmatmul.mubr.bf16.gmra.mrb[0].mxu0 %v1589
        %v2681 = vpop.f32.mrb[0].mxu0
        %v2682 = vadd.f32 %v2136, %v2681
        %v2683 = vpop.f32.mrb[0].mxu0
        %v2684 = vadd.f32 %v2138, %v2683
        %v2685 = vpop.f32.mrb[0].mxu0
        %v2686 = vadd.f32 %v2140, %v2685
        %v2687 = vpop.f32.mrb[0].mxu0
        %v2688 = vadd.f32 %v2142, %v2687
        %2689 = vmatprep.mubr.bf16.mxu0 %v1592
        %2690 = vmatmul.mubr.bf16.gmra.mrb[0].mxu0 %v1591
        %v2691 = vpop.f32.mrb[0].mxu0
        %v2692 = vadd.f32 %v2146, %v2691
        %v2693 = vpop.f32.mrb[0].mxu0
        %v2694 = vadd.f32 %v2148, %v2693
        %v2695 = vpop.f32.mrb[0].mxu0
        %v2696 = vadd.f32 %v2150, %v2695
        %v2697 = vpop.f32.mrb[0].mxu0
        %v2698 = vadd.f32 %v2152, %v2697
        %2699 = vmatprep.mubr.bf16.mxu0 %v1594
        %2700 = vmatmul.mubr.bf16.gmra.mrb[0].mxu0 %v1593
        %v2701 = vpop.f32.mrb[0].mxu0
        %v2702 = vadd.f32 %v2156, %v2701
        %v2703 = vpop.f32.mrb[0].mxu0
        %v2704 = vadd.f32 %v2158, %v2703
        %v2705 = vpop.f32.mrb[0].mxu0
        %v2706 = vadd.f32 %v2160, %v2705
        %v2707 = vpop.f32.mrb[0].mxu0
        %v2708 = vadd.f32 %v2162, %v2707
        %2709 = vmatprep.mubr.bf16.mxu0 %v1596
        %2710 = vmatmul.mubr.bf16.gmra.mrb[0].mxu0 %v1595
        %v2711 = vpop.f32.mrb[0].mxu0
        %v2712 = vadd.f32 %v2166, %v2711
        %v2713 = vpop.f32.mrb[0].mxu0
        %v2714 = vadd.f32 %v2168, %v2713
        %v2715 = vpop.f32.mrb[0].mxu0
        %v2716 = vadd.f32 %v2170, %v2715
        %v2717 = vpop.f32.mrb[0].mxu0
        %v2718 = vadd.f32 %v2172, %v2717
        %2719 = vmatprep.mubr.bf16.mxu0 %v1598
        %2720 = vmatmul.mubr.bf16.gmra.mrb[0].mxu0 %v1597
        %v2721 = vpop.f32.mrb[0].mxu0
        %v2722 = vadd.f32 %v2176, %v2721
        %v2723 = vpop.f32.mrb[0].mxu0
        %v2724 = vadd.f32 %v2178, %v2723
        %v2725 = vpop.f32.mrb[0].mxu0
        %v2726 = vadd.f32 %v2180, %v2725
        %v2727 = vpop.f32.mrb[0].mxu0
        %v2728 = vadd.f32 %v2182, %v2727
        %2729 = vmatprep.mubr.bf16.mxu0 %v1600
        %2730 = vmatmul.mubr.bf16.gmra.mrb[0].mxu0 %v1599
        %v2731 = vpop.f32.mrb[0].mxu0
        %v2732 = vadd.f32 %v2186, %v2731
        %v2733 = vpop.f32.mrb[0].mxu0
        %v2734 = vadd.f32 %v2188, %v2733
        %v2735 = vpop.f32.mrb[0].mxu0
        %v2736 = vadd.f32 %v2190, %v2735
        %v2737 = vpop.f32.mrb[0].mxu0
        %v2738 = vadd.f32 %v2192, %v2737
        %2739 = vmatprep.mubr.bf16.mxu0 %v1602
        %2740 = vmatmul.mubr.bf16.gmra.mrb[0].mxu0 %v1601
        %v2741 = vpop.f32.mrb[0].mxu0
        %v2742 = vadd.f32 %v2196, %v2741
        %v2743 = vpop.f32.mrb[0].mxu0
        %v2744 = vadd.f32 %v2198, %v2743
        %v2745 = vpop.f32.mrb[0].mxu0
        %v2746 = vadd.f32 %v2200, %v2745
        %v2747 = vpop.f32.mrb[0].mxu0
        %v2748 = vadd.f32 %v2202, %v2747
        %2749 = vmatprep.mubr.bf16.mxu0 %v1604
        %2750 = vmatmul.mubr.bf16.gmra.mrb[0].mxu0 %v1603
        %v2751 = vpop.f32.mrb[0].mxu0
        %v2752 = vadd.f32 %v2206, %v2751
        %v2753 = vpop.f32.mrb[0].mxu0
        %v2754 = vadd.f32 %v2208, %v2753
        %v2755 = vpop.f32.mrb[0].mxu0
        %v2756 = vadd.f32 %v2210, %v2755
        %v2757 = vpop.f32.mrb[0].mxu0
        %v2758 = vadd.f32 %v2212, %v2757
        %2759 = vdwg.mxu0
        %2760 = vmatprep.subr.bf16.mxu0 %v2522
        %2761 = vmatpush1.bf16.msra.mxu0 %v2521
        %2762 = vmatprep.subr.bf16.mxu0 %v2526
        %2763 = vmatpush1.bf16.msra.mxu0 %v2525
        %2764 = vmatprep.subr.bf16.mxu0 %v2530
        %2765 = vmatpush1.bf16.msra.mxu0 %v2529
        %2766 = vmatprep.subr.bf16.mxu0 %v2534
        %2767 = vmatpush1.bf16.msra.mxu0 %v2533
        %2768 = vmatprep.subr.bf16.mxu0 %v2538
        %2769 = vmatpush1.bf16.msra.mxu0 %v2537
        %2770 = vmatprep.subr.bf16.mxu0 %v2542
        %2771 = vmatpush1.bf16.msra.mxu0 %v2541
        %2772 = vmatprep.subr.bf16.mxu0 %v2546
        %2773 = vmatpush1.bf16.msra.mxu0 %v2545
        %2774 = vmatprep.subr.bf16.mxu0 %v2550
        %2775 = vmatpush1.bf16.msra.mxu0 %v2549
        %2776 = vmatprep.subr.bf16.mxu0 %v2554
        %2777 = vmatpush1.bf16.msra.mxu0 %v2553
        %2778 = vmatprep.subr.bf16.mxu0 %v2558
        %2779 = vmatpush1.bf16.msra.mxu0 %v2557
        %2780 = vmatprep.subr.bf16.mxu0 %v2562
        %2781 = vmatpush1.bf16.msra.mxu0 %v2561
        %2782 = vmatprep.subr.bf16.mxu0 %v2566
        %2783 = vmatpush1.bf16.msra.mxu0 %v2565
        %2784 = vmatprep.subr.bf16.mxu0 %v2570
        %2785 = vmatpush1.bf16.msra.mxu0 %v2569
        %2786 = vmatprep.subr.bf16.mxu0 %v2574
        %2787 = vmatpush1.bf16.msra.mxu0 %v2573
        %2788 = vmatprep.subr.bf16.mxu0 %v2578
        %2789 = vmatpush1.bf16.msra.mxu0 %v2577
        %2790 = vmatprep.subr.bf16.mxu0 %v2582
        %2791 = vmatpush1.bf16.msra.mxu0 %v2581
        %2792 = vmatprep.mubr.bf16.mxu0 %v1590
        %2793 = vmatmul.mubr.bf16.gmra.mrb[0].mxu0 %v1589
        %v2794 = vpop.f32.mrb[0].mxu0
        %v2795 = vadd.f32 %v2249, %v2794
        %v2796 = vpop.f32.mrb[0].mxu0
        %v2797 = vadd.f32 %v2251, %v2796
        %v2798 = vpop.f32.mrb[0].mxu0
        %v2799 = vadd.f32 %v2253, %v2798
        %v2800 = vpop.f32.mrb[0].mxu0
        %v2801 = vadd.f32 %v2255, %v2800
        %2802 = vmatprep.mubr.bf16.mxu0 %v1592
        %2803 = vmatmul.mubr.bf16.gmra.mrb[0].mxu0 %v1591
        %v2804 = vpop.f32.mrb[0].mxu0
        %v2805 = vadd.f32 %v2259, %v2804
        %v2806 = vpop.f32.mrb[0].mxu0
        %v2807 = vadd.f32 %v2261, %v2806
        %v2808 = vpop.f32.mrb[0].mxu0
        %v2809 = vadd.f32 %v2263, %v2808
        %v2810 = vpop.f32.mrb[0].mxu0
        %v2811 = vadd.f32 %v2265, %v2810
        %2812 = vmatprep.mubr.bf16.mxu0 %v1594
        %2813 = vmatmul.mubr.bf16.gmra.mrb[0].mxu0 %v1593
        %v2814 = vpop.f32.mrb[0].mxu0
        %v2815 = vadd.f32 %v2269, %v2814
        %v2816 = vpop.f32.mrb[0].mxu0
        %v2817 = vadd.f32 %v2271, %v2816
        %v2818 = vpop.f32.mrb[0].mxu0
        %v2819 = vadd.f32 %v2273, %v2818
        %v2820 = vpop.f32.mrb[0].mxu0
        %v2821 = vadd.f32 %v2275, %v2820
        %2822 = vmatprep.mubr.bf16.mxu0 %v1596
        %2823 = vmatmul.mubr.bf16.gmra.mrb[0].mxu0 %v1595
        %v2824 = vpop.f32.mrb[0].mxu0
        %v2825 = vadd.f32 %v2279, %v2824
        %v2826 = vpop.f32.mrb[0].mxu0
        %v2827 = vadd.f32 %v2281, %v2826
        %v2828 = vpop.f32.mrb[0].mxu0
        %v2829 = vadd.f32 %v2283, %v2828
        %v2830 = vpop.f32.mrb[0].mxu0
        %v2831 = vadd.f32 %v2285, %v2830
        %2832 = vmatprep.mubr.bf16.mxu0 %v1598
        %2833 = vmatmul.mubr.bf16.gmra.mrb[0].mxu0 %v1597
        %v2834 = vpop.f32.mrb[0].mxu0
        %v2835 = vadd.f32 %v2289, %v2834
        %v2836 = vpop.f32.mrb[0].mxu0
        %v2837 = vadd.f32 %v2291, %v2836
        %v2838 = vpop.f32.mrb[0].mxu0
        %v2839 = vadd.f32 %v2293, %v2838
        %v2840 = vpop.f32.mrb[0].mxu0
        %v2841 = vadd.f32 %v2295, %v2840
        %2842 = vmatprep.mubr.bf16.mxu0 %v1600
        %2843 = vmatmul.mubr.bf16.gmra.mrb[0].mxu0 %v1599
        %v2844 = vpop.f32.mrb[0].mxu0
        %v2845 = vadd.f32 %v2299, %v2844
        %v2846 = vpop.f32.mrb[0].mxu0
        %v2847 = vadd.f32 %v2301, %v2846
        %v2848 = vpop.f32.mrb[0].mxu0
        %v2849 = vadd.f32 %v2303, %v2848
        %v2850 = vpop.f32.mrb[0].mxu0
        %v2851 = vadd.f32 %v2305, %v2850
        %2852 = vmatprep.mubr.bf16.mxu0 %v1602
        %2853 = vmatmul.mubr.bf16.gmra.mrb[0].mxu0 %v1601
        %v2854 = vpop.f32.mrb[0].mxu0
        %v2855 = vadd.f32 %v2309, %v2854
        %v2856 = vpop.f32.mrb[0].mxu0
        %v2857 = vadd.f32 %v2311, %v2856
        %v2858 = vpop.f32.mrb[0].mxu0
        %v2859 = vadd.f32 %v2313, %v2858
        %v2860 = vpop.f32.mrb[0].mxu0
        %v2861 = vadd.f32 %v2315, %v2860
        %2862 = vmatprep.mubr.bf16.mxu0 %v1604
        %2863 = vmatmul.mubr.bf16.gmra.mrb[0].mxu0 %v1603
        %v2864 = vpop.f32.mrb[0].mxu0
        %v2865 = vadd.f32 %v2319, %v2864
        %v2866 = vpop.f32.mrb[0].mxu0
        %v2867 = vadd.f32 %v2321, %v2866
        %v2868 = vpop.f32.mrb[0].mxu0
        %v2869 = vadd.f32 %v2323, %v2868
        %v2870 = vpop.f32.mrb[0].mxu0
        %v2871 = vadd.f32 %v2325, %v2870
        %2872 = vdwg.mxu0
        %v2873 = vmul.f32 %v2682, %v2682
        %v2874 = vmul.f32 %v2684, %v2684
        %v2875 = vmul.f32 %v2686, %v2686
        %v2876 = vmul.f32 %v2688, %v2688
        %v2877 = vmul.f32 %v2692, %v2692
        %v2878 = vmul.f32 %v2694, %v2694
        %v2879 = vmul.f32 %v2696, %v2696
        %v2880 = vmul.f32 %v2698, %v2698
        %v2881 = vmul.f32 %v2702, %v2702
        %v2882 = vmul.f32 %v2704, %v2704
        %v2883 = vmul.f32 %v2706, %v2706
        %v2884 = vmul.f32 %v2708, %v2708
        %v2885 = vmul.f32 %v2712, %v2712
        %v2886 = vmul.f32 %v2714, %v2714
        %v2887 = vmul.f32 %v2716, %v2716
        %v2888 = vmul.f32 %v2718, %v2718
        %v2889 = vmul.f32 %v2722, %v2722
        %v2890 = vmul.f32 %v2724, %v2724
        %v2891 = vmul.f32 %v2726, %v2726
        %v2892 = vmul.f32 %v2728, %v2728
        %v2893 = vmul.f32 %v2732, %v2732
        %v2894 = vmul.f32 %v2734, %v2734
        %v2895 = vmul.f32 %v2736, %v2736
        %v2896 = vmul.f32 %v2738, %v2738
        %v2897 = vmul.f32 %v2742, %v2742
        %v2898 = vmul.f32 %v2744, %v2744
        %v2899 = vmul.f32 %v2746, %v2746
        %v2900 = vmul.f32 %v2748, %v2748
        %v2901 = vmul.f32 %v2752, %v2752
        %v2902 = vmul.f32 %v2754, %v2754
        %v2903 = vmul.f32 %v2756, %v2756
        %v2904 = vmul.f32 %v2758, %v2758
        %v2905 = vmul.f32 %v2795, %v2795
        %v2906 = vmul.f32 %v2797, %v2797
        %v2907 = vmul.f32 %v2799, %v2799
        %v2908 = vmul.f32 %v2801, %v2801
        %v2909 = vmul.f32 %v2805, %v2805
        %v2910 = vmul.f32 %v2807, %v2807
        %v2911 = vmul.f32 %v2809, %v2809
        %v2912 = vmul.f32 %v2811, %v2811
        %v2913 = vmul.f32 %v2815, %v2815
        %v2914 = vmul.f32 %v2817, %v2817
        %v2915 = vmul.f32 %v2819, %v2819
        %v2916 = vmul.f32 %v2821, %v2821
        %v2917 = vmul.f32 %v2825, %v2825
        %v2918 = vmul.f32 %v2827, %v2827
        %v2919 = vmul.f32 %v2829, %v2829
        %v2920 = vmul.f32 %v2831, %v2831
        %v2921 = vmul.f32 %v2835, %v2835
        %v2922 = vmul.f32 %v2837, %v2837
        %v2923 = vmul.f32 %v2839, %v2839
        %v2924 = vmul.f32 %v2841, %v2841
        %v2925 = vmul.f32 %v2845, %v2845
        %v2926 = vmul.f32 %v2847, %v2847
        %v2927 = vmul.f32 %v2849, %v2849
        %v2928 = vmul.f32 %v2851, %v2851
        %v2929 = vmul.f32 %v2855, %v2855
        %v2930 = vmul.f32 %v2857, %v2857
        %v2931 = vmul.f32 %v2859, %v2859
        %v2932 = vmul.f32 %v2861, %v2861
        %v2933 = vmul.f32 %v2865, %v2865
        %v2934 = vmul.f32 %v2867, %v2867
        %v2935 = vmul.f32 %v2869, %v2869
        %v2936 = vmul.f32 %v2871, %v2871
        %v2937 = vadd.f32 %v2873, %v2905
        %v2938 = vadd.f32 %v2874, %v2906
        %v2939 = vadd.f32 %v2875, %v2907
        %v2940 = vadd.f32 %v2876, %v2908
        %v2941 = vadd.f32 %v2877, %v2909
        %v2942 = vadd.f32 %v2878, %v2910
        %v2943 = vadd.f32 %v2879, %v2911
        %v2944 = vadd.f32 %v2880, %v2912
        %v2945 = vadd.f32 %v2881, %v2913
        %v2946 = vadd.f32 %v2882, %v2914
        %v2947 = vadd.f32 %v2883, %v2915
        %v2948 = vadd.f32 %v2884, %v2916
        %v2949 = vadd.f32 %v2885, %v2917
        %v2950 = vadd.f32 %v2886, %v2918
        %v2951 = vadd.f32 %v2887, %v2919
        %v2952 = vadd.f32 %v2888, %v2920
        %v2953 = vadd.f32 %v2889, %v2921
        %v2954 = vadd.f32 %v2890, %v2922
        %v2955 = vadd.f32 %v2891, %v2923
        %v2956 = vadd.f32 %v2892, %v2924
        %v2957 = vadd.f32 %v2893, %v2925
        %v2958 = vadd.f32 %v2894, %v2926
        %v2959 = vadd.f32 %v2895, %v2927
        %v2960 = vadd.f32 %v2896, %v2928
        %v2961 = vadd.f32 %v2897, %v2929
        %v2962 = vadd.f32 %v2898, %v2930
        %v2963 = vadd.f32 %v2899, %v2931
        %v2964 = vadd.f32 %v2900, %v2932
        %v2965 = vadd.f32 %v2901, %v2933
        %v2966 = vadd.f32 %v2902, %v2934
        %v2967 = vadd.f32 %v2903, %v2935
        %v2968 = vadd.f32 %v2904, %v2936
        %v2969 = vrsqrt.pop %v2937
        %v2970 = vmul.f32 %v2937, %v2969
        %vm2971 = vcmp.eq.f32.partialorder %v2937, inf
        %v2972 = vsel %vm2971, %v2937, %v2970
        %vm2973 = vcmp.eq.f32.partialorder %v2937, 0.0
        %v2974 = vand.u32 %v2937, 2147483648
        %v2975 = vsel %vm2973, %v2974, %v2972
        %v2976 = vrsqrt.pop %v2938
        %v2977 = vmul.f32 %v2938, %v2976
        %vm2978 = vcmp.eq.f32.partialorder %v2938, inf
        %v2979 = vsel %vm2978, %v2938, %v2977
        %vm2980 = vcmp.eq.f32.partialorder %v2938, 0.0
        %v2981 = vand.u32 %v2938, 2147483648
        %v2982 = vsel %vm2980, %v2981, %v2979
        %v2983 = vrsqrt.pop %v2939
        %v2984 = vmul.f32 %v2939, %v2983
        %vm2985 = vcmp.eq.f32.partialorder %v2939, inf
        %v2986 = vsel %vm2985, %v2939, %v2984
        %vm2987 = vcmp.eq.f32.partialorder %v2939, 0.0
        %v2988 = vand.u32 %v2939, 2147483648
        %v2989 = vsel %vm2987, %v2988, %v2986
        %v2990 = vrsqrt.pop %v2940
        %v2991 = vmul.f32 %v2940, %v2990
        %vm2992 = vcmp.eq.f32.partialorder %v2940, inf
        %v2993 = vsel %vm2992, %v2940, %v2991
        %vm2994 = vcmp.eq.f32.partialorder %v2940, 0.0
        %v2995 = vand.u32 %v2940, 2147483648
        %v2996 = vsel %vm2994, %v2995, %v2993
        %v2997 = vrsqrt.pop %v2941
        %v2998 = vmul.f32 %v2941, %v2997
        %vm2999 = vcmp.eq.f32.partialorder %v2941, inf
        %v3000 = vsel %vm2999, %v2941, %v2998
        %vm3001 = vcmp.eq.f32.partialorder %v2941, 0.0
        %v3002 = vand.u32 %v2941, 2147483648
        %v3003 = vsel %vm3001, %v3002, %v3000
        %v3004 = vrsqrt.pop %v2942
        %v3005 = vmul.f32 %v2942, %v3004
        %vm3006 = vcmp.eq.f32.partialorder %v2942, inf
        %v3007 = vsel %vm3006, %v2942, %v3005
        %vm3008 = vcmp.eq.f32.partialorder %v2942, 0.0
        %v3009 = vand.u32 %v2942, 2147483648
        %v3010 = vsel %vm3008, %v3009, %v3007
        %v3011 = vrsqrt.pop %v2943
        %v3012 = vmul.f32 %v2943, %v3011
        %vm3013 = vcmp.eq.f32.partialorder %v2943, inf
        %v3014 = vsel %vm3013, %v2943, %v3012
        %vm3015 = vcmp.eq.f32.partialorder %v2943, 0.0
        %v3016 = vand.u32 %v2943, 2147483648
        %v3017 = vsel %vm3015, %v3016, %v3014
        %v3018 = vrsqrt.pop %v2944
        %v3019 = vmul.f32 %v2944, %v3018
        %vm3020 = vcmp.eq.f32.partialorder %v2944, inf
        %v3021 = vsel %vm3020, %v2944, %v3019
        %vm3022 = vcmp.eq.f32.partialorder %v2944, 0.0
        %v3023 = vand.u32 %v2944, 2147483648
        %v3024 = vsel %vm3022, %v3023, %v3021
        %v3025 = vrsqrt.pop %v2945
        %v3026 = vmul.f32 %v2945, %v3025
        %vm3027 = vcmp.eq.f32.partialorder %v2945, inf
        %v3028 = vsel %vm3027, %v2945, %v3026
        %vm3029 = vcmp.eq.f32.partialorder %v2945, 0.0
        %v3030 = vand.u32 %v2945, 2147483648
        %v3031 = vsel %vm3029, %v3030, %v3028
        %v3032 = vrsqrt.pop %v2946
        %v3033 = vmul.f32 %v2946, %v3032
        %vm3034 = vcmp.eq.f32.partialorder %v2946, inf
        %v3035 = vsel %vm3034, %v2946, %v3033
        %vm3036 = vcmp.eq.f32.partialorder %v2946, 0.0
        %v3037 = vand.u32 %v2946, 2147483648
        %v3038 = vsel %vm3036, %v3037, %v3035
        %v3039 = vrsqrt.pop %v2947
        %v3040 = vmul.f32 %v2947, %v3039
        %vm3041 = vcmp.eq.f32.partialorder %v2947, inf
        %v3042 = vsel %vm3041, %v2947, %v3040
        %vm3043 = vcmp.eq.f32.partialorder %v2947, 0.0
        %v3044 = vand.u32 %v2947, 2147483648
        %v3045 = vsel %vm3043, %v3044, %v3042
        %v3046 = vrsqrt.pop %v2948
        %v3047 = vmul.f32 %v2948, %v3046
        %vm3048 = vcmp.eq.f32.partialorder %v2948, inf
        %v3049 = vsel %vm3048, %v2948, %v3047
        %vm3050 = vcmp.eq.f32.partialorder %v2948, 0.0
        %v3051 = vand.u32 %v2948, 2147483648
        %v3052 = vsel %vm3050, %v3051, %v3049
        %v3053 = vrsqrt.pop %v2949
        %v3054 = vmul.f32 %v2949, %v3053
        %vm3055 = vcmp.eq.f32.partialorder %v2949, inf
        %v3056 = vsel %vm3055, %v2949, %v3054
        %vm3057 = vcmp.eq.f32.partialorder %v2949, 0.0
        %v3058 = vand.u32 %v2949, 2147483648
        %v3059 = vsel %vm3057, %v3058, %v3056
        %v3060 = vrsqrt.pop %v2950
        %v3061 = vmul.f32 %v2950, %v3060
        %vm3062 = vcmp.eq.f32.partialorder %v2950, inf
        %v3063 = vsel %vm3062, %v2950, %v3061
        %vm3064 = vcmp.eq.f32.partialorder %v2950, 0.0
        %v3065 = vand.u32 %v2950, 2147483648
        %v3066 = vsel %vm3064, %v3065, %v3063
        %v3067 = vrsqrt.pop %v2951
        %v3068 = vmul.f32 %v2951, %v3067
        %vm3069 = vcmp.eq.f32.partialorder %v2951, inf
        %v3070 = vsel %vm3069, %v2951, %v3068
        %vm3071 = vcmp.eq.f32.partialorder %v2951, 0.0
        %v3072 = vand.u32 %v2951, 2147483648
        %v3073 = vsel %vm3071, %v3072, %v3070
        %v3074 = vrsqrt.pop %v2952
        %v3075 = vmul.f32 %v2952, %v3074
        %vm3076 = vcmp.eq.f32.partialorder %v2952, inf
        %v3077 = vsel %vm3076, %v2952, %v3075
        %vm3078 = vcmp.eq.f32.partialorder %v2952, 0.0
        %v3079 = vand.u32 %v2952, 2147483648
        %v3080 = vsel %vm3078, %v3079, %v3077
        %v3081 = vrsqrt.pop %v2953
        %v3082 = vmul.f32 %v2953, %v3081
        %vm3083 = vcmp.eq.f32.partialorder %v2953, inf
        %v3084 = vsel %vm3083, %v2953, %v3082
        %vm3085 = vcmp.eq.f32.partialorder %v2953, 0.0
        %v3086 = vand.u32 %v2953, 2147483648
        %v3087 = vsel %vm3085, %v3086, %v3084
        %v3088 = vrsqrt.pop %v2954
        %v3089 = vmul.f32 %v2954, %v3088
        %vm3090 = vcmp.eq.f32.partialorder %v2954, inf
        %v3091 = vsel %vm3090, %v2954, %v3089
        %vm3092 = vcmp.eq.f32.partialorder %v2954, 0.0
        %v3093 = vand.u32 %v2954, 2147483648
        %v3094 = vsel %vm3092, %v3093, %v3091
        %v3095 = vrsqrt.pop %v2955
        %v3096 = vmul.f32 %v2955, %v3095
        %vm3097 = vcmp.eq.f32.partialorder %v2955, inf
        %v3098 = vsel %vm3097, %v2955, %v3096
        %vm3099 = vcmp.eq.f32.partialorder %v2955, 0.0
        %v3100 = vand.u32 %v2955, 2147483648
        %v3101 = vsel %vm3099, %v3100, %v3098
        %v3102 = vrsqrt.pop %v2956
        %v3103 = vmul.f32 %v2956, %v3102
        %vm3104 = vcmp.eq.f32.partialorder %v2956, inf
        %v3105 = vsel %vm3104, %v2956, %v3103
        %vm3106 = vcmp.eq.f32.partialorder %v2956, 0.0
        %v3107 = vand.u32 %v2956, 2147483648
        %v3108 = vsel %vm3106, %v3107, %v3105
        %v3109 = vrsqrt.pop %v2957
        %v3110 = vmul.f32 %v2957, %v3109
        %vm3111 = vcmp.eq.f32.partialorder %v2957, inf
        %v3112 = vsel %vm3111, %v2957, %v3110
        %vm3113 = vcmp.eq.f32.partialorder %v2957, 0.0
        %v3114 = vand.u32 %v2957, 2147483648
        %v3115 = vsel %vm3113, %v3114, %v3112
        %v3116 = vrsqrt.pop %v2958
        %v3117 = vmul.f32 %v2958, %v3116
        %vm3118 = vcmp.eq.f32.partialorder %v2958, inf
        %v3119 = vsel %vm3118, %v2958, %v3117
        %vm3120 = vcmp.eq.f32.partialorder %v2958, 0.0
        %v3121 = vand.u32 %v2958, 2147483648
        %v3122 = vsel %vm3120, %v3121, %v3119
        %v3123 = vrsqrt.pop %v2959
        %v3124 = vmul.f32 %v2959, %v3123
        %vm3125 = vcmp.eq.f32.partialorder %v2959, inf
        %v3126 = vsel %vm3125, %v2959, %v3124
        %vm3127 = vcmp.eq.f32.partialorder %v2959, 0.0
        %v3128 = vand.u32 %v2959, 2147483648
        %v3129 = vsel %vm3127, %v3128, %v3126
        %v3130 = vrsqrt.pop %v2960
        %v3131 = vmul.f32 %v2960, %v3130
        %vm3132 = vcmp.eq.f32.partialorder %v2960, inf
        %v3133 = vsel %vm3132, %v2960, %v3131
        %vm3134 = vcmp.eq.f32.partialorder %v2960, 0.0
        %v3135 = vand.u32 %v2960, 2147483648
        %v3136 = vsel %vm3134, %v3135, %v3133
        %v3137 = vrsqrt.pop %v2961
        %v3138 = vmul.f32 %v2961, %v3137
        %vm3139 = vcmp.eq.f32.partialorder %v2961, inf
        %v3140 = vsel %vm3139, %v2961, %v3138
        %vm3141 = vcmp.eq.f32.partialorder %v2961, 0.0
        %v3142 = vand.u32 %v2961, 2147483648
        %v3143 = vsel %vm3141, %v3142, %v3140
        %v3144 = vrsqrt.pop %v2962
        %v3145 = vmul.f32 %v2962, %v3144
        %vm3146 = vcmp.eq.f32.partialorder %v2962, inf
        %v3147 = vsel %vm3146, %v2962, %v3145
        %vm3148 = vcmp.eq.f32.partialorder %v2962, 0.0
        %v3149 = vand.u32 %v2962, 2147483648
        %v3150 = vsel %vm3148, %v3149, %v3147
        %v3151 = vrsqrt.pop %v2963
        %v3152 = vmul.f32 %v2963, %v3151
        %vm3153 = vcmp.eq.f32.partialorder %v2963, inf
        %v3154 = vsel %vm3153, %v2963, %v3152
        %vm3155 = vcmp.eq.f32.partialorder %v2963, 0.0
        %v3156 = vand.u32 %v2963, 2147483648
        %v3157 = vsel %vm3155, %v3156, %v3154
        %v3158 = vrsqrt.pop %v2964
        %v3159 = vmul.f32 %v2964, %v3158
        %vm3160 = vcmp.eq.f32.partialorder %v2964, inf
        %v3161 = vsel %vm3160, %v2964, %v3159
        %vm3162 = vcmp.eq.f32.partialorder %v2964, 0.0
        %v3163 = vand.u32 %v2964, 2147483648
        %v3164 = vsel %vm3162, %v3163, %v3161
        %v3165 = vrsqrt.pop %v2965
        %v3166 = vmul.f32 %v2965, %v3165
        %vm3167 = vcmp.eq.f32.partialorder %v2965, inf
        %v3168 = vsel %vm3167, %v2965, %v3166
        %vm3169 = vcmp.eq.f32.partialorder %v2965, 0.0
        %v3170 = vand.u32 %v2965, 2147483648
        %v3171 = vsel %vm3169, %v3170, %v3168
        %v3172 = vrsqrt.pop %v2966
        %v3173 = vmul.f32 %v2966, %v3172
        %vm3174 = vcmp.eq.f32.partialorder %v2966, inf
        %v3175 = vsel %vm3174, %v2966, %v3173
        %vm3176 = vcmp.eq.f32.partialorder %v2966, 0.0
        %v3177 = vand.u32 %v2966, 2147483648
        %v3178 = vsel %vm3176, %v3177, %v3175
        %v3179 = vrsqrt.pop %v2967
        %v3180 = vmul.f32 %v2967, %v3179
        %vm3181 = vcmp.eq.f32.partialorder %v2967, inf
        %v3182 = vsel %vm3181, %v2967, %v3180
        %vm3183 = vcmp.eq.f32.partialorder %v2967, 0.0
        %v3184 = vand.u32 %v2967, 2147483648
        %v3185 = vsel %vm3183, %v3184, %v3182
        %v3186 = vrsqrt.pop %v2968
        %v3187 = vmul.f32 %v2968, %v3186
        %vm3188 = vcmp.eq.f32.partialorder %v2968, inf
        %v3189 = vsel %vm3188, %v2968, %v3187
        %vm3190 = vcmp.eq.f32.partialorder %v2968, 0.0
        %v3191 = vand.u32 %v2968, 2147483648
        %v3192 = vsel %vm3190, %v3191, %v3189
        %v3193 = vld [vmem:[%s6] sm:$0xff]
        %v3194 = vld [vmem:[%s6 + $0x8] sm:$0xff]
        %v3195 = vld [vmem:[%s6 + $0x10] sm:$0xff]
        %v3196 = vld [vmem:[%s6 + $0x18] sm:$0xff]
        %v3197 = vld [vmem:[%s6 + $0x20] sm:$0xff]
        %v3198 = vld [vmem:[%s6 + $0x28] sm:$0xff]
        %v3199 = vld [vmem:[%s6 + $0x30] sm:$0xff]
        %v3200 = vld [vmem:[%s6 + $0x38] sm:$0xff]
        %v3201 = vld [vmem:[%s6 + $0x40] sm:$0xff]
        %v3202 = vld [vmem:[%s6 + $0x48] sm:$0xff]
        %v3203 = vld [vmem:[%s6 + $0x50] sm:$0xff]
        %v3204 = vld [vmem:[%s6 + $0x58] sm:$0xff]
        %v3205 = vld [vmem:[%s6 + $0x60] sm:$0xff]
        %v3206 = vld [vmem:[%s6 + $0x68] sm:$0xff]
        %v3207 = vld [vmem:[%s6 + $0x70] sm:$0xff]
        %v3208 = vld [vmem:[%s6 + $0x78] sm:$0xff]
        %3210 = vset.pattern.permute.xlu0 0
        %3211 = vperm.xlu0 %3210, %v3193
        %v3212 = vpop.permute.xlu0 %3211
        %3215 = vset.pattern.permute.xlu0 0
        %3216 = vperm.xlu0 %3215, %v3194
        %v3217 = vpop.permute.xlu0 %3216
        %3220 = vset.pattern.permute.xlu0 0
        %3221 = vperm.xlu0 %3220, %v3195
        %v3222 = vpop.permute.xlu0 %3221
        %3225 = vset.pattern.permute.xlu0 0
        %3226 = vperm.xlu0 %3225, %v3196
        %v3227 = vpop.permute.xlu0 %3226
        %3230 = vset.pattern.permute.xlu0 0
        %3231 = vperm.xlu0 %3230, %v3197
        %v3232 = vpop.permute.xlu0 %3231
        %3235 = vset.pattern.permute.xlu0 0
        %3236 = vperm.xlu0 %3235, %v3198
        %v3237 = vpop.permute.xlu0 %3236
        %3240 = vset.pattern.permute.xlu0 0
        %3241 = vperm.xlu0 %3240, %v3199
        %v3242 = vpop.permute.xlu0 %3241
        %3245 = vset.pattern.permute.xlu0 0
        %3246 = vperm.xlu0 %3245, %v3200
        %v3247 = vpop.permute.xlu0 %3246
        %3250 = vset.pattern.permute.xlu0 0
        %3251 = vperm.xlu0 %3250, %v3201
        %v3252 = vpop.permute.xlu0 %3251
        %3255 = vset.pattern.permute.xlu0 0
        %3256 = vperm.xlu0 %3255, %v3202
        %v3257 = vpop.permute.xlu0 %3256
        %3260 = vset.pattern.permute.xlu0 0
        %3261 = vperm.xlu0 %3260, %v3203
        %v3262 = vpop.permute.xlu0 %3261
        %3265 = vset.pattern.permute.xlu0 0
        %3266 = vperm.xlu0 %3265, %v3204
        %v3267 = vpop.permute.xlu0 %3266
        %3270 = vset.pattern.permute.xlu0 0
        %3271 = vperm.xlu0 %3270, %v3205
        %v3272 = vpop.permute.xlu0 %3271
        %3275 = vset.pattern.permute.xlu0 0
        %3276 = vperm.xlu0 %3275, %v3206
        %v3277 = vpop.permute.xlu0 %3276
        %3280 = vset.pattern.permute.xlu0 0
        %3281 = vperm.xlu0 %3280, %v3207
        %v3282 = vpop.permute.xlu0 %3281
        %3285 = vset.pattern.permute.xlu0 0
        %3286 = vperm.xlu0 %3285, %v3208
        %v3287 = vpop.permute.xlu0 %3286
        %v3289 = vmul.f32 %v2975, %v3212
        %v3290 = vmul.f32 %v2982, %v3212
        %v3291 = vmul.f32 %v2989, %v3217
        %v3292 = vmul.f32 %v2996, %v3217
        %v3293 = vmul.f32 %v3003, %v3222
        %v3294 = vmul.f32 %v3010, %v3222
        %v3295 = vmul.f32 %v3017, %v3227
        %v3296 = vmul.f32 %v3024, %v3227
        %v3297 = vmul.f32 %v3031, %v3232
        %v3298 = vmul.f32 %v3038, %v3232
        %v3299 = vmul.f32 %v3045, %v3237
        %v3300 = vmul.f32 %v3052, %v3237
        %v3301 = vmul.f32 %v3059, %v3242
        %v3302 = vmul.f32 %v3066, %v3242
        %v3303 = vmul.f32 %v3073, %v3247
        %v3304 = vmul.f32 %v3080, %v3247
        %v3305 = vmul.f32 %v3087, %v3252
        %v3306 = vmul.f32 %v3094, %v3252
        %v3307 = vmul.f32 %v3101, %v3257
        %v3308 = vmul.f32 %v3108, %v3257
        %v3309 = vmul.f32 %v3115, %v3262
        %v3310 = vmul.f32 %v3122, %v3262
        %v3311 = vmul.f32 %v3129, %v3267
        %v3312 = vmul.f32 %v3136, %v3267
        %v3313 = vmul.f32 %v3143, %v3272
        %v3314 = vmul.f32 %v3150, %v3272
        %v3315 = vmul.f32 %v3157, %v3277
        %v3316 = vmul.f32 %v3164, %v3277
        %v3317 = vmul.f32 %v3171, %v3282
        %v3318 = vmul.f32 %v3178, %v3282
        %v3319 = vmul.f32 %v3185, %v3287
        %v3320 = vmul.f32 %v3192, %v3287
        %v3321 = vld [vmem:[%s7] sm:$0xff]
        %v3322 = vld [vmem:[%s7 + $0x8] sm:$0xff]
        %v3323 = vld [vmem:[%s7 + $0x10] sm:$0xff]
        %v3324 = vld [vmem:[%s7 + $0x18] sm:$0xff]
        %v3325 = vld [vmem:[%s7 + $0x20] sm:$0xff]
        %v3326 = vld [vmem:[%s7 + $0x28] sm:$0xff]
        %v3327 = vld [vmem:[%s7 + $0x30] sm:$0xff]
        %v3328 = vld [vmem:[%s7 + $0x38] sm:$0xff]
        %v3329 = vld [vmem:[%s7 + $0x40] sm:$0xff]
        %v3330 = vld [vmem:[%s7 + $0x48] sm:$0xff]
        %v3331 = vld [vmem:[%s7 + $0x50] sm:$0xff]
        %v3332 = vld [vmem:[%s7 + $0x58] sm:$0xff]
        %v3333 = vld [vmem:[%s7 + $0x60] sm:$0xff]
        %v3334 = vld [vmem:[%s7 + $0x68] sm:$0xff]
        %v3335 = vld [vmem:[%s7 + $0x70] sm:$0xff]
        %v3336 = vld [vmem:[%s7 + $0x78] sm:$0xff]
        %3338 = vset.pattern.permute.xlu0 0
        %3339 = vperm.xlu0 %3338, %v3321
        %v3340 = vpop.permute.xlu0 %3339
        %3343 = vset.pattern.permute.xlu0 0
        %3344 = vperm.xlu0 %3343, %v3322
        %v3345 = vpop.permute.xlu0 %3344
        %3348 = vset.pattern.permute.xlu0 0
        %3349 = vperm.xlu0 %3348, %v3323
        %v3350 = vpop.permute.xlu0 %3349
        %3353 = vset.pattern.permute.xlu0 0
        %3354 = vperm.xlu0 %3353, %v3324
        %v3355 = vpop.permute.xlu0 %3354
        %3358 = vset.pattern.permute.xlu0 0
        %3359 = vperm.xlu0 %3358, %v3325
        %v3360 = vpop.permute.xlu0 %3359
        %3363 = vset.pattern.permute.xlu0 0
        %3364 = vperm.xlu0 %3363, %v3326
        %v3365 = vpop.permute.xlu0 %3364
        %3368 = vset.pattern.permute.xlu0 0
        %3369 = vperm.xlu0 %3368, %v3327
        %v3370 = vpop.permute.xlu0 %3369
        %3373 = vset.pattern.permute.xlu0 0
        %3374 = vperm.xlu0 %3373, %v3328
        %v3375 = vpop.permute.xlu0 %3374
        %3378 = vset.pattern.permute.xlu0 0
        %3379 = vperm.xlu0 %3378, %v3329
        %v3380 = vpop.permute.xlu0 %3379
        %3383 = vset.pattern.permute.xlu0 0
        %3384 = vperm.xlu0 %3383, %v3330
        %v3385 = vpop.permute.xlu0 %3384
        %3388 = vset.pattern.permute.xlu0 0
        %3389 = vperm.xlu0 %3388, %v3331
        %v3390 = vpop.permute.xlu0 %3389
        %3393 = vset.pattern.permute.xlu0 0
        %3394 = vperm.xlu0 %3393, %v3332
        %v3395 = vpop.permute.xlu0 %3394
        %3398 = vset.pattern.permute.xlu0 0
        %3399 = vperm.xlu0 %3398, %v3333
        %v3400 = vpop.permute.xlu0 %3399
        %3403 = vset.pattern.permute.xlu0 0
        %3404 = vperm.xlu0 %3403, %v3334
        %v3405 = vpop.permute.xlu0 %3404
        %3408 = vset.pattern.permute.xlu0 0
        %3409 = vperm.xlu0 %3408, %v3335
        %v3410 = vpop.permute.xlu0 %3409
        %3413 = vset.pattern.permute.xlu0 0
        %3414 = vperm.xlu0 %3413, %v3336
        %v3415 = vpop.permute.xlu0 %3414
        %v3417 = vmul.f32 %v370, %v3340
        %v3418 = vmul.f32 %v371, %v3340
        %v3419 = vmul.f32 %v372, %v3345
        %v3420 = vmul.f32 %v373, %v3345
        %v3421 = vmul.f32 %v374, %v3350
        %v3422 = vmul.f32 %v375, %v3350
        %v3423 = vmul.f32 %v376, %v3355
        %v3424 = vmul.f32 %v377, %v3355
        %v3425 = vmul.f32 %v378, %v3360
        %v3426 = vmul.f32 %v379, %v3360
        %v3427 = vmul.f32 %v380, %v3365
        %v3428 = vmul.f32 %v381, %v3365
        %v3429 = vmul.f32 %v382, %v3370
        %v3430 = vmul.f32 %v383, %v3370
        %v3431 = vmul.f32 %v384, %v3375
        %v3432 = vmul.f32 %v385, %v3375
        %v3433 = vmul.f32 %v386, %v3380
        %v3434 = vmul.f32 %v387, %v3380
        %v3435 = vmul.f32 %v388, %v3385
        %v3436 = vmul.f32 %v389, %v3385
        %v3437 = vmul.f32 %v390, %v3390
        %v3438 = vmul.f32 %v391, %v3390
        %v3439 = vmul.f32 %v392, %v3395
        %v3440 = vmul.f32 %v393, %v3395
        %v3441 = vmul.f32 %v394, %v3400
        %v3442 = vmul.f32 %v395, %v3400
        %v3443 = vmul.f32 %v396, %v3405
        %v3444 = vmul.f32 %v397, %v3405
        %v3445 = vmul.f32 %v398, %v3410
        %v3446 = vmul.f32 %v399, %v3410
        %v3447 = vmul.f32 %v400, %v3415
        %v3448 = vmul.f32 %v401, %v3415
        %v3449 = vadd.f32 %v3289, %v3417
        %v3450 = vadd.f32 %v3290, %v3418
        %v3451 = vadd.f32 %v3291, %v3419
        %v3452 = vadd.f32 %v3292, %v3420
        %v3453 = vadd.f32 %v3293, %v3421
        %v3454 = vadd.f32 %v3294, %v3422
        %v3455 = vadd.f32 %v3295, %v3423
        %v3456 = vadd.f32 %v3296, %v3424
        %v3457 = vadd.f32 %v3297, %v3425
        %v3458 = vadd.f32 %v3298, %v3426
        %v3459 = vadd.f32 %v3299, %v3427
        %v3460 = vadd.f32 %v3300, %v3428
        %v3461 = vadd.f32 %v3301, %v3429
        %v3462 = vadd.f32 %v3302, %v3430
        %v3463 = vadd.f32 %v3303, %v3431
        %v3464 = vadd.f32 %v3304, %v3432
        %v3465 = vadd.f32 %v3305, %v3433
        %v3466 = vadd.f32 %v3306, %v3434
        %v3467 = vadd.f32 %v3307, %v3435
        %v3468 = vadd.f32 %v3308, %v3436
        %v3469 = vadd.f32 %v3309, %v3437
        %v3470 = vadd.f32 %v3310, %v3438
        %v3471 = vadd.f32 %v3311, %v3439
        %v3472 = vadd.f32 %v3312, %v3440
        %v3473 = vadd.f32 %v3313, %v3441
        %v3474 = vadd.f32 %v3314, %v3442
        %v3475 = vadd.f32 %v3315, %v3443
        %v3476 = vadd.f32 %v3316, %v3444
        %v3477 = vadd.f32 %v3317, %v3445
        %v3478 = vadd.f32 %v3318, %v3446
        %v3479 = vadd.f32 %v3319, %v3447
        %v3480 = vadd.f32 %v3320, %v3448
        %3481 = vst [vmem:[%s360] sm:$0xff] %v3449
        %3482 = vst [vmem:[%s360 + $0x8] sm:$0xff] %v3450
        %3483 = vst [vmem:[%s360 + $0x10] sm:$0xff] %v3451
        %3484 = vst [vmem:[%s360 + $0x18] sm:$0xff] %v3452
        %3485 = vst [vmem:[%s360 + $0x20] sm:$0xff] %v3453
        %3486 = vst [vmem:[%s360 + $0x28] sm:$0xff] %v3454
        %3487 = vst [vmem:[%s360 + $0x30] sm:$0xff] %v3455
        %3488 = vst [vmem:[%s360 + $0x38] sm:$0xff] %v3456
        %3489 = vst [vmem:[%s360 + $0x40] sm:$0xff] %v3457
        %3490 = vst [vmem:[%s360 + $0x48] sm:$0xff] %v3458
        %3491 = vst [vmem:[%s360 + $0x50] sm:$0xff] %v3459
        %3492 = vst [vmem:[%s360 + $0x58] sm:$0xff] %v3460
        %3493 = vst [vmem:[%s360 + $0x60] sm:$0xff] %v3461
        %3494 = vst [vmem:[%s360 + $0x68] sm:$0xff] %v3462
        %3495 = vst [vmem:[%s360 + $0x70] sm:$0xff] %v3463
        %3496 = vst [vmem:[%s360 + $0x78] sm:$0xff] %v3464
        %3497 = vst [vmem:[%s360 + $0x80] sm:$0xff] %v3465
        %3498 = vst [vmem:[%s360 + $0x88] sm:$0xff] %v3466
        %3499 = vst [vmem:[%s360 + $0x90] sm:$0xff] %v3467
        %3500 = vst [vmem:[%s360 + $0x98] sm:$0xff] %v3468
        %3501 = vst [vmem:[%s360 + $0xa0] sm:$0xff] %v3469
        %3502 = vst [vmem:[%s360 + $0xa8] sm:$0xff] %v3470
        %3503 = vst [vmem:[%s360 + $0xb0] sm:$0xff] %v3471
        %3504 = vst [vmem:[%s360 + $0xb8] sm:$0xff] %v3472
        %3505 = vst [vmem:[%s360 + $0xc0] sm:$0xff] %v3473
        %3506 = vst [vmem:[%s360 + $0xc8] sm:$0xff] %v3474
        %3507 = vst [vmem:[%s360 + $0xd0] sm:$0xff] %v3475
        %3508 = vst [vmem:[%s360 + $0xd8] sm:$0xff] %v3476
        %3509 = vst [vmem:[%s360 + $0xe0] sm:$0xff] %v3477
        %3510 = vst [vmem:[%s360 + $0xe8] sm:$0xff] %v3478
        %3511 = vst [vmem:[%s360 + $0xf0] sm:$0xff] %v3479
        %3512 = vst [vmem:[%s360 + $0xf8] sm:$0xff] %v3480
        %s3513 = sand.u32 %s206, 1
        %s3514 = scalar_lea.sflag [#allocation4], %s3513
        %s3515 = sand.u32 %s206, 1
        %s3516 = smul.addr %s3515, 256
        %s3517 = scalar_lea.vmem [#allocation10], %s3516
        // Predicated region
        $region69: #{tpu_custom_call.1} parent=51 // pred_check
          %p3518 = pneg %p216
        $region70: #{tpu_custom_call.1} parent=51 // pred_check_branch
          %3520 = sbr.rel (%p3518) target = $region72
        $region71: #{tpu_custom_call.1} parent=51 // pred_region
          %s3521 = smul.u32 16, %s25
          %s3523 = ssub.s32 4096, 4096
          %3524 = vsyncadd %s3514, %s3523
          %s3525 = smul.addr %s3521, 2
          %s3526 = smul.addr %s3525, 128
          %s3527 = scalar_lea.hbm %s8, %s3526
          %s3528 = sshll.u32 %s3517, 4
          %s3529 = int_to_ptr.vmem [resolvable:$true] %s3528
          %3534 = dma.vmem_to_hbm [thread:$0]  %s3529, 4096, %s3527, %s3514, 256, 256, 16
        $region72: #{tpu_custom_call.1} parent=51 // pred_fallthru
          _
      $region52: #{tpu_custom_call.1} parent=5 // pred_fallthru
        _
      %p3535 = scmp.le.s32.totalorder 2, %s20
      // Predicated region
      $region73: #{tpu_custom_call.1} parent=5 // pred_check
        %p3536 = pneg %p3535
      $region74: #{tpu_custom_call.1} parent=5 // pred_check_branch
        %3538 = sbr.rel (%p3536) target = $region76
      $region75: #{tpu_custom_call.1} parent=5 // pred_region
        %s3539 = ssub.s32 %s20, 2
        // Predicated region
        $region77: #{tpu_custom_call.1} parent=75 // pred_check
          %p3540 = pneg %p222
        $region78: #{tpu_custom_call.1} parent=75 // pred_check_branch
          %3542 = sbr.rel (%p3540) target = $region80
        $region79: #{tpu_custom_call.1} parent=75 // pred_region
          %s3543 = sand.u32 %s207, 1
          %s3544 = scalar_lea.sflag [#allocation4], %s3543
          %s3545 = sand.u32 %s207, 1
          %s3546 = smul.addr %s3545, 256
          %s3547 = scalar_lea.vmem [#allocation10], %s3546
          %3548 = dma.done %s3544, 4096
        $region80: #{tpu_custom_call.1} parent=75 // pred_fallthru
          _
      $region76: #{tpu_custom_call.1} parent=5 // pred_fallthru
        _
    $region6: #{tpu_custom_call.1} parent=1 // loop_footer
      %s24 = sadd.s32 1, %s20
    $region7: #{tpu_custom_call.1} parent=1 // loop_footer_branch
      %19 = sbr.rel target = $region3
    $region8: #{tpu_custom_call.1} parent=1 // loop_exit
      _
    %3549 = vsyncpa [#allocation3], 1
    %s3550 = scalar_lea.sflag [#allocation3], 1
    %3551 = vsyncpa %s3550, 1
    %3552 = vsyncpa [#allocation6], 1
    %3553 = vsyncpa [#allocation9], 1
    %3554 = vsyncpa [#allocation4], 1
    %s3555 = scalar_lea.sflag [#allocation4], 1
    %3556 = vsyncpa %s3555, 1

</llo_original>
